<compile_context>
chip_gen: v5e
topology: v5e:2x2
jax: 0.10.0
libtpu: 0.0.40
codegen_flags: <defaults>
</compile_context>

<pallas_src>
import functools

import jax
import jax.numpy as jnp
from jax.experimental import pallas as pl
from jax.experimental.pallas import tpu as pltpu


def lcsa_kernel(p_ref, wqkv_ref, bqkv_ref, out_ref, attn_ref, *, c, tb, ws):
    """One grid step processes TB patches x c channels.

    p_ref    : (c, TB, K)  bf16 patches, channel-major; also supplies the residual.
    wqkv_ref : (K, 2W+K)   bf16 folded conv1 @ [wq/sqrt(W) | wk | wv]
    bqkv_ref : (1, 2W+K)   bf16 folded bias
    out_ref  : (TB, c*K)   f32 lane-dense output (channel i -> lanes i*K..(i+1)*K)
    attn_ref : (TB, c*c)   f32 attention weights, row t = flattened (c, c)
    """
    kk = p_ref.shape[-1]                       # K = ks**3

    # (c, TB, K) -> (c*TB, K): collapsing leading dims is layout-free (TB % 8 == 0),
    # no per-step VMEM copy (replaces the old jnp.concatenate).
    p_flat = p_ref[...].reshape(c * tb, kk)

    # Fused conv1 + q/k/v projection: single MXU pass, N = 2W+K lanes (lane dense).
    # bf16 inputs, f32 accumulation.
    qkv = jnp.dot(p_flat, wqkv_ref[...], preferred_element_type=jnp.float32)
    qkv = qkv + bqkv_ref[...].astype(jnp.float32)          # (c*TB, 2W+K) f32

    q_ch = [qkv[i * tb:(i + 1) * tb, :ws] for i in range(c)]          # (TB, W), pre-scaled
    k_ch = [qkv[i * tb:(i + 1) * tb, ws:2 * ws] for i in range(c)]    # (TB, W)
    v_ch = [qkv[i * tb:(i + 1) * tb, 2 * ws:] for i in range(c)]      # (TB, K)

    outs = []
    attns = []
    for i in range(c):                      # query channel; c is tiny -> unrolled
        # logits[:, j] = <q_i, k_j> per patch: VPU multiply + XLU lane reduce.
        logits = jnp.concatenate(
            [jnp.sum(q_ch[i] * k_ch[j], axis=-1, keepdims=True) for j in range(c)],
            axis=-1)                                                   # (TB, c)
        m = jnp.max(logits, axis=-1, keepdims=True)
        e = jnp.exp(logits - m)
        # Exact reciprocal: attn is returned to the caller, rows should sum to 1.
        attn = e * (1.0 / jnp.sum(e, axis=-1, keepdims=True))
        attns.append(attn)
        # TODO(synk): nn.Dropout(0.2) on attn omitted (eval-mode / inference semantics).

        out_i = p_flat[i * tb:(i + 1) * tb, :].astype(jnp.float32)     # residual add
        for j in range(c):
            out_i = out_i + attn[:, j:j + 1] * v_ch[j]                 # (TB, K)
        outs.append(out_i)

    out_ref[...] = jnp.concatenate(outs, axis=-1).astype(out_ref.dtype)     # (TB, c*K)
    attn_ref[...] = jnp.concatenate(attns, axis=-1).astype(attn_ref.dtype)  # (TB, c*c)


def _choose_tb(bn, c, target_rows=2048):
    """Patches per grid step (multiple of 8).

    Targets c*TB ~ target_rows rows per step (multi-MB DMA blocks; the kernel is
    HBM-bound and ~0.35us/step of grid overhead must be amortized), capped so the
    grid has >= 2 steps whenever possible (v7x megacore).  The caller pads BN up
    to a multiple of TB — no giant-block fallback.
    """
    tb = max(8, (target_rows // max(c, 1)) // 8 * 8)
    bn_up = -(-bn // 8) * 8                      # bn rounded up to a multiple of 8
    tb = min(tb, bn_up)
    if bn > 8:                                   # keep grid length >= 2
        half = (bn + 1) // 2
        half_up = -(-half // 8) * 8
        tb = min(tb, half_up)
    return max(tb, 8)


def local_conv_self_attention(x, params, ks):
    b, c, d, w, h = x.shape
    W = params["w1"].shape[0]
    K = ks ** 3
    dp, wp, hp = d // ks, w // ks, h // ks
    n = dp * wp * hp
    BN = b * n
    QKV = 2 * W + K

    # ---- glue: patchify (NCDHW -> (c, b*n, K), channel-major rows), bf16 ------
    # TODO(synk): nearest-neighbor resize for non-divisible spatial sizes not implemented.
    xr = x.reshape(b, c, dp, ks, wp, ks, hp, ks)
    xr = xr.transpose(1, 0, 2, 4, 6, 3, 5, 7)        # (c, b, dp, wp, hp, ks, ks, ks)
    patches = xr.reshape(c, BN, K).astype(jnp.bfloat16)

    # ---- glue: fold conv1 + q/k/v (+ temperature) in f32, then ONE bf16 cast ---
    w1t = params["w1"].reshape(W, K).T.astype(jnp.float32)         # (K, W)
    b1 = params["b1"].reshape(1, W).astype(jnp.float32)            # (1, W)
    wqt = params["wq"].reshape(W, W).T.astype(jnp.float32)         # (W, W)
    wkt = params["wk"].reshape(W, W).T.astype(jnp.float32)         # (W, W)
    wvt = params["wv"].reshape(K, W).T.astype(jnp.float32)         # (W, K)
    inv_temp = 1.0 / jnp.sqrt(jnp.float32(W))
    wqkv = jnp.concatenate(
        [(w1t @ wqt) * inv_temp, w1t @ wkt, w1t @ wvt], axis=1).astype(jnp.bfloat16)
    bqkv = jnp.concatenate(
        [(b1 @ wqt) * inv_temp, b1 @ wkt, b1 @ wvt], axis=1).astype(jnp.bfloat16)

    # ---- tiling: big tiles, BN padded to a multiple of TB ----------------------
    TB = _choose_tb(BN, c)
    BN_pad = -(-BN // TB) * TB
    if BN_pad != BN:
        patches = jnp.pad(patches, ((0, 0), (0, BN_pad - BN), (0, 0)))
    grid = (BN_pad // TB,)

    kernel = functools.partial(lcsa_kernel, c=c, tb=TB, ws=W)

    out_dense, attn_dense = pl.pallas_call(
        kernel,
        out_shape=(jax.ShapeDtypeStruct((BN_pad, c * K), jnp.float32),
                   jax.ShapeDtypeStruct((BN_pad, c * c), jnp.float32)),
        grid_spec=pltpu.PrefetchScalarGridSpec(
            num_scalar_prefetch=0,
            grid=grid,
            in_specs=[
                pl.BlockSpec((c, TB, K), lambda i: (0, i, 0)),
                pl.BlockSpec((K, QKV), lambda i: (0, 0)),   # weights stay VMEM-resident
                pl.BlockSpec((1, QKV), lambda i: (0, 0)),
            ],
            out_specs=[
                pl.BlockSpec((TB, c * K), lambda i: (i, 0)),
                pl.BlockSpec((TB, c * c), lambda i: (i, 0)),
            ],
        ),
        compiler_params=pltpu.CompilerParams(
            dimension_semantics=("parallel",),
            # ~3 MiB working set at TB=512; 48 MiB is v7x-safe and roomy for v5e/v6e.
            vmem_limit_bytes=48 * 1024 * 1024),
    )(patches, wqkv, bqkv)

    if BN_pad != BN:
        out_dense = out_dense[:BN]
        attn_dense = attn_dense[:BN]

    # ---- glue: un-patchify ((BN, c*K) -> NCDHW) --------------------------------
    # F.interpolate(nearest) is the identity because d,w,h are multiples of ks.
    y = out_dense.reshape(b, dp, wp, hp, c, ks, ks, ks)
    y = y.transpose(0, 4, 1, 5, 2, 6, 3, 7)          # (b, c, dp, ks, wp, ks, hp, ks)
    y = y.reshape(b, c, d, w, h)

    attn = attn_dense.reshape(b, n, c, c)
    return y, attn


def reference_forward(x, params, ks):
    """Pure-JAX f32 reference following the PyTorch forward exactly (eval mode)."""
    b, c, d, w, h = x.shape
    W = params["w1"].shape[0]
    K = ks ** 3
    dp, wp, hp = d // ks, w // ks, h // ks
    n = dp * wp * hp

    xr = x.reshape(b, c, dp, ks, wp, ks, hp, ks).transpose(0, 1, 2, 4, 6, 3, 5, 7)
    patches = xr.reshape(b, c, n, K)                                   # (b, c, n, K)
    w1 = params["w1"].reshape(W, K)
    emb = jnp.einsum("bcnk,ok->bcno", patches, w1) + params["b1"]      # (b, c, n, W)
    q = jnp.einsum("bcni,oi->bnco", emb, params["wq"].reshape(W, W))   # (b, n, c, W)
    k = jnp.einsum("bcni,oi->bnco", emb, params["wk"].reshape(W, W))   # (b, n, c, W)
    v = jnp.einsum("bcni,oi->bnco", emb, params["wv"].reshape(K, W))   # (b, n, c, K)
    logits = jnp.einsum("bniw,bnjw->bnij", q / (W ** 0.5), k)
    attn = jax.nn.softmax(logits, axis=-1)
    out = jnp.einsum("bnij,bnjk->bnik", attn, v)                       # (b, n, c, K)
    y = out.reshape(b, dp, wp, hp, c, ks, ks, ks).transpose(0, 4, 1, 5, 2, 6, 3, 7)
    y3 = y.reshape(b, c, d, w, h)
    return y3 + x, attn


if __name__ == "__main__":
    wordsize, ks = 32, 4
    b, c, d, w, h = 2, 4, 16, 16, 16
    K = ks ** 3

    key = jax.random.PRNGKey(0)
    k1, k2, k3, k4, k5, kx = jax.random.split(key, 6)
    params = {
        # nn.Conv3d(1, wordsize, ks, ks): weight (wordsize, 1, ks, ks, ks), bias (wordsize,)
        "w1": 0.1 * jax.random.normal(k1, (wordsize, 1, ks, ks, ks), jnp.float32),
        "b1": 0.1 * jax.random.normal(k2, (wordsize,), jnp.float32),
        # nn.Conv3d(wordsize, wordsize, 1, bias=False): weight (wordsize, wordsize, 1, 1, 1)
        "wq": 0.1 * jax.random.normal(k3, (wordsize, wordsize, 1, 1, 1), jnp.float32),
        "wk": 0.1 * jax.random.normal(k4, (wordsize, wordsize, 1, 1, 1), jnp.float32),
        # nn.Conv3d(wordsize, ks**3, 1, bias=False): weight (ks**3, wordsize, 1, 1, 1)
        "wv": 0.1 * jax.random.normal(k5, (K, wordsize, 1, 1, 1), jnp.float32),
    }
    x = jax.random.normal(kx, (b, c, d, w, h), jnp.float32)

    fwd = jax.jit(local_conv_self_attention, static_argnums=2)
    y, attn = fwd(x, params, ks)
    jax.block_until_ready((y, attn))

    y_ref, attn_ref = reference_forward(x, params, ks)
    n = (d // ks) * (w // ks) * (h // ks)
    assert y.shape == (b, c, d, w, h) and attn.shape == (b, n, c, c)
    # Tolerances cover bf16 inputs / folded bf16 weights (kernel path) vs the f32
    # reference: attention rows match to ~1e-3, outputs to ~1e-2 at these scales.
    assert jnp.allclose(attn, attn_ref, atol=1e-2), "attention mismatch"
    assert jnp.allclose(y, y_ref, atol=3e-2), "output mismatch"

    print("KERNEL_OK")
</pallas_src>

<mosaic_0001>
module attributes {stable_mosaic.version = 11 : i64} {
  func.func @lcsa_kernel(%arg0: i32, %arg1: memref<4x64x64xbf16, #tpu.memory_space<vmem>>, %arg2: memref<64x128xbf16, #tpu.memory_space<vmem>>, %arg3: memref<1x128xbf16, #tpu.memory_space<vmem>>, %arg4: memref<64x256xf32, #tpu.memory_space<vmem>>, %arg5: memref<64x16xf32, #tpu.memory_space<vmem>>) attributes {dimension_semantics = [#tpu.dimension_semantics<parallel>], iteration_bounds = array<i64: 2>, scalar_prefetch = 0 : i64, scratch_operands = 0 : i64, tpu.core_type = #tpu.core_type<tc>, window_params = [{transform_indices = @transform_0, window_bounds = array<i64: 4, 64, 64>}, {pipeline_mode = #tpu.pipeline_mode<synchronous>, transform_indices = @transform_1, window_bounds = array<i64: 64, 128>}, {pipeline_mode = #tpu.pipeline_mode<synchronous>, transform_indices = @transform_2, window_bounds = array<i64: 1, 128>}, {transform_indices = @transform_3, window_bounds = array<i64: 64, 256>}, {transform_indices = @transform_4, window_bounds = array<i64: 64, 16>}]} {
    %c0 = arith.constant 0 : index
    %c0_0 = arith.constant 0 : index
    %c0_1 = arith.constant 0 : index
    %0 = vector.load %arg1[%c0, %c0_0, %c0_1] : memref<4x64x64xbf16, #tpu.memory_space<vmem>>, vector<4x64x64xbf16>
    %1 = vector.shape_cast %0 : vector<4x64x64xbf16> to vector<256x64xbf16>
    %c0_2 = arith.constant 0 : index
    %c0_3 = arith.constant 0 : index
    %2 = vector.load %arg2[%c0_2, %c0_3] : memref<64x128xbf16, #tpu.memory_space<vmem>>, vector<64x128xbf16>
    %cst = arith.constant dense<0.000000e+00> : vector<256x128xf32>
    %3 = tpu.matmul %1, %2, %cst {dimension_numbers = #tpu.dot_dimension_numbers<[1], [0], [0], [1], [0, 0, 1, 1], [], []>} : vector<256x64xbf16>, vector<64x128xbf16>, vector<256x128xf32> -> vector<256x128xf32>
    %c0_4 = arith.constant 0 : index
    %c0_5 = arith.constant 0 : index
    %4 = vector.load %arg3[%c0_4, %c0_5] : memref<1x128xbf16, #tpu.memory_space<vmem>>, vector<1x128xbf16>
    %5 = arith.extf %4 : vector<1x128xbf16> to vector<1x128xf32>
    %6 = vector.broadcast %5 : vector<1x128xf32> to vector<256x128xf32>
    %7 = arith.addf %3, %6 : vector<256x128xf32>
    %8 = vector.extract_strided_slice %7 {offsets = [0, 0], sizes = [64, 32], strides = [1, 1]} : vector<256x128xf32> to vector<64x32xf32>
    %9 = vector.extract_strided_slice %7 {offsets = [64, 0], sizes = [64, 32], strides = [1, 1]} : vector<256x128xf32> to vector<64x32xf32>
    %10 = vector.extract_strided_slice %7 {offsets = [128, 0], sizes = [64, 32], strides = [1, 1]} : vector<256x128xf32> to vector<64x32xf32>
    %11 = vector.extract_strided_slice %7 {offsets = [192, 0], sizes = [64, 32], strides = [1, 1]} : vector<256x128xf32> to vector<64x32xf32>
    %12 = vector.extract_strided_slice %7 {offsets = [0, 32], sizes = [64, 32], strides = [1, 1]} : vector<256x128xf32> to vector<64x32xf32>
    %13 = vector.extract_strided_slice %7 {offsets = [64, 32], sizes = [64, 32], strides = [1, 1]} : vector<256x128xf32> to vector<64x32xf32>
    %14 = vector.extract_strided_slice %7 {offsets = [128, 32], sizes = [64, 32], strides = [1, 1]} : vector<256x128xf32> to vector<64x32xf32>
    %15 = vector.extract_strided_slice %7 {offsets = [192, 32], sizes = [64, 32], strides = [1, 1]} : vector<256x128xf32> to vector<64x32xf32>
    %16 = vector.extract_strided_slice %7 {offsets = [0, 64], sizes = [64, 64], strides = [1, 1]} : vector<256x128xf32> to vector<64x64xf32>
    %17 = vector.extract_strided_slice %7 {offsets = [64, 64], sizes = [64, 64], strides = [1, 1]} : vector<256x128xf32> to vector<64x64xf32>
    %18 = vector.extract_strided_slice %7 {offsets = [128, 64], sizes = [64, 64], strides = [1, 1]} : vector<256x128xf32> to vector<64x64xf32>
    %19 = vector.extract_strided_slice %7 {offsets = [192, 64], sizes = [64, 64], strides = [1, 1]} : vector<256x128xf32> to vector<64x64xf32>
    %20 = arith.mulf %8, %12 : vector<64x32xf32>
    %cst_6 = arith.constant dense<0.000000e+00> : vector<64xf32>
    %21 = vector.multi_reduction <add>, %20, %cst_6 [1] : vector<64x32xf32> to vector<64xf32>
    %22 = vector.shape_cast %21 : vector<64xf32> to vector<64x1xf32>
    %23 = arith.mulf %8, %13 : vector<64x32xf32>
    %cst_7 = arith.constant dense<0.000000e+00> : vector<64xf32>
    %24 = vector.multi_reduction <add>, %23, %cst_7 [1] : vector<64x32xf32> to vector<64xf32>
    %25 = vector.shape_cast %24 : vector<64xf32> to vector<64x1xf32>
    %26 = arith.mulf %8, %14 : vector<64x32xf32>
    %cst_8 = arith.constant dense<0.000000e+00> : vector<64xf32>
    %27 = vector.multi_reduction <add>, %26, %cst_8 [1] : vector<64x32xf32> to vector<64xf32>
    %28 = vector.shape_cast %27 : vector<64xf32> to vector<64x1xf32>
    %29 = arith.mulf %8, %15 : vector<64x32xf32>
    %cst_9 = arith.constant dense<0.000000e+00> : vector<64xf32>
    %30 = vector.multi_reduction <add>, %29, %cst_9 [1] : vector<64x32xf32> to vector<64xf32>
    %31 = vector.shape_cast %30 : vector<64xf32> to vector<64x1xf32>
    %32 = tpu.concatenate %22, %25, %28, %31 in 1 : vector<64x1xf32>, vector<64x1xf32>, vector<64x1xf32>, vector<64x1xf32> -> vector<64x4xf32>
    %cst_10 = arith.constant dense<0xFF800000> : vector<64xf32>
    %33 = vector.multi_reduction <maximumf>, %32, %cst_10 [1] : vector<64x4xf32> to vector<64xf32>
    %34 = vector.shape_cast %33 : vector<64xf32> to vector<64x1xf32>
    %35 = vector.broadcast %34 : vector<64x1xf32> to vector<64x4xf32>
    %36 = arith.subf %32, %35 : vector<64x4xf32>
    %37 = math.exp %36 : vector<64x4xf32>
    %cst_11 = arith.constant dense<0.000000e+00> : vector<64xf32>
    %38 = vector.multi_reduction <add>, %37, %cst_11 [1] : vector<64x4xf32> to vector<64xf32>
    %39 = vector.shape_cast %38 : vector<64xf32> to vector<64x1xf32>
    %cst_12 = arith.constant 1.000000e+00 : f32
    %40 = vector.broadcast %cst_12 : f32 to vector<64x1xf32>
    %41 = arith.divf %40, %39 : vector<64x1xf32>
    %42 = vector.broadcast %41 : vector<64x1xf32> to vector<64x4xf32>
    %43 = arith.mulf %37, %42 : vector<64x4xf32>
    %44 = vector.extract_strided_slice %1 {offsets = [0, 0], sizes = [64, 64], strides = [1, 1]} : vector<256x64xbf16> to vector<64x64xbf16>
    %45 = arith.extf %44 : vector<64x64xbf16> to vector<64x64xf32>
    %46 = vector.extract_strided_slice %43 {offsets = [0, 0], sizes = [64, 1], strides = [1, 1]} : vector<64x4xf32> to vector<64x1xf32>
    %47 = vector.broadcast %46 : vector<64x1xf32> to vector<64x64xf32>
    %48 = arith.mulf %47, %16 : vector<64x64xf32>
    %49 = arith.addf %45, %48 : vector<64x64xf32>
    %50 = vector.extract_strided_slice %43 {offsets = [0, 1], sizes = [64, 1], strides = [1, 1]} : vector<64x4xf32> to vector<64x1xf32>
    %51 = vector.broadcast %50 : vector<64x1xf32> to vector<64x64xf32>
    %52 = arith.mulf %51, %17 : vector<64x64xf32>
    %53 = arith.addf %49, %52 : vector<64x64xf32>
    %54 = vector.extract_strided_slice %43 {offsets = [0, 2], sizes = [64, 1], strides = [1, 1]} : vector<64x4xf32> to vector<64x1xf32>
    %55 = vector.broadcast %54 : vector<64x1xf32> to vector<64x64xf32>
    %56 = arith.mulf %55, %18 : vector<64x64xf32>
    %57 = arith.addf %53, %56 : vector<64x64xf32>
    %58 = vector.extract_strided_slice %43 {offsets = [0, 3], sizes = [64, 1], strides = [1, 1]} : vector<64x4xf32> to vector<64x1xf32>
    %59 = vector.broadcast %58 : vector<64x1xf32> to vector<64x64xf32>
    %60 = arith.mulf %59, %19 : vector<64x64xf32>
    %61 = arith.addf %57, %60 : vector<64x64xf32>
    %62 = arith.mulf %9, %12 : vector<64x32xf32>
    %cst_13 = arith.constant dense<0.000000e+00> : vector<64xf32>
    %63 = vector.multi_reduction <add>, %62, %cst_13 [1] : vector<64x32xf32> to vector<64xf32>
    %64 = vector.shape_cast %63 : vector<64xf32> to vector<64x1xf32>
    %65 = arith.mulf %9, %13 : vector<64x32xf32>
    %cst_14 = arith.constant dense<0.000000e+00> : vector<64xf32>
    %66 = vector.multi_reduction <add>, %65, %cst_14 [1] : vector<64x32xf32> to vector<64xf32>
    %67 = vector.shape_cast %66 : vector<64xf32> to vector<64x1xf32>
    %68 = arith.mulf %9, %14 : vector<64x32xf32>
    %cst_15 = arith.constant dense<0.000000e+00> : vector<64xf32>
    %69 = vector.multi_reduction <add>, %68, %cst_15 [1] : vector<64x32xf32> to vector<64xf32>
    %70 = vector.shape_cast %69 : vector<64xf32> to vector<64x1xf32>
    %71 = arith.mulf %9, %15 : vector<64x32xf32>
    %cst_16 = arith.constant dense<0.000000e+00> : vector<64xf32>
    %72 = vector.multi_reduction <add>, %71, %cst_16 [1] : vector<64x32xf32> to vector<64xf32>
    %73 = vector.shape_cast %72 : vector<64xf32> to vector<64x1xf32>
    %74 = tpu.concatenate %64, %67, %70, %73 in 1 : vector<64x1xf32>, vector<64x1xf32>, vector<64x1xf32>, vector<64x1xf32> -> vector<64x4xf32>
    %cst_17 = arith.constant dense<0xFF800000> : vector<64xf32>
    %75 = vector.multi_reduction <maximumf>, %74, %cst_17 [1] : vector<64x4xf32> to vector<64xf32>
    %76 = vector.shape_cast %75 : vector<64xf32> to vector<64x1xf32>
    %77 = vector.broadcast %76 : vector<64x1xf32> to vector<64x4xf32>
    %78 = arith.subf %74, %77 : vector<64x4xf32>
    %79 = math.exp %78 : vector<64x4xf32>
    %cst_18 = arith.constant dense<0.000000e+00> : vector<64xf32>
    %80 = vector.multi_reduction <add>, %79, %cst_18 [1] : vector<64x4xf32> to vector<64xf32>
    %81 = vector.shape_cast %80 : vector<64xf32> to vector<64x1xf32>
    %cst_19 = arith.constant 1.000000e+00 : f32
    %82 = vector.broadcast %cst_19 : f32 to vector<64x1xf32>
    %83 = arith.divf %82, %81 : vector<64x1xf32>
    %84 = vector.broadcast %83 : vector<64x1xf32> to vector<64x4xf32>
    %85 = arith.mulf %79, %84 : vector<64x4xf32>
    %86 = vector.extract_strided_slice %1 {offsets = [64, 0], sizes = [64, 64], strides = [1, 1]} : vector<256x64xbf16> to vector<64x64xbf16>
    %87 = arith.extf %86 : vector<64x64xbf16> to vector<64x64xf32>
    %88 = vector.extract_strided_slice %85 {offsets = [0, 0], sizes = [64, 1], strides = [1, 1]} : vector<64x4xf32> to vector<64x1xf32>
    %89 = vector.broadcast %88 : vector<64x1xf32> to vector<64x64xf32>
    %90 = arith.mulf %89, %16 : vector<64x64xf32>
    %91 = arith.addf %87, %90 : vector<64x64xf32>
    %92 = vector.extract_strided_slice %85 {offsets = [0, 1], sizes = [64, 1], strides = [1, 1]} : vector<64x4xf32> to vector<64x1xf32>
    %93 = vector.broadcast %92 : vector<64x1xf32> to vector<64x64xf32>
    %94 = arith.mulf %93, %17 : vector<64x64xf32>
    %95 = arith.addf %91, %94 : vector<64x64xf32>
    %96 = vector.extract_strided_slice %85 {offsets = [0, 2], sizes = [64, 1], strides = [1, 1]} : vector<64x4xf32> to vector<64x1xf32>
    %97 = vector.broadcast %96 : vector<64x1xf32> to vector<64x64xf32>
    %98 = arith.mulf %97, %18 : vector<64x64xf32>
    %99 = arith.addf %95, %98 : vector<64x64xf32>
    %100 = vector.extract_strided_slice %85 {offsets = [0, 3], sizes = [64, 1], strides = [1, 1]} : vector<64x4xf32> to vector<64x1xf32>
    %101 = vector.broadcast %100 : vector<64x1xf32> to vector<64x64xf32>
    %102 = arith.mulf %101, %19 : vector<64x64xf32>
    %103 = arith.addf %99, %102 : vector<64x64xf32>
    %104 = arith.mulf %10, %12 : vector<64x32xf32>
    %cst_20 = arith.constant dense<0.000000e+00> : vector<64xf32>
    %105 = vector.multi_reduction <add>, %104, %cst_20 [1] : vector<64x32xf32> to vector<64xf32>
    %106 = vector.shape_cast %105 : vector<64xf32> to vector<64x1xf32>
    %107 = arith.mulf %10, %13 : vector<64x32xf32>
    %cst_21 = arith.constant dense<0.000000e+00> : vector<64xf32>
    %108 = vector.multi_reduction <add>, %107, %cst_21 [1] : vector<64x32xf32> to vector<64xf32>
    %109 = vector.shape_cast %108 : vector<64xf32> to vector<64x1xf32>
    %110 = arith.mulf %10, %14 : vector<64x32xf32>
    %cst_22 = arith.constant dense<0.000000e+00> : vector<64xf32>
    %111 = vector.multi_reduction <add>, %110, %cst_22 [1] : vector<64x32xf32> to vector<64xf32>
    %112 = vector.shape_cast %111 : vector<64xf32> to vector<64x1xf32>
    %113 = arith.mulf %10, %15 : vector<64x32xf32>
    %cst_23 = arith.constant dense<0.000000e+00> : vector<64xf32>
    %114 = vector.multi_reduction <add>, %113, %cst_23 [1] : vector<64x32xf32> to vector<64xf32>
    %115 = vector.shape_cast %114 : vector<64xf32> to vector<64x1xf32>
    %116 = tpu.concatenate %106, %109, %112, %115 in 1 : vector<64x1xf32>, vector<64x1xf32>, vector<64x1xf32>, vector<64x1xf32> -> vector<64x4xf32>
    %cst_24 = arith.constant dense<0xFF800000> : vector<64xf32>
    %117 = vector.multi_reduction <maximumf>, %116, %cst_24 [1] : vector<64x4xf32> to vector<64xf32>
    %118 = vector.shape_cast %117 : vector<64xf32> to vector<64x1xf32>
    %119 = vector.broadcast %118 : vector<64x1xf32> to vector<64x4xf32>
    %120 = arith.subf %116, %119 : vector<64x4xf32>
    %121 = math.exp %120 : vector<64x4xf32>
    %cst_25 = arith.constant dense<0.000000e+00> : vector<64xf32>
    %122 = vector.multi_reduction <add>, %121, %cst_25 [1] : vector<64x4xf32> to vector<64xf32>
    %123 = vector.shape_cast %122 : vector<64xf32> to vector<64x1xf32>
    %cst_26 = arith.constant 1.000000e+00 : f32
    %124 = vector.broadcast %cst_26 : f32 to vector<64x1xf32>
    %125 = arith.divf %124, %123 : vector<64x1xf32>
    %126 = vector.broadcast %125 : vector<64x1xf32> to vector<64x4xf32>
    %127 = arith.mulf %121, %126 : vector<64x4xf32>
    %128 = vector.extract_strided_slice %1 {offsets = [128, 0], sizes = [64, 64], strides = [1, 1]} : vector<256x64xbf16> to vector<64x64xbf16>
    %129 = arith.extf %128 : vector<64x64xbf16> to vector<64x64xf32>
    %130 = vector.extract_strided_slice %127 {offsets = [0, 0], sizes = [64, 1], strides = [1, 1]} : vector<64x4xf32> to vector<64x1xf32>
    %131 = vector.broadcast %130 : vector<64x1xf32> to vector<64x64xf32>
    %132 = arith.mulf %131, %16 : vector<64x64xf32>
    %133 = arith.addf %129, %132 : vector<64x64xf32>
    %134 = vector.extract_strided_slice %127 {offsets = [0, 1], sizes = [64, 1], strides = [1, 1]} : vector<64x4xf32> to vector<64x1xf32>
    %135 = vector.broadcast %134 : vector<64x1xf32> to vector<64x64xf32>
    %136 = arith.mulf %135, %17 : vector<64x64xf32>
    %137 = arith.addf %133, %136 : vector<64x64xf32>
    %138 = vector.extract_strided_slice %127 {offsets = [0, 2], sizes = [64, 1], strides = [1, 1]} : vector<64x4xf32> to vector<64x1xf32>
    %139 = vector.broadcast %138 : vector<64x1xf32> to vector<64x64xf32>
    %140 = arith.mulf %139, %18 : vector<64x64xf32>
    %141 = arith.addf %137, %140 : vector<64x64xf32>
    %142 = vector.extract_strided_slice %127 {offsets = [0, 3], sizes = [64, 1], strides = [1, 1]} : vector<64x4xf32> to vector<64x1xf32>
    %143 = vector.broadcast %142 : vector<64x1xf32> to vector<64x64xf32>
    %144 = arith.mulf %143, %19 : vector<64x64xf32>
    %145 = arith.addf %141, %144 : vector<64x64xf32>
    %146 = arith.mulf %11, %12 : vector<64x32xf32>
    %cst_27 = arith.constant dense<0.000000e+00> : vector<64xf32>
    %147 = vector.multi_reduction <add>, %146, %cst_27 [1] : vector<64x32xf32> to vector<64xf32>
    %148 = vector.shape_cast %147 : vector<64xf32> to vector<64x1xf32>
    %149 = arith.mulf %11, %13 : vector<64x32xf32>
    %cst_28 = arith.constant dense<0.000000e+00> : vector<64xf32>
    %150 = vector.multi_reduction <add>, %149, %cst_28 [1] : vector<64x32xf32> to vector<64xf32>
    %151 = vector.shape_cast %150 : vector<64xf32> to vector<64x1xf32>
    %152 = arith.mulf %11, %14 : vector<64x32xf32>
    %cst_29 = arith.constant dense<0.000000e+00> : vector<64xf32>
    %153 = vector.multi_reduction <add>, %152, %cst_29 [1] : vector<64x32xf32> to vector<64xf32>
    %154 = vector.shape_cast %153 : vector<64xf32> to vector<64x1xf32>
    %155 = arith.mulf %11, %15 : vector<64x32xf32>
    %cst_30 = arith.constant dense<0.000000e+00> : vector<64xf32>
    %156 = vector.multi_reduction <add>, %155, %cst_30 [1] : vector<64x32xf32> to vector<64xf32>
    %157 = vector.shape_cast %156 : vector<64xf32> to vector<64x1xf32>
    %158 = tpu.concatenate %148, %151, %154, %157 in 1 : vector<64x1xf32>, vector<64x1xf32>, vector<64x1xf32>, vector<64x1xf32> -> vector<64x4xf32>
    %cst_31 = arith.constant dense<0xFF800000> : vector<64xf32>
    %159 = vector.multi_reduction <maximumf>, %158, %cst_31 [1] : vector<64x4xf32> to vector<64xf32>
    %160 = vector.shape_cast %159 : vector<64xf32> to vector<64x1xf32>
    %161 = vector.broadcast %160 : vector<64x1xf32> to vector<64x4xf32>
    %162 = arith.subf %158, %161 : vector<64x4xf32>
    %163 = math.exp %162 : vector<64x4xf32>
    %cst_32 = arith.constant dense<0.000000e+00> : vector<64xf32>
    %164 = vector.multi_reduction <add>, %163, %cst_32 [1] : vector<64x4xf32> to vector<64xf32>
    %165 = vector.shape_cast %164 : vector<64xf32> to vector<64x1xf32>
    %cst_33 = arith.constant 1.000000e+00 : f32
    %166 = vector.broadcast %cst_33 : f32 to vector<64x1xf32>
    %167 = arith.divf %166, %165 : vector<64x1xf32>
    %168 = vector.broadcast %167 : vector<64x1xf32> to vector<64x4xf32>
    %169 = arith.mulf %163, %168 : vector<64x4xf32>
    %170 = vector.extract_strided_slice %1 {offsets = [192, 0], sizes = [64, 64], strides = [1, 1]} : vector<256x64xbf16> to vector<64x64xbf16>
    %171 = arith.extf %170 : vector<64x64xbf16> to vector<64x64xf32>
    %172 = vector.extract_strided_slice %169 {offsets = [0, 0], sizes = [64, 1], strides = [1, 1]} : vector<64x4xf32> to vector<64x1xf32>
    %173 = vector.broadcast %172 : vector<64x1xf32> to vector<64x64xf32>
    %174 = arith.mulf %173, %16 : vector<64x64xf32>
    %175 = arith.addf %171, %174 : vector<64x64xf32>
    %176 = vector.extract_strided_slice %169 {offsets = [0, 1], sizes = [64, 1], strides = [1, 1]} : vector<64x4xf32> to vector<64x1xf32>
    %177 = vector.broadcast %176 : vector<64x1xf32> to vector<64x64xf32>
    %178 = arith.mulf %177, %17 : vector<64x64xf32>
    %179 = arith.addf %175, %178 : vector<64x64xf32>
    %180 = vector.extract_strided_slice %169 {offsets = [0, 2], sizes = [64, 1], strides = [1, 1]} : vector<64x4xf32> to vector<64x1xf32>
    %181 = vector.broadcast %180 : vector<64x1xf32> to vector<64x64xf32>
    %182 = arith.mulf %181, %18 : vector<64x64xf32>
    %183 = arith.addf %179, %182 : vector<64x64xf32>
    %184 = vector.extract_strided_slice %169 {offsets = [0, 3], sizes = [64, 1], strides = [1, 1]} : vector<64x4xf32> to vector<64x1xf32>
    %185 = vector.broadcast %184 : vector<64x1xf32> to vector<64x64xf32>
    %186 = arith.mulf %185, %19 : vector<64x64xf32>
    %187 = arith.addf %183, %186 : vector<64x64xf32>
    %188 = tpu.concatenate %61, %103, %145, %187 in 1 : vector<64x64xf32>, vector<64x64xf32>, vector<64x64xf32>, vector<64x64xf32> -> vector<64x256xf32>
    %c0_34 = arith.constant 0 : index
    %c0_35 = arith.constant 0 : index
    %189 = vector.load %arg4[%c0_34, %c0_35] : memref<64x256xf32, #tpu.memory_space<vmem>>, vector<64x256xf32>
    tpu.vector_store %arg4[%c0_34, %c0_35], %188 {strides = array<i32>} : memref<64x256xf32, #tpu.memory_space<vmem>>, vector<64x256xf32>,
    %190 = tpu.concatenate %43, %85, %127, %169 in 1 : vector<64x4xf32>, vector<64x4xf32>, vector<64x4xf32>, vector<64x4xf32> -> vector<64x16xf32>
    %c0_36 = arith.constant 0 : index
    %c0_37 = arith.constant 0 : index
    %191 = vector.load %arg5[%c0_36, %c0_37] : memref<64x16xf32, #tpu.memory_space<vmem>>, vector<64x16xf32>
    tpu.vector_store %arg5[%c0_36, %c0_37], %190 {strides = array<i32>} : memref<64x16xf32, #tpu.memory_space<vmem>>, vector<64x16xf32>,
    return
  }
  func.func @transform_0(%arg0: i32) -> (i32, i32, i32) {
    %c0_i32 = arith.constant 0 : i32
    %c0_i32_0 = arith.constant 0 : i32
    %c0_i32_1 = arith.constant 0 : i32
    return %c0_i32, %arg0, %c0_i32_0 : i32, i32, i32
  }
  func.func @transform_1(%arg0: i32) -> (i32, i32) {
    %c0_i32 = arith.constant 0 : i32
    %c0_i32_0 = arith.constant 0 : i32
    %c0_i32_1 = arith.constant 0 : i32
    return %c0_i32, %c0_i32_0 : i32, i32
  }
  func.func @transform_2(%arg0: i32) -> (i32, i32) {
    %c0_i32 = arith.constant 0 : i32
    %c0_i32_0 = arith.constant 0 : i32
    %c0_i32_1 = arith.constant 0 : i32
    return %c0_i32, %c0_i32_0 : i32, i32
  }
  func.func @transform_3(%arg0: i32) -> (i32, i32) {
    %c0_i32 = arith.constant 0 : i32
    %c0_i32_0 = arith.constant 0 : i32
    return %arg0, %c0_i32 : i32, i32
  }
  func.func @transform_4(%arg0: i32) -> (i32, i32) {
    %c0_i32 = arith.constant 0 : i32
    %c0_i32_0 = arith.constant 0 : i32
    return %arg0, %c0_i32 : i32, i32
  }
}

</mosaic_0001>

<llo_original>
// kernel: local_conv_self_attention.1
$region0: #{local_conv_self_attention.1}
  #allocation0 [shape = 'u32[]', space=smem, size = 0x4, offset = 0x4, fixed_abs, tag = 'smem constant byte address 0x4 - core index']
  #allocation1 [shape = 'u32[72,128]{1,0:T(1,128)}', space=vmem, size = 0x9000, scoped, tag = 'internal scratch']
  %s0 = inlined_call_operand.vmem [shape: bf16[4,128,64], index: 0, kind: input, shape index: {}]
  %s1 = inlined_call_operand.vmem [shape: bf16[64,128], index: 1, kind: input, shape index: {}]
  %s2 = inlined_call_operand.vmem [shape: bf16[1,128], index: 2, kind: input, shape index: {}]
  %s3 = inlined_call_operand.vmem [shape: f32[128,256], index: 3, kind: output, shape index: {0}]
  %s4 = inlined_call_operand.vmem [shape: f32[128,16], index: 4, kind: output, shape index: {1}]
  %5 = xla_tuple %s3, %s4
  %s6 = sld [smem:[#allocation0]]
  $region94: #{local_conv_self_attention.1} parent=0
    _
  %s8 = ssub.s32 1, %s6
  %s9 = scalar_select 0, %s8, %s6
  $region1: #{local_conv_self_attention.1} parent=0
    #allocation2 [shape = 'u8[131072]{0}', space=vmem, size = 0x20000, scoped, tag = 'input window, operand 0']
    loop: start=0, step=1, limit=4
    $region2: #{local_conv_self_attention.1} parent=1 // loop_pre_header
      _
    $region3: #{local_conv_self_attention.1} parent=1 // loop_header
      %s11 = sphi 0, %s15
      %p12 = scmp.ge.s32.totalorder %s11, 4
      %s21 = sphi 0, %s23
      %s24 = sphi 0, %s21
      %s25 = sphi 0, %s24
      %s41 = sphi 0, %s25
      %s45 = sphi 0, %s45
      %s47 = sphi 0, %s45
      %s48 = sphi 0, %s47
      %s62 = sphi 0, %s48
      %s66 = sphi 0, %s66
      %s68 = sphi 0, %s66
      %s69 = sphi 0, %s68
      %s83 = sphi 0, %s69
      %s89 = sphi 0, %s91
      %s92 = sphi 0, %s89
      %s93 = sphi 0, %s92
      %s109 = sphi 0, %s93
      %s115 = sphi 0, %s117
      %s118 = sphi 0, %s115
      %s119 = sphi 0, %s118
      %s135 = sphi 0, %s119
    $region4: #{local_conv_self_attention.1} parent=1 // loop_header_branch
      %14 = sbr.rel (%p12) target = $region8
    $region5: #{local_conv_self_attention.1} parent=1 // loop_body
      %s16 = ssub.s32 %s11, 1
      %s17 = ssub.s32 %s11, 2
      %s18 = sadd.s32 %s11, 1
      %s19 = ssub.s32 %s11, %s18
      %p20 = scmp.eq.s32.totalorder %s19, 0
      %s22 = sadd.s32 %s21, 1
      %s23 = scalar_select %p20, %s21, %s22
      %p26 = pneg %p20
      %p27 = scmp.eq.s32.totalorder %s11, 1
      %p28 = por %p26, %p27
      %p29 = scmp.ne.s32.totalorder %s21, %s24
      %p30 = scmp.eq.s32.totalorder %s11, 0
      %p31 = por %p29, %p30
      %p32 = scmp.ne.s32.totalorder %s21, %s24
      %p33 = scmp.eq.s32.totalorder %s16, 1
      %p34 = por %p32, %p33
      %p35 = scmp.ne.s32.totalorder %s24, %s25
      %p36 = scmp.eq.s32.totalorder %s16, 0
      %p37 = por %p35, %p36
      %p38 = scmp.ne.s32.totalorder %s24, %s25
      %p39 = scmp.eq.s32.totalorder %s17, 1
      %p40 = por %p38, %p39
      %p42 = scmp.ne.s32.totalorder %s25, %s41
      %p43 = scmp.eq.s32.totalorder %s17, 0
      %p44 = por %p42, %p43
      %s46 = sadd.s32 %s45, 1
      %p49 = scmp.eq.s32.totalorder %s11, 1
      %p50 = scmp.ne.s32.totalorder %s45, %s47
      %p51 = scmp.eq.s32.totalorder %s11, 0
      %p52 = por %p50, %p51
      %p53 = scmp.ne.s32.totalorder %s45, %s47
      %p54 = scmp.eq.s32.totalorder %s16, 1
      %p55 = por %p53, %p54
      %p56 = scmp.ne.s32.totalorder %s47, %s48
      %p57 = scmp.eq.s32.totalorder %s16, 0
      %p58 = por %p56, %p57
      %p59 = scmp.ne.s32.totalorder %s47, %s48
      %p60 = scmp.eq.s32.totalorder %s17, 1
      %p61 = por %p59, %p60
      %p63 = scmp.ne.s32.totalorder %s48, %s62
      %p64 = scmp.eq.s32.totalorder %s17, 0
      %p65 = por %p63, %p64
      %s67 = sadd.s32 %s66, 1
      %p70 = scmp.eq.s32.totalorder %s11, 1
      %p71 = scmp.ne.s32.totalorder %s66, %s68
      %p72 = scmp.eq.s32.totalorder %s11, 0
      %p73 = por %p71, %p72
      %p74 = scmp.ne.s32.totalorder %s66, %s68
      %p75 = scmp.eq.s32.totalorder %s16, 1
      %p76 = por %p74, %p75
      %p77 = scmp.ne.s32.totalorder %s68, %s69
      %p78 = scmp.eq.s32.totalorder %s16, 0
      %p79 = por %p77, %p78
      %p80 = scmp.ne.s32.totalorder %s68, %s69
      %p81 = scmp.eq.s32.totalorder %s17, 1
      %p82 = por %p80, %p81
      %p84 = scmp.ne.s32.totalorder %s69, %s83
      %p85 = scmp.eq.s32.totalorder %s17, 0
      %p86 = por %p84, %p85
      %s87 = ssub.s32 %s11, %s18
      %p88 = scmp.eq.s32.totalorder %s87, 0
      %s90 = sadd.s32 %s89, 1
      %s91 = scalar_select %p88, %s89, %s90
      %p94 = pneg %p88
      %p95 = scmp.eq.s32.totalorder %s11, 1
      %p96 = por %p94, %p95
      %p97 = scmp.ne.s32.totalorder %s89, %s92
      %p98 = scmp.eq.s32.totalorder %s11, 0
      %p99 = por %p97, %p98
      %p100 = scmp.ne.s32.totalorder %s89, %s92
      %p101 = scmp.eq.s32.totalorder %s16, 1
      %p102 = por %p100, %p101
      %p103 = scmp.ne.s32.totalorder %s92, %s93
      %p104 = scmp.eq.s32.totalorder %s16, 0
      %p105 = por %p103, %p104
      %p106 = scmp.ne.s32.totalorder %s92, %s93
      %p107 = scmp.eq.s32.totalorder %s17, 1
      %p108 = por %p106, %p107
      %p110 = scmp.ne.s32.totalorder %s93, %s109
      %p111 = scmp.eq.s32.totalorder %s17, 0
      %p112 = por %p110, %p111
      %s113 = ssub.s32 %s11, %s18
      %p114 = scmp.eq.s32.totalorder %s113, 0
      %s116 = sadd.s32 %s115, 1
      %s117 = scalar_select %p114, %s115, %s116
      %p120 = pneg %p114
      %p121 = scmp.eq.s32.totalorder %s11, 1
      %p122 = por %p120, %p121
      %p123 = scmp.ne.s32.totalorder %s115, %s118
      %p124 = scmp.eq.s32.totalorder %s11, 0
      %p125 = por %p123, %p124
      %p126 = scmp.ne.s32.totalorder %s115, %s118
      %p127 = scmp.eq.s32.totalorder %s16, 1
      %p128 = por %p126, %p127
      %p129 = scmp.ne.s32.totalorder %s118, %s119
      %p130 = scmp.eq.s32.totalorder %s16, 0
      %p131 = por %p129, %p130
      %p132 = scmp.ne.s32.totalorder %s118, %s119
      %p133 = scmp.eq.s32.totalorder %s17, 1
      %p134 = por %p132, %p133
      %p136 = scmp.ne.s32.totalorder %s119, %s135
      %p137 = scmp.eq.s32.totalorder %s17, 0
      %p138 = por %p136, %p137
      %p139 = scmp.le.s32.totalorder 1, %s11
      %p140 = scmp.lt.s32.totalorder %s11, 3
      %p141 = pnand %p139, %p140
      %p142 = pneg %p141
      // Predicated region
      $region9: #{local_conv_self_attention.1} parent=5 // pred_check
        _
      $region10: #{local_conv_self_attention.1} parent=5 // pred_check_branch
        %144 = sbr.rel (%p141) target = $region12
      $region11: #{local_conv_self_attention.1} parent=5 // pred_region
        %s145 = ssub.s32 %s11, 1
        // Predicated region
        $region13: #{local_conv_self_attention.1} parent=11 // pred_check
          %p146 = pneg %p58
        $region14: #{local_conv_self_attention.1} parent=11 // pred_check_branch
          %148 = sbr.rel (%p146) target = $region16
        $region15: #{local_conv_self_attention.1} parent=11 // pred_region
          _
        $region16: #{local_conv_self_attention.1} parent=11 // pred_fallthru
          _
        // Predicated region
        $region17: #{local_conv_self_attention.1} parent=11 // pred_check
          %p149 = pneg %p79
        $region18: #{local_conv_self_attention.1} parent=11 // pred_check_branch
          %151 = sbr.rel (%p149) target = $region20
        $region19: #{local_conv_self_attention.1} parent=11 // pred_region
          _
        $region20: #{local_conv_self_attention.1} parent=11 // pred_fallthru
          _
      $region12: #{local_conv_self_attention.1} parent=5 // pred_fallthru
        _
      %p152 = scmp.lt.s32.totalorder %s11, 2
      // Predicated region
      $region21: #{local_conv_self_attention.1} parent=5 // pred_check
        %p153 = pneg %p152
      $region22: #{local_conv_self_attention.1} parent=5 // pred_check_branch
        %155 = sbr.rel (%p153) target = $region24
      $region23: #{local_conv_self_attention.1} parent=5 // pred_region
        // Predicated region
        $region25: #{local_conv_self_attention.1} parent=23 // pred_check
          %p156 = pneg %p31
        $region26: #{local_conv_self_attention.1} parent=23 // pred_check_branch
          %158 = sbr.rel (%p156) target = $region28
        $region27: #{local_conv_self_attention.1} parent=23 // pred_region
          %s159 = sand.u32 %s21, 1
          %s160 = sand.u32 %s21, 1
          %s161 = smul.addr %s160, 128
          %s162 = scalar_lea.vmem [#allocation2], %s161
          %s163 = smul.u32 8, %s11
          %s164 = smul.addr %s163, 4
          %s165 = scalar_lea.vmem %s0, %s164
          // Predicated region
          $region29: #{local_conv_self_attention.1} parent=27 // pred_check
            _
          $region30: #{local_conv_self_attention.1} parent=27 // pred_check_branch
            %167 = sbr.rel (0) target = $region32
          $region31: #{local_conv_self_attention.1} parent=27 // pred_region
            // Predicated region
            $region33: #{local_conv_self_attention.1} parent=31 // pred_check
              _
            $region34: #{local_conv_self_attention.1} parent=31 // pred_check_branch
              %169 = sbr.rel target = $region36
            $region35: #{local_conv_self_attention.1} parent=31 // pred_region
              // Predicated region
              $region48: #{local_conv_self_attention.1} parent=35 // pred_check
                _
              $region49: #{local_conv_self_attention.1} parent=35 // pred_check_branch
                %247 = sbr.rel (0) target = $region51
              $region50: #{local_conv_self_attention.1} parent=35 // pred_region
                loop: start=0, step=1, limit=1
                $region52: #{local_conv_self_attention.1} parent=50 // loop_pre_header
                  _
                $region53: #{local_conv_self_attention.1} parent=50 // loop_header
                  %s249 = sphi 0, %s253
                  %p250 = scmp.ge.s32.totalorder %s249, 1
                  %s254 = sphi %s165, %s165
                  %s255 = sphi %s162, %s162
                $region54: #{local_conv_self_attention.1} parent=50 // loop_header_branch
                  %252 = sbr.rel (%p250) target = $region58
                $region55: #{local_conv_self_attention.1} parent=50 // loop_body
                  _
                $region56: #{local_conv_self_attention.1} parent=50 // loop_footer
                  %s253 = sadd.s32 1, %s249
                $region57: #{local_conv_self_attention.1} parent=50 // loop_footer_branch
                  %248 = sbr.rel target = $region53
                $region58: #{local_conv_self_attention.1} parent=50 // loop_exit
                  _
                %s257 = ssub.s32 16, 1
                loop: start=0, step=1, limit=1
                $region59: #{local_conv_self_attention.1} parent=50 // loop_pre_header
                  _
                $region60: #{local_conv_self_attention.1} parent=50 // loop_header
                  %s259 = sphi 0, %s263
                  %p260 = scmp.ge.s32.totalorder %s259, 1
                  %s264 = sphi %s165, %s165
                  %s265 = sphi %s162, %s162
                $region61: #{local_conv_self_attention.1} parent=50 // loop_header_branch
                  %262 = sbr.rel (%p260) target = $region65
                $region62: #{local_conv_self_attention.1} parent=50 // loop_body
                  %v266 = vld [vmem:[%s264] sm:%s257]
                  %267 = vst [vmem:[%s265] sm:%s257] %v266
                  %v268 = vld [vmem:[%s264 + $0x4] sm:%s257]
                  %269 = vst [vmem:[%s265 + $0x4] sm:%s257] %v268
                  %v270 = vld [vmem:[%s264 + $0x8] sm:%s257]
                  %271 = vst [vmem:[%s265 + $0x8] sm:%s257] %v270
                  %v272 = vld [vmem:[%s264 + $0xc] sm:%s257]
                  %273 = vst [vmem:[%s265 + $0xc] sm:%s257] %v272
                  %v274 = vld [vmem:[%s264 + $0x10] sm:%s257]
                  %275 = vst [vmem:[%s265 + $0x10] sm:%s257] %v274
                  %v276 = vld [vmem:[%s264 + $0x14] sm:%s257]
                  %277 = vst [vmem:[%s265 + $0x14] sm:%s257] %v276
                  %v278 = vld [vmem:[%s264 + $0x18] sm:%s257]
                  %279 = vst [vmem:[%s265 + $0x18] sm:%s257] %v278
                  %v280 = vld [vmem:[%s264 + $0x1c] sm:%s257]
                  %281 = vst [vmem:[%s265 + $0x1c] sm:%s257] %v280
                  %v282 = vld [vmem:[%s264 + $0x40] sm:%s257]
                  %283 = vst [vmem:[%s265 + $0x20] sm:%s257] %v282
                  %v284 = vld [vmem:[%s264 + $0x44] sm:%s257]
                  %285 = vst [vmem:[%s265 + $0x24] sm:%s257] %v284
                  %v286 = vld [vmem:[%s264 + $0x48] sm:%s257]
                  %287 = vst [vmem:[%s265 + $0x28] sm:%s257] %v286
                  %v288 = vld [vmem:[%s264 + $0x4c] sm:%s257]
                  %289 = vst [vmem:[%s265 + $0x2c] sm:%s257] %v288
                  %v290 = vld [vmem:[%s264 + $0x50] sm:%s257]
                  %291 = vst [vmem:[%s265 + $0x30] sm:%s257] %v290
                  %v292 = vld [vmem:[%s264 + $0x54] sm:%s257]
                  %293 = vst [vmem:[%s265 + $0x34] sm:%s257] %v292
                  %v294 = vld [vmem:[%s264 + $0x58] sm:%s257]
                  %295 = vst [vmem:[%s265 + $0x38] sm:%s257] %v294
                  %v296 = vld [vmem:[%s264 + $0x5c] sm:%s257]
                  %297 = vst [vmem:[%s265 + $0x3c] sm:%s257] %v296
                  %v298 = vld [vmem:[%s264 + $0x80] sm:%s257]
                  %299 = vst [vmem:[%s265 + $0x40] sm:%s257] %v298
                  %v300 = vld [vmem:[%s264 + $0x84] sm:%s257]
                  %301 = vst [vmem:[%s265 + $0x44] sm:%s257] %v300
                  %v302 = vld [vmem:[%s264 + $0x88] sm:%s257]
                  %303 = vst [vmem:[%s265 + $0x48] sm:%s257] %v302
                  %v304 = vld [vmem:[%s264 + $0x8c] sm:%s257]
                  %305 = vst [vmem:[%s265 + $0x4c] sm:%s257] %v304
                  %v306 = vld [vmem:[%s264 + $0x90] sm:%s257]
                  %307 = vst [vmem:[%s265 + $0x50] sm:%s257] %v306
                  %v308 = vld [vmem:[%s264 + $0x94] sm:%s257]
                  %309 = vst [vmem:[%s265 + $0x54] sm:%s257] %v308
                  %v310 = vld [vmem:[%s264 + $0x98] sm:%s257]
                  %311 = vst [vmem:[%s265 + $0x58] sm:%s257] %v310
                  %v312 = vld [vmem:[%s264 + $0x9c] sm:%s257]
                  %313 = vst [vmem:[%s265 + $0x5c] sm:%s257] %v312
                  %v314 = vld [vmem:[%s264 + $0xc0] sm:%s257]
                  %315 = vst [vmem:[%s265 + $0x60] sm:%s257] %v314
                  %v316 = vld [vmem:[%s264 + $0xc4] sm:%s257]
                  %317 = vst [vmem:[%s265 + $0x64] sm:%s257] %v316
                  %v318 = vld [vmem:[%s264 + $0xc8] sm:%s257]
                  %319 = vst [vmem:[%s265 + $0x68] sm:%s257] %v318
                  %v320 = vld [vmem:[%s264 + $0xcc] sm:%s257]
                  %321 = vst [vmem:[%s265 + $0x6c] sm:%s257] %v320
                  %v322 = vld [vmem:[%s264 + $0xd0] sm:%s257]
                  %323 = vst [vmem:[%s265 + $0x70] sm:%s257] %v322
                  %v324 = vld [vmem:[%s264 + $0xd4] sm:%s257]
                  %325 = vst [vmem:[%s265 + $0x74] sm:%s257] %v324
                  %v326 = vld [vmem:[%s264 + $0xd8] sm:%s257]
                  %327 = vst [vmem:[%s265 + $0x78] sm:%s257] %v326
                  %v328 = vld [vmem:[%s264 + $0xdc] sm:%s257]
                  %329 = vst [vmem:[%s265 + $0x7c] sm:%s257] %v328
                $region63: #{local_conv_self_attention.1} parent=50 // loop_footer
                  %s263 = sadd.s32 1, %s259
                $region64: #{local_conv_self_attention.1} parent=50 // loop_footer_branch
                  %258 = sbr.rel target = $region60
                $region65: #{local_conv_self_attention.1} parent=50 // loop_exit
                  _
              $region51: #{local_conv_self_attention.1} parent=35 // pred_fallthru
                _
            $region36: #{local_conv_self_attention.1} parent=31 // pred_fallthru
              _
            // Predicated region
            $region37: #{local_conv_self_attention.1} parent=31 // pred_check
              _
            $region38: #{local_conv_self_attention.1} parent=31 // pred_check_branch
              %171 = sbr.rel (0) target = $region40
            $region39: #{local_conv_self_attention.1} parent=31 // pred_region
              %s173 = ssub.s32 16, 1
              loop: start=0, step=1, limit=1
              $region41: #{local_conv_self_attention.1} parent=39 // loop_pre_header
                _
              $region42: #{local_conv_self_attention.1} parent=39 // loop_header
                %s175 = sphi 0, %s179
                %p176 = scmp.ge.s32.totalorder %s175, 1
                %s180 = sphi %s165, %s165
                %s181 = sphi %s162, %s162
              $region43: #{local_conv_self_attention.1} parent=39 // loop_header_branch
                %178 = sbr.rel (%p176) target = $region47
              $region44: #{local_conv_self_attention.1} parent=39 // loop_body
                %v182 = vld [vmem:[%s180] sm:%s173]
                %183 = vst [vmem:[%s181] sm:%s173] %v182
                %v184 = vld [vmem:[%s180 + $0x4] sm:%s173]
                %185 = vst [vmem:[%s181 + $0x4] sm:%s173] %v184
                %v186 = vld [vmem:[%s180 + $0x8] sm:%s173]
                %187 = vst [vmem:[%s181 + $0x8] sm:%s173] %v186
                %v188 = vld [vmem:[%s180 + $0xc] sm:%s173]
                %189 = vst [vmem:[%s181 + $0xc] sm:%s173] %v188
                %v190 = vld [vmem:[%s180 + $0x10] sm:%s173]
                %191 = vst [vmem:[%s181 + $0x10] sm:%s173] %v190
                %v192 = vld [vmem:[%s180 + $0x14] sm:%s173]
                %193 = vst [vmem:[%s181 + $0x14] sm:%s173] %v192
                %v194 = vld [vmem:[%s180 + $0x18] sm:%s173]
                %195 = vst [vmem:[%s181 + $0x18] sm:%s173] %v194
                %v196 = vld [vmem:[%s180 + $0x1c] sm:%s173]
                %197 = vst [vmem:[%s181 + $0x1c] sm:%s173] %v196
                %v198 = vld [vmem:[%s180 + $0x40] sm:%s173]
                %199 = vst [vmem:[%s181 + $0x20] sm:%s173] %v198
                %v200 = vld [vmem:[%s180 + $0x44] sm:%s173]
                %201 = vst [vmem:[%s181 + $0x24] sm:%s173] %v200
                %v202 = vld [vmem:[%s180 + $0x48] sm:%s173]
                %203 = vst [vmem:[%s181 + $0x28] sm:%s173] %v202
                %v204 = vld [vmem:[%s180 + $0x4c] sm:%s173]
                %205 = vst [vmem:[%s181 + $0x2c] sm:%s173] %v204
                %v206 = vld [vmem:[%s180 + $0x50] sm:%s173]
                %207 = vst [vmem:[%s181 + $0x30] sm:%s173] %v206
                %v208 = vld [vmem:[%s180 + $0x54] sm:%s173]
                %209 = vst [vmem:[%s181 + $0x34] sm:%s173] %v208
                %v210 = vld [vmem:[%s180 + $0x58] sm:%s173]
                %211 = vst [vmem:[%s181 + $0x38] sm:%s173] %v210
                %v212 = vld [vmem:[%s180 + $0x5c] sm:%s173]
                %213 = vst [vmem:[%s181 + $0x3c] sm:%s173] %v212
                %v214 = vld [vmem:[%s180 + $0x80] sm:%s173]
                %215 = vst [vmem:[%s181 + $0x40] sm:%s173] %v214
                %v216 = vld [vmem:[%s180 + $0x84] sm:%s173]
                %217 = vst [vmem:[%s181 + $0x44] sm:%s173] %v216
                %v218 = vld [vmem:[%s180 + $0x88] sm:%s173]
                %219 = vst [vmem:[%s181 + $0x48] sm:%s173] %v218
                %v220 = vld [vmem:[%s180 + $0x8c] sm:%s173]
                %221 = vst [vmem:[%s181 + $0x4c] sm:%s173] %v220
                %v222 = vld [vmem:[%s180 + $0x90] sm:%s173]
                %223 = vst [vmem:[%s181 + $0x50] sm:%s173] %v222
                %v224 = vld [vmem:[%s180 + $0x94] sm:%s173]
                %225 = vst [vmem:[%s181 + $0x54] sm:%s173] %v224
                %v226 = vld [vmem:[%s180 + $0x98] sm:%s173]
                %227 = vst [vmem:[%s181 + $0x58] sm:%s173] %v226
                %v228 = vld [vmem:[%s180 + $0x9c] sm:%s173]
                %229 = vst [vmem:[%s181 + $0x5c] sm:%s173] %v228
                %v230 = vld [vmem:[%s180 + $0xc0] sm:%s173]
                %231 = vst [vmem:[%s181 + $0x60] sm:%s173] %v230
                %v232 = vld [vmem:[%s180 + $0xc4] sm:%s173]
                %233 = vst [vmem:[%s181 + $0x64] sm:%s173] %v232
                %v234 = vld [vmem:[%s180 + $0xc8] sm:%s173]
                %235 = vst [vmem:[%s181 + $0x68] sm:%s173] %v234
                %v236 = vld [vmem:[%s180 + $0xcc] sm:%s173]
                %237 = vst [vmem:[%s181 + $0x6c] sm:%s173] %v236
                %v238 = vld [vmem:[%s180 + $0xd0] sm:%s173]
                %239 = vst [vmem:[%s181 + $0x70] sm:%s173] %v238
                %v240 = vld [vmem:[%s180 + $0xd4] sm:%s173]
                %241 = vst [vmem:[%s181 + $0x74] sm:%s173] %v240
                %v242 = vld [vmem:[%s180 + $0xd8] sm:%s173]
                %243 = vst [vmem:[%s181 + $0x78] sm:%s173] %v242
                %v244 = vld [vmem:[%s180 + $0xdc] sm:%s173]
                %245 = vst [vmem:[%s181 + $0x7c] sm:%s173] %v244
              $region45: #{local_conv_self_attention.1} parent=39 // loop_footer
                %s179 = sadd.s32 1, %s175
              $region46: #{local_conv_self_attention.1} parent=39 // loop_footer_branch
                %174 = sbr.rel target = $region42
              $region47: #{local_conv_self_attention.1} parent=39 // loop_exit
                _
            $region40: #{local_conv_self_attention.1} parent=31 // pred_fallthru
              _
          $region32: #{local_conv_self_attention.1} parent=27 // pred_fallthru
            _
          %330 = vnop
        $region28: #{local_conv_self_attention.1} parent=23 // pred_fallthru
          _
      $region24: #{local_conv_self_attention.1} parent=5 // pred_fallthru
        _
      %p331 = scmp.le.s32.totalorder 1, %s11
      %p332 = scmp.lt.s32.totalorder %s11, 3
      %p333 = pnand %p331, %p332
      %p334 = pneg %p333
      // Predicated region
      $region66: #{local_conv_self_attention.1} parent=5 // pred_check
        _
      $region67: #{local_conv_self_attention.1} parent=5 // pred_check_branch
        %336 = sbr.rel (%p333) target = $region69
      $region68: #{local_conv_self_attention.1} parent=5 // pred_region
        %s337 = ssub.s32 %s11, 1
        %s338 = sand.u32 %s24, 1
        %s339 = sand.u32 %s24, 1
        %s340 = smul.addr %s339, 128
        %s341 = scalar_lea.vmem [#allocation2], %s340
        // Predicated region
        $region70: #{local_conv_self_attention.1} parent=68 // pred_check
          %p342 = pneg %p37
        $region71: #{local_conv_self_attention.1} parent=68 // pred_check_branch
          %344 = sbr.rel (%p342) target = $region73
        $region72: #{local_conv_self_attention.1} parent=68 // pred_region
          _
        $region73: #{local_conv_self_attention.1} parent=68 // pred_fallthru
          _
        %s345 = sand.u32 %s24, 1
        %s346 = sand.u32 %s24, 1
        %s347 = smul.addr %s346, 128
        %s348 = scalar_lea.vmem [#allocation2], %s347
        %p349 = pneg %p37
        %p350 = pneg %p34
        %p351 = pneg %p58
        %p352 = pneg %p55
        %p353 = pneg %p79
        %p354 = pneg %p76
        %p355 = pneg %p105
        %p356 = pneg %p102
        %s357 = smul.u32 8, %s16
        %p358 = scmp.lt.s32.totalorder %s357, 15
        %s359 = scalar_select %p358, %s357, 15
        %s360 = smul.addr %s359, 2
        %s361 = smul.addr %s360, 8
        %s362 = scalar_lea.vmem %s3, %s361
        %p363 = pneg %p131
        %p364 = pneg %p128
        %s365 = smul.u32 8, %s16
        %p366 = scmp.lt.s32.totalorder %s365, 15
        %s367 = scalar_select %p366, %s365, 15
        %s368 = smul.addr %s367, 8
        %s369 = scalar_lea.vmem %s4, %s368
        %s370 = smul.u32 8, %s16
        %s371 = smul.u32 8, %s16
        %p372 = scmp.lt.s32.totalorder %s371, 15
        %s373 = scalar_select %p372, %s371, 15
        %s374 = smul.addr %s373, 2
        %s375 = smul.addr %s374, 8
        %s376 = scalar_lea.vmem %s3, %s375
        %s377 = smul.u32 8, %s16
        %s378 = smul.u32 8, %s16
        %p379 = scmp.lt.s32.totalorder %s378, 15
        %s380 = scalar_select %p379, %s378, 15
        %s381 = smul.addr %s380, 8
        %s382 = scalar_lea.vmem %s4, %s381
        %s383 = smul.u32 8, %s16
        %v385 = vld [vmem:[%s341] sm:$0xf]
        %v386 = vld [vmem:[%s341 + $0x4] sm:$0xf]
        %v387 = vld [vmem:[%s341 + $0x8] sm:$0xf]
        %v388 = vld [vmem:[%s341 + $0xc] sm:$0xf]
        %v389 = vld [vmem:[%s341 + $0x10] sm:$0xf]
        %v390 = vld [vmem:[%s341 + $0x14] sm:$0xf]
        %v391 = vld [vmem:[%s341 + $0x18] sm:$0xf]
        %v392 = vld [vmem:[%s341 + $0x1c] sm:$0xf]
        %v393 = vld [vmem:[%s341 + $0x20] sm:$0xf]
        %v394 = vld [vmem:[%s341 + $0x24] sm:$0xf]
        %v395 = vld [vmem:[%s341 + $0x28] sm:$0xf]
        %v396 = vld [vmem:[%s341 + $0x2c] sm:$0xf]
        %v397 = vld [vmem:[%s341 + $0x30] sm:$0xf]
        %v398 = vld [vmem:[%s341 + $0x34] sm:$0xf]
        %v399 = vld [vmem:[%s341 + $0x38] sm:$0xf]
        %v400 = vld [vmem:[%s341 + $0x3c] sm:$0xf]
        %v401 = vld [vmem:[%s341 + $0x40] sm:$0xf]
        %v402 = vld [vmem:[%s341 + $0x44] sm:$0xf]
        %v403 = vld [vmem:[%s341 + $0x48] sm:$0xf]
        %v404 = vld [vmem:[%s341 + $0x4c] sm:$0xf]
        %v405 = vld [vmem:[%s341 + $0x50] sm:$0xf]
        %v406 = vld [vmem:[%s341 + $0x54] sm:$0xf]
        %v407 = vld [vmem:[%s341 + $0x58] sm:$0xf]
        %v408 = vld [vmem:[%s341 + $0x5c] sm:$0xf]
        %v409 = vld [vmem:[%s341 + $0x60] sm:$0xf]
        %v410 = vld [vmem:[%s341 + $0x64] sm:$0xf]
        %v411 = vld [vmem:[%s341 + $0x68] sm:$0xf]
        %v412 = vld [vmem:[%s341 + $0x6c] sm:$0xf]
        %v413 = vld [vmem:[%s341 + $0x70] sm:$0xf]
        %v414 = vld [vmem:[%s341 + $0x74] sm:$0xf]
        %v415 = vld [vmem:[%s341 + $0x78] sm:$0xf]
        %v416 = vld [vmem:[%s341 + $0x7c] sm:$0xf]
        %v417 = vld [vmem:[%s1] sm:$0xf]
        %v418 = vld [vmem:[%s1 + $0x4] sm:$0xf]
        %v419 = vld [vmem:[%s1 + $0x8] sm:$0xf]
        %v420 = vld [vmem:[%s1 + $0xc] sm:$0xf]
        %v421 = vld [vmem:[%s1 + $0x10] sm:$0xf]
        %v422 = vld [vmem:[%s1 + $0x14] sm:$0xf]
        %v423 = vld [vmem:[%s1 + $0x18] sm:$0xf]
        %v424 = vld [vmem:[%s1 + $0x1c] sm:$0xf]
        %v425 = vld [vmem:[%s2] sm:$0x1]
        %v426 = vunpack.c.l.bf16 %v425
        %v427 = vperm.slane %v426, 0
        %v460 = vunpack.c.l.b16 %v385
        %v461 = vunpack.c.l.b16 %v386
        %v462 = vunpack.c.l.b16 %v387
        %v463 = vunpack.c.l.b16 %v388
        %v464 = vunpack.c.l.b16 %v389
        %v465 = vunpack.c.l.b16 %v390
        %v466 = vunpack.c.l.b16 %v391
        %v467 = vunpack.c.l.b16 %v392
        %v468 = vunpack.c.l.b16 %v393
        %v469 = vunpack.c.l.b16 %v394
        %v470 = vunpack.c.l.b16 %v395
        %v471 = vunpack.c.l.b16 %v396
        %v472 = vunpack.c.l.b16 %v397
        %v473 = vunpack.c.l.b16 %v398
        %v474 = vunpack.c.l.b16 %v399
        %v475 = vunpack.c.l.b16 %v400
        %v476 = vunpack.c.l.b16 %v401
        %v477 = vunpack.c.l.b16 %v402
        %v478 = vunpack.c.l.b16 %v403
        %v479 = vunpack.c.l.b16 %v404
        %v480 = vunpack.c.l.b16 %v405
        %v481 = vunpack.c.l.b16 %v406
        %v482 = vunpack.c.l.b16 %v407
        %v483 = vunpack.c.l.b16 %v408
        %v484 = vunpack.c.l.b16 %v409
        %v485 = vunpack.c.l.b16 %v410
        %v486 = vunpack.c.l.b16 %v411
        %v487 = vunpack.c.l.b16 %v412
        %v488 = vunpack.c.l.b16 %v413
        %v489 = vunpack.c.l.b16 %v414
        %v490 = vunpack.c.l.b16 %v415
        %v491 = vunpack.c.l.b16 %v416
        %v492 = vpack.c.b16 %v461, %v460
        %v493 = vpack.c.b16 %v463, %v462
        %v494 = vpack.c.b16 %v465, %v464
        %v495 = vpack.c.b16 %v467, %v466
        %v496 = vpack.c.b16 %v469, %v468
        %v497 = vpack.c.b16 %v471, %v470
        %v498 = vpack.c.b16 %v473, %v472
        %v499 = vpack.c.b16 %v475, %v474
        %v500 = vpack.c.b16 %v477, %v476
        %v501 = vpack.c.b16 %v479, %v478
        %v502 = vpack.c.b16 %v481, %v480
        %v503 = vpack.c.b16 %v483, %v482
        %v504 = vpack.c.b16 %v485, %v484
        %v505 = vpack.c.b16 %v487, %v486
        %v506 = vpack.c.b16 %v489, %v488
        %v507 = vpack.c.b16 %v491, %v490
        %v516 = vunpack.c.l.b16 %v417
        %v517 = vunpack.c.l.b16 %v418
        %v518 = vunpack.c.l.b16 %v419
        %v519 = vunpack.c.l.b16 %v420
        %v520 = vunpack.c.l.b16 %v421
        %v521 = vunpack.c.l.b16 %v422
        %v522 = vunpack.c.l.b16 %v423
        %v523 = vunpack.c.l.b16 %v424
        %v524 = vpack.c.b16 %v517, %v516
        %v525 = vpack.c.b16 %v519, %v518
        %v526 = vpack.c.b16 %v521, %v520
        %v527 = vpack.c.b16 %v523, %v522
        %vm532 = vcmask 523264
        %v534 = vsel %vm532, %v492, 0
        %v537 = vsel %vm532, %v493, 0
        %v540 = vsel %vm532, %v494, 0
        %v543 = vsel %vm532, %v495, 0
        %v546 = vsel %vm532, %v496, 0
        %v549 = vsel %vm532, %v497, 0
        %v552 = vsel %vm532, %v498, 0
        %v555 = vsel %vm532, %v499, 0
        %v558 = vsel %vm532, %v500, 0
        %v561 = vsel %vm532, %v501, 0
        %v564 = vsel %vm532, %v502, 0
        %v567 = vsel %vm532, %v503, 0
        %v570 = vsel %vm532, %v504, 0
        %v573 = vsel %vm532, %v505, 0
        %v576 = vsel %vm532, %v506, 0
        %v579 = vsel %vm532, %v507, 0
        %581 = vmatpush.bf16.msra.mxu0 0
        %582 = vmatpush.bf16.msra.mxu0 0
        %583 = vmatpush.bf16.msra.mxu0 0
        %584 = vmatpush.bf16.msra.mxu0 0
        %585 = vmatpush.bf16.msra.mxu0 %v527
        %586 = vmatpush.bf16.msra.mxu0 %v526
        %587 = vmatpush.bf16.msra.mxu0 %v525
        %588 = vmatpush.bf16.msra.mxu0 %v524
        %589 = vmatmul.bf16.gmra.mxu0 %v534
        %v590 = vpop.f32.mrf.mxu0
        %v591 = vadd.f32 %v427, %v590
        %v592 = vpop.f32.mrf.mxu0
        %v593 = vadd.f32 %v427, %v592
        %594 = vmatmul.bf16.gmra.mxu0 %v537
        %v595 = vpop.f32.mrf.mxu0
        %v596 = vadd.f32 %v427, %v595
        %v597 = vpop.f32.mrf.mxu0
        %v598 = vadd.f32 %v427, %v597
        %599 = vmatmul.bf16.gmra.mxu0 %v540
        %v600 = vpop.f32.mrf.mxu0
        %v601 = vadd.f32 %v427, %v600
        %v602 = vpop.f32.mrf.mxu0
        %v603 = vadd.f32 %v427, %v602
        %604 = vmatmul.bf16.gmra.mxu0 %v543
        %v605 = vpop.f32.mrf.mxu0
        %v606 = vadd.f32 %v427, %v605
        %v607 = vpop.f32.mrf.mxu0
        %v608 = vadd.f32 %v427, %v607
        %609 = vmatmul.bf16.gmra.mxu0 %v546
        %v610 = vpop.f32.mrf.mxu0
        %v611 = vadd.f32 %v427, %v610
        %v612 = vpop.f32.mrf.mxu0
        %v613 = vadd.f32 %v427, %v612
        %614 = vmatmul.bf16.gmra.mxu0 %v549
        %v615 = vpop.f32.mrf.mxu0
        %v616 = vadd.f32 %v427, %v615
        %v617 = vpop.f32.mrf.mxu0
        %v618 = vadd.f32 %v427, %v617
        %619 = vmatmul.bf16.gmra.mxu0 %v552
        %v620 = vpop.f32.mrf.mxu0
        %v621 = vadd.f32 %v427, %v620
        %v622 = vpop.f32.mrf.mxu0
        %v623 = vadd.f32 %v427, %v622
        %624 = vmatmul.bf16.gmra.mxu0 %v555
        %v625 = vpop.f32.mrf.mxu0
        %v626 = vadd.f32 %v427, %v625
        %v627 = vpop.f32.mrf.mxu0
        %v628 = vadd.f32 %v427, %v627
        %629 = vmatmul.bf16.gmra.mxu0 %v558
        %v630 = vpop.f32.mrf.mxu0
        %v631 = vadd.f32 %v427, %v630
        %v632 = vpop.f32.mrf.mxu0
        %v633 = vadd.f32 %v427, %v632
        %634 = vmatmul.bf16.gmra.mxu0 %v561
        %v635 = vpop.f32.mrf.mxu0
        %v636 = vadd.f32 %v427, %v635
        %v637 = vpop.f32.mrf.mxu0
        %v638 = vadd.f32 %v427, %v637
        %639 = vmatmul.bf16.gmra.mxu0 %v564
        %v640 = vpop.f32.mrf.mxu0
        %v641 = vadd.f32 %v427, %v640
        %v642 = vpop.f32.mrf.mxu0
        %v643 = vadd.f32 %v427, %v642
        %644 = vmatmul.bf16.gmra.mxu0 %v567
        %v645 = vpop.f32.mrf.mxu0
        %v646 = vadd.f32 %v427, %v645
        %v647 = vpop.f32.mrf.mxu0
        %v648 = vadd.f32 %v427, %v647
        %649 = vmatmul.bf16.gmra.mxu0 %v570
        %v650 = vpop.f32.mrf.mxu0
        %v651 = vadd.f32 %v427, %v650
        %v652 = vpop.f32.mrf.mxu0
        %v653 = vadd.f32 %v427, %v652
        %654 = vmatmul.bf16.gmra.mxu0 %v573
        %v655 = vpop.f32.mrf.mxu0
        %v656 = vadd.f32 %v427, %v655
        %v657 = vpop.f32.mrf.mxu0
        %v658 = vadd.f32 %v427, %v657
        %659 = vmatmul.bf16.gmra.mxu0 %v576
        %v660 = vpop.f32.mrf.mxu0
        %v661 = vadd.f32 %v427, %v660
        %v662 = vpop.f32.mrf.mxu0
        %v663 = vadd.f32 %v427, %v662
        %664 = vmatmul.bf16.gmra.mxu0 %v579
        %v665 = vpop.f32.mrf.mxu0
        %v666 = vadd.f32 %v427, %v665
        %v667 = vpop.f32.mrf.mxu0
        %v668 = vadd.f32 %v427, %v667
        %669 = vdwg.mxu0
        %678 = vrot.lane.b32.xlu0 %v591, 96
        %v679 = vpop.permute.xlu0 %678
        %680 = vrot.lane.b32.xlu0 %v593, 96
        %v681 = vpop.permute.xlu0 %680
        %682 = vrot.lane.b32.xlu0 %v596, 96
        %v683 = vpop.permute.xlu0 %682
        %684 = vrot.lane.b32.xlu0 %v598, 96
        %v685 = vpop.permute.xlu0 %684
        %686 = vrot.lane.b32.xlu0 %v601, 96
        %v687 = vpop.permute.xlu0 %686
        %688 = vrot.lane.b32.xlu0 %v603, 96
        %v689 = vpop.permute.xlu0 %688
        %690 = vrot.lane.b32.xlu0 %v606, 96
        %v691 = vpop.permute.xlu0 %690
        %692 = vrot.lane.b32.xlu0 %v608, 96
        %v693 = vpop.permute.xlu0 %692
        %v702 = vmul.f32 %v591, %v679
        %v703 = vmul.f32 %v593, %v681
        %v704 = vmul.f32 %v596, %v683
        %v705 = vmul.f32 %v598, %v685
        %v706 = vmul.f32 %v601, %v687
        %v707 = vmul.f32 %v603, %v689
        %v708 = vmul.f32 %v606, %v691
        %v709 = vmul.f32 %v608, %v693
        %vm710 = vcmask 261120
        %v711 = vsel %vm710, %v702, 0.0
        %712 = vadd.xlane.f32.xlu0 %v711
        %v713 = vpop.xlane.xlu0 %712
        %v714 = vsel %vm710, %v703, 0.0
        %715 = vadd.xlane.f32.xlu0 %v714
        %v716 = vpop.xlane.xlu0 %715
        %v717 = vsel %vm710, %v704, 0.0
        %718 = vadd.xlane.f32.xlu0 %v717
        %v719 = vpop.xlane.xlu0 %718
        %v720 = vsel %vm710, %v705, 0.0
        %721 = vadd.xlane.f32.xlu0 %v720
        %v722 = vpop.xlane.xlu0 %721
        %v723 = vsel %vm710, %v706, 0.0
        %724 = vadd.xlane.f32.xlu0 %v723
        %v725 = vpop.xlane.xlu0 %724
        %v726 = vsel %vm710, %v707, 0.0
        %727 = vadd.xlane.f32.xlu0 %v726
        %v728 = vpop.xlane.xlu0 %727
        %v729 = vsel %vm710, %v708, 0.0
        %730 = vadd.xlane.f32.xlu0 %v729
        %v731 = vpop.xlane.xlu0 %730
        %v732 = vsel %vm710, %v709, 0.0
        %733 = vadd.xlane.f32.xlu0 %v732
        %v734 = vpop.xlane.xlu0 %733
        %743 = vrot.lane.b32.xlu0 %v611, 96
        %v744 = vpop.permute.xlu0 %743
        %745 = vrot.lane.b32.xlu0 %v613, 96
        %v746 = vpop.permute.xlu0 %745
        %747 = vrot.lane.b32.xlu0 %v616, 96
        %v748 = vpop.permute.xlu0 %747
        %749 = vrot.lane.b32.xlu0 %v618, 96
        %v750 = vpop.permute.xlu0 %749
        %751 = vrot.lane.b32.xlu0 %v621, 96
        %v752 = vpop.permute.xlu0 %751
        %753 = vrot.lane.b32.xlu0 %v623, 96
        %v754 = vpop.permute.xlu0 %753
        %755 = vrot.lane.b32.xlu0 %v626, 96
        %v756 = vpop.permute.xlu0 %755
        %757 = vrot.lane.b32.xlu0 %v628, 96
        %v758 = vpop.permute.xlu0 %757
        %v767 = vmul.f32 %v591, %v744
        %v768 = vmul.f32 %v593, %v746
        %v769 = vmul.f32 %v596, %v748
        %v770 = vmul.f32 %v598, %v750
        %v771 = vmul.f32 %v601, %v752
        %v772 = vmul.f32 %v603, %v754
        %v773 = vmul.f32 %v606, %v756
        %v774 = vmul.f32 %v608, %v758
        %v775 = vsel %vm710, %v767, 0.0
        %776 = vadd.xlane.f32.xlu0 %v775
        %v777 = vpop.xlane.xlu0 %776
        %v778 = vsel %vm710, %v768, 0.0
        %779 = vadd.xlane.f32.xlu0 %v778
        %v780 = vpop.xlane.xlu0 %779
        %v781 = vsel %vm710, %v769, 0.0
        %782 = vadd.xlane.f32.xlu0 %v781
        %v783 = vpop.xlane.xlu0 %782
        %v784 = vsel %vm710, %v770, 0.0
        %785 = vadd.xlane.f32.xlu0 %v784
        %v786 = vpop.xlane.xlu0 %785
        %v787 = vsel %vm710, %v771, 0.0
        %788 = vadd.xlane.f32.xlu0 %v787
        %v789 = vpop.xlane.xlu0 %788
        %v790 = vsel %vm710, %v772, 0.0
        %791 = vadd.xlane.f32.xlu0 %v790
        %v792 = vpop.xlane.xlu0 %791
        %v793 = vsel %vm710, %v773, 0.0
        %794 = vadd.xlane.f32.xlu0 %v793
        %v795 = vpop.xlane.xlu0 %794
        %v796 = vsel %vm710, %v774, 0.0
        %797 = vadd.xlane.f32.xlu0 %v796
        %v798 = vpop.xlane.xlu0 %797
        %807 = vrot.lane.b32.xlu0 %v631, 96
        %v808 = vpop.permute.xlu0 %807
        %809 = vrot.lane.b32.xlu0 %v633, 96
        %v810 = vpop.permute.xlu0 %809
        %811 = vrot.lane.b32.xlu0 %v636, 96
        %v812 = vpop.permute.xlu0 %811
        %813 = vrot.lane.b32.xlu0 %v638, 96
        %v814 = vpop.permute.xlu0 %813
        %815 = vrot.lane.b32.xlu0 %v641, 96
        %v816 = vpop.permute.xlu0 %815
        %817 = vrot.lane.b32.xlu0 %v643, 96
        %v818 = vpop.permute.xlu0 %817
        %819 = vrot.lane.b32.xlu0 %v646, 96
        %v820 = vpop.permute.xlu0 %819
        %821 = vrot.lane.b32.xlu0 %v648, 96
        %v822 = vpop.permute.xlu0 %821
        %v831 = vmul.f32 %v591, %v808
        %v832 = vmul.f32 %v593, %v810
        %v833 = vmul.f32 %v596, %v812
        %v834 = vmul.f32 %v598, %v814
        %v835 = vmul.f32 %v601, %v816
        %v836 = vmul.f32 %v603, %v818
        %v837 = vmul.f32 %v606, %v820
        %v838 = vmul.f32 %v608, %v822
        %v839 = vsel %vm710, %v831, 0.0
        %840 = vadd.xlane.f32.xlu0 %v839
        %v841 = vpop.xlane.xlu0 %840
        %v842 = vsel %vm710, %v832, 0.0
        %843 = vadd.xlane.f32.xlu0 %v842
        %v844 = vpop.xlane.xlu0 %843
        %v845 = vsel %vm710, %v833, 0.0
        %846 = vadd.xlane.f32.xlu0 %v845
        %v847 = vpop.xlane.xlu0 %846
        %v848 = vsel %vm710, %v834, 0.0
        %849 = vadd.xlane.f32.xlu0 %v848
        %v850 = vpop.xlane.xlu0 %849
        %v851 = vsel %vm710, %v835, 0.0
        %852 = vadd.xlane.f32.xlu0 %v851
        %v853 = vpop.xlane.xlu0 %852
        %v854 = vsel %vm710, %v836, 0.0
        %855 = vadd.xlane.f32.xlu0 %v854
        %v856 = vpop.xlane.xlu0 %855
        %v857 = vsel %vm710, %v837, 0.0
        %858 = vadd.xlane.f32.xlu0 %v857
        %v859 = vpop.xlane.xlu0 %858
        %v860 = vsel %vm710, %v838, 0.0
        %861 = vadd.xlane.f32.xlu0 %v860
        %v862 = vpop.xlane.xlu0 %861
        %871 = vrot.lane.b32.xlu0 %v651, 96
        %v872 = vpop.permute.xlu0 %871
        %873 = vrot.lane.b32.xlu0 %v653, 96
        %v874 = vpop.permute.xlu0 %873
        %875 = vrot.lane.b32.xlu0 %v656, 96
        %v876 = vpop.permute.xlu0 %875
        %877 = vrot.lane.b32.xlu0 %v658, 96
        %v878 = vpop.permute.xlu0 %877
        %879 = vrot.lane.b32.xlu0 %v661, 96
        %v880 = vpop.permute.xlu0 %879
        %881 = vrot.lane.b32.xlu0 %v663, 96
        %v882 = vpop.permute.xlu0 %881
        %883 = vrot.lane.b32.xlu0 %v666, 96
        %v884 = vpop.permute.xlu0 %883
        %885 = vrot.lane.b32.xlu0 %v668, 96
        %v886 = vpop.permute.xlu0 %885
        %v895 = vmul.f32 %v591, %v872
        %v896 = vmul.f32 %v593, %v874
        %v897 = vmul.f32 %v596, %v876
        %v898 = vmul.f32 %v598, %v878
        %v899 = vmul.f32 %v601, %v880
        %v900 = vmul.f32 %v603, %v882
        %v901 = vmul.f32 %v606, %v884
        %v902 = vmul.f32 %v608, %v886
        %v903 = vsel %vm710, %v895, 0.0
        %904 = vadd.xlane.f32.xlu0 %v903
        %v905 = vpop.xlane.xlu0 %904
        %v906 = vsel %vm710, %v896, 0.0
        %907 = vadd.xlane.f32.xlu0 %v906
        %v908 = vpop.xlane.xlu0 %907
        %v909 = vsel %vm710, %v897, 0.0
        %910 = vadd.xlane.f32.xlu0 %v909
        %v911 = vpop.xlane.xlu0 %910
        %v912 = vsel %vm710, %v898, 0.0
        %913 = vadd.xlane.f32.xlu0 %v912
        %v914 = vpop.xlane.xlu0 %913
        %v915 = vsel %vm710, %v899, 0.0
        %916 = vadd.xlane.f32.xlu0 %v915
        %v917 = vpop.xlane.xlu0 %916
        %v918 = vsel %vm710, %v900, 0.0
        %919 = vadd.xlane.f32.xlu0 %v918
        %v920 = vpop.xlane.xlu0 %919
        %v921 = vsel %vm710, %v901, 0.0
        %922 = vadd.xlane.f32.xlu0 %v921
        %v923 = vpop.xlane.xlu0 %922
        %v924 = vsel %vm710, %v902, 0.0
        %925 = vadd.xlane.f32.xlu0 %v924
        %v926 = vpop.xlane.xlu0 %925
        %vm927 = vcmask 7168
        %v928 = vsel %vm927, %v713, %v777
        %v929 = vsel %vm927, %v716, %v780
        %v930 = vsel %vm927, %v719, %v783
        %v931 = vsel %vm927, %v722, %v786
        %v932 = vsel %vm927, %v725, %v789
        %v933 = vsel %vm927, %v728, %v792
        %v934 = vsel %vm927, %v731, %v795
        %v935 = vsel %vm927, %v734, %v798
        %vm936 = vcmask 15360
        %v937 = vsel %vm936, %v928, %v841
        %v938 = vsel %vm936, %v929, %v844
        %v939 = vsel %vm936, %v930, %v847
        %v940 = vsel %vm936, %v931, %v850
        %v941 = vsel %vm936, %v932, %v853
        %v942 = vsel %vm936, %v933, %v856
        %v943 = vsel %vm936, %v934, %v859
        %v944 = vsel %vm936, %v935, %v862
        %vm945 = vcmask 23552
        %v946 = vsel %vm945, %v937, %v905
        %v947 = vsel %vm945, %v938, %v908
        %v948 = vsel %vm945, %v939, %v911
        %v949 = vsel %vm945, %v940, %v914
        %v950 = vsel %vm945, %v941, %v917
        %v951 = vsel %vm945, %v942, %v920
        %v952 = vsel %vm945, %v943, %v923
        %v953 = vsel %vm945, %v944, %v926
        %vm954 = vcmask 31744
        %v955 = vsel %vm954, %v946, -inf
        %956 = vmax.xlane.f32.xlu0 %v955
        %v957 = vpop.xlane.xlu0 %956
        %v958 = vsel %vm954, %v947, -inf
        %959 = vmax.xlane.f32.xlu0 %v958
        %v960 = vpop.xlane.xlu0 %959
        %v961 = vsel %vm954, %v948, -inf
        %962 = vmax.xlane.f32.xlu0 %v961
        %v963 = vpop.xlane.xlu0 %962
        %v964 = vsel %vm954, %v949, -inf
        %965 = vmax.xlane.f32.xlu0 %v964
        %v966 = vpop.xlane.xlu0 %965
        %v967 = vsel %vm954, %v950, -inf
        %968 = vmax.xlane.f32.xlu0 %v967
        %v969 = vpop.xlane.xlu0 %968
        %v970 = vsel %vm954, %v951, -inf
        %971 = vmax.xlane.f32.xlu0 %v970
        %v972 = vpop.xlane.xlu0 %971
        %v973 = vsel %vm954, %v952, -inf
        %974 = vmax.xlane.f32.xlu0 %v973
        %v975 = vpop.xlane.xlu0 %974
        %v976 = vsel %vm954, %v953, -inf
        %977 = vmax.xlane.f32.xlu0 %v976
        %v978 = vpop.xlane.xlu0 %977
        %v979 = vsub.f32 %v946, %v957
        %v980 = vsub.f32 %v947, %v960
        %v981 = vsub.f32 %v948, %v963
        %v982 = vsub.f32 %v949, %v966
        %v983 = vsub.f32 %v950, %v969
        %v984 = vsub.f32 %v951, %v972
        %v985 = vsub.f32 %v952, %v975
        %v986 = vsub.f32 %v953, %v978
        %v987 = vmul.f32 %v979, 1.442695
        %v988 = vpow.pop %v987
        %v989 = vmul.f32 %v980, 1.442695
        %v990 = vpow.pop %v989
        %v991 = vmul.f32 %v981, 1.442695
        %v992 = vpow.pop %v991
        %v993 = vmul.f32 %v982, 1.442695
        %v994 = vpow.pop %v993
        %v995 = vmul.f32 %v983, 1.442695
        %v996 = vpow.pop %v995
        %v997 = vmul.f32 %v984, 1.442695
        %v998 = vpow.pop %v997
        %v999 = vmul.f32 %v985, 1.442695
        %v1000 = vpow.pop %v999
        %v1001 = vmul.f32 %v986, 1.442695
        %v1002 = vpow.pop %v1001
        %v1003 = vsel %vm954, %v988, 0.0
        %1004 = vadd.xlane.f32.xlu0 %v1003
        %v1005 = vpop.xlane.xlu0 %1004
        %v1006 = vsel %vm954, %v990, 0.0
        %1007 = vadd.xlane.f32.xlu0 %v1006
        %v1008 = vpop.xlane.xlu0 %1007
        %v1009 = vsel %vm954, %v992, 0.0
        %1010 = vadd.xlane.f32.xlu0 %v1009
        %v1011 = vpop.xlane.xlu0 %1010
        %v1012 = vsel %vm954, %v994, 0.0
        %1013 = vadd.xlane.f32.xlu0 %v1012
        %v1014 = vpop.xlane.xlu0 %1013
        %v1015 = vsel %vm954, %v996, 0.0
        %1016 = vadd.xlane.f32.xlu0 %v1015
        %v1017 = vpop.xlane.xlu0 %1016
        %v1018 = vsel %vm954, %v998, 0.0
        %1019 = vadd.xlane.f32.xlu0 %v1018
        %v1020 = vpop.xlane.xlu0 %1019
        %v1021 = vsel %vm954, %v1000, 0.0
        %1022 = vadd.xlane.f32.xlu0 %v1021
        %v1023 = vpop.xlane.xlu0 %1022
        %v1024 = vsel %vm954, %v1002, 0.0
        %1025 = vadd.xlane.f32.xlu0 %v1024
        %v1026 = vpop.xlane.xlu0 %1025
        %v1027 = vrcp.pop %v1005
        %v1028 = vmul.f32 %v1005, %v1027
        %v1029 = vsub.f32 1.0, %v1028
        %v1030 = vmul.f32 %v1027, %v1029
        %v1031 = vadd.f32 %v1027, %v1030
        %vm1032 = vweird.f32 %v1005
        %vm1033 = vweird.f32 %v1027
        %vm1034 = vmor %vm1032, %vm1033
        %v1035 = vsel %vm1034, %v1027, %v1031
        %v1036 = vand.u32 2147483647, %v1005
        %vm1037 = vcmp.eq.f32.partialorder %v1036, 8.507059e+37
        %v1038 = vand.u32 %v1005, 2147483648
        %v1039 = vor.u32 1.1754944e-38, %v1038
        %v1040 = vsel %vm1037, %v1039, %v1035
        %v1041 = vmul.f32 1.0, %v1040
        %v1042 = vrcp.pop %v1008
        %v1043 = vmul.f32 %v1008, %v1042
        %v1044 = vsub.f32 1.0, %v1043
        %v1045 = vmul.f32 %v1042, %v1044
        %v1046 = vadd.f32 %v1042, %v1045
        %vm1047 = vweird.f32 %v1008
        %vm1048 = vweird.f32 %v1042
        %vm1049 = vmor %vm1047, %vm1048
        %v1050 = vsel %vm1049, %v1042, %v1046
        %v1051 = vand.u32 2147483647, %v1008
        %vm1052 = vcmp.eq.f32.partialorder %v1051, 8.507059e+37
        %v1053 = vand.u32 %v1008, 2147483648
        %v1054 = vor.u32 1.1754944e-38, %v1053
        %v1055 = vsel %vm1052, %v1054, %v1050
        %v1056 = vmul.f32 1.0, %v1055
        %v1057 = vrcp.pop %v1011
        %v1058 = vmul.f32 %v1011, %v1057
        %v1059 = vsub.f32 1.0, %v1058
        %v1060 = vmul.f32 %v1057, %v1059
        %v1061 = vadd.f32 %v1057, %v1060
        %vm1062 = vweird.f32 %v1011
        %vm1063 = vweird.f32 %v1057
        %vm1064 = vmor %vm1062, %vm1063
        %v1065 = vsel %vm1064, %v1057, %v1061
        %v1066 = vand.u32 2147483647, %v1011
        %vm1067 = vcmp.eq.f32.partialorder %v1066, 8.507059e+37
        %v1068 = vand.u32 %v1011, 2147483648
        %v1069 = vor.u32 1.1754944e-38, %v1068
        %v1070 = vsel %vm1067, %v1069, %v1065
        %v1071 = vmul.f32 1.0, %v1070
        %v1072 = vrcp.pop %v1014
        %v1073 = vmul.f32 %v1014, %v1072
        %v1074 = vsub.f32 1.0, %v1073
        %v1075 = vmul.f32 %v1072, %v1074
        %v1076 = vadd.f32 %v1072, %v1075
        %vm1077 = vweird.f32 %v1014
        %vm1078 = vweird.f32 %v1072
        %vm1079 = vmor %vm1077, %vm1078
        %v1080 = vsel %vm1079, %v1072, %v1076
        %v1081 = vand.u32 2147483647, %v1014
        %vm1082 = vcmp.eq.f32.partialorder %v1081, 8.507059e+37
        %v1083 = vand.u32 %v1014, 2147483648
        %v1084 = vor.u32 1.1754944e-38, %v1083
        %v1085 = vsel %vm1082, %v1084, %v1080
        %v1086 = vmul.f32 1.0, %v1085
        %v1087 = vrcp.pop %v1017
        %v1088 = vmul.f32 %v1017, %v1087
        %v1089 = vsub.f32 1.0, %v1088
        %v1090 = vmul.f32 %v1087, %v1089
        %v1091 = vadd.f32 %v1087, %v1090
        %vm1092 = vweird.f32 %v1017
        %vm1093 = vweird.f32 %v1087
        %vm1094 = vmor %vm1092, %vm1093
        %v1095 = vsel %vm1094, %v1087, %v1091
        %v1096 = vand.u32 2147483647, %v1017
        %vm1097 = vcmp.eq.f32.partialorder %v1096, 8.507059e+37
        %v1098 = vand.u32 %v1017, 2147483648
        %v1099 = vor.u32 1.1754944e-38, %v1098
        %v1100 = vsel %vm1097, %v1099, %v1095
        %v1101 = vmul.f32 1.0, %v1100
        %v1102 = vrcp.pop %v1020
        %v1103 = vmul.f32 %v1020, %v1102
        %v1104 = vsub.f32 1.0, %v1103
        %v1105 = vmul.f32 %v1102, %v1104
        %v1106 = vadd.f32 %v1102, %v1105
        %vm1107 = vweird.f32 %v1020
        %vm1108 = vweird.f32 %v1102
        %vm1109 = vmor %vm1107, %vm1108
        %v1110 = vsel %vm1109, %v1102, %v1106
        %v1111 = vand.u32 2147483647, %v1020
        %vm1112 = vcmp.eq.f32.partialorder %v1111, 8.507059e+37
        %v1113 = vand.u32 %v1020, 2147483648
        %v1114 = vor.u32 1.1754944e-38, %v1113
        %v1115 = vsel %vm1112, %v1114, %v1110
        %v1116 = vmul.f32 1.0, %v1115
        %v1117 = vrcp.pop %v1023
        %v1118 = vmul.f32 %v1023, %v1117
        %v1119 = vsub.f32 1.0, %v1118
        %v1120 = vmul.f32 %v1117, %v1119
        %v1121 = vadd.f32 %v1117, %v1120
        %vm1122 = vweird.f32 %v1023
        %vm1123 = vweird.f32 %v1117
        %vm1124 = vmor %vm1122, %vm1123
        %v1125 = vsel %vm1124, %v1117, %v1121
        %v1126 = vand.u32 2147483647, %v1023
        %vm1127 = vcmp.eq.f32.partialorder %v1126, 8.507059e+37
        %v1128 = vand.u32 %v1023, 2147483648
        %v1129 = vor.u32 1.1754944e-38, %v1128
        %v1130 = vsel %vm1127, %v1129, %v1125
        %v1131 = vmul.f32 1.0, %v1130
        %v1132 = vrcp.pop %v1026
        %v1133 = vmul.f32 %v1026, %v1132
        %v1134 = vsub.f32 1.0, %v1133
        %v1135 = vmul.f32 %v1132, %v1134
        %v1136 = vadd.f32 %v1132, %v1135
        %vm1137 = vweird.f32 %v1026
        %vm1138 = vweird.f32 %v1132
        %vm1139 = vmor %vm1137, %vm1138
        %v1140 = vsel %vm1139, %v1132, %v1136
        %v1141 = vand.u32 2147483647, %v1026
        %vm1142 = vcmp.eq.f32.partialorder %v1141, 8.507059e+37
        %v1143 = vand.u32 %v1026, 2147483648
        %v1144 = vor.u32 1.1754944e-38, %v1143
        %v1145 = vsel %vm1142, %v1144, %v1140
        %v1146 = vmul.f32 1.0, %v1145
        %v1147 = vmul.f32 %v988, %v1041
        %v1148 = vmul.f32 %v990, %v1056
        %v1149 = vmul.f32 %v992, %v1071
        %v1150 = vmul.f32 %v994, %v1086
        %v1151 = vmul.f32 %v996, %v1101
        %v1152 = vmul.f32 %v998, %v1116
        %v1153 = vmul.f32 %v1000, %v1131
        %v1154 = vmul.f32 %v1002, %v1146
        %v1155 = vunpack.c.l.bf16 %v385
        %v1156 = vunpack.c.l.bf16 %v386
        %v1157 = vunpack.c.l.bf16 %v387
        %v1158 = vunpack.c.l.bf16 %v388
        %v1159 = vunpack.c.l.bf16 %v389
        %v1160 = vunpack.c.l.bf16 %v390
        %v1161 = vunpack.c.l.bf16 %v391
        %v1162 = vunpack.c.l.bf16 %v392
        %1164 = vset.pattern.permute.xlu0 0
        %1165 = vperm.xlu0 %1164, %v1147
        %v1166 = vpop.permute.xlu0 %1165
        %1169 = vset.pattern.permute.xlu0 0
        %1170 = vperm.xlu0 %1169, %v1148
        %v1171 = vpop.permute.xlu0 %1170
        %1174 = vset.pattern.permute.xlu0 0
        %1175 = vperm.xlu0 %1174, %v1149
        %v1176 = vpop.permute.xlu0 %1175
        %1179 = vset.pattern.permute.xlu0 0
        %1180 = vperm.xlu0 %1179, %v1150
        %v1181 = vpop.permute.xlu0 %1180
        %1184 = vset.pattern.permute.xlu0 0
        %1185 = vperm.xlu0 %1184, %v1151
        %v1186 = vpop.permute.xlu0 %1185
        %1189 = vset.pattern.permute.xlu0 0
        %1190 = vperm.xlu0 %1189, %v1152
        %v1191 = vpop.permute.xlu0 %1190
        %1194 = vset.pattern.permute.xlu0 0
        %1195 = vperm.xlu0 %1194, %v1153
        %v1196 = vpop.permute.xlu0 %1195
        %1199 = vset.pattern.permute.xlu0 0
        %1200 = vperm.xlu0 %1199, %v1154
        %v1201 = vpop.permute.xlu0 %1200
        %v1203 = vmul.f32 %v1166, %v591
        %v1204 = vmul.f32 %v1171, %v593
        %v1205 = vmul.f32 %v1176, %v596
        %v1206 = vmul.f32 %v1181, %v598
        %v1207 = vmul.f32 %v1186, %v601
        %v1208 = vmul.f32 %v1191, %v603
        %v1209 = vmul.f32 %v1196, %v606
        %v1210 = vmul.f32 %v1201, %v608
        %1219 = vrot.lane.b32.xlu0 %v1203, 64
        %v1220 = vpop.permute.xlu0 %1219
        %1221 = vrot.lane.b32.xlu0 %v1204, 64
        %v1222 = vpop.permute.xlu0 %1221
        %1223 = vrot.lane.b32.xlu0 %v1205, 64
        %v1224 = vpop.permute.xlu0 %1223
        %1225 = vrot.lane.b32.xlu0 %v1206, 64
        %v1226 = vpop.permute.xlu0 %1225
        %1227 = vrot.lane.b32.xlu0 %v1207, 64
        %v1228 = vpop.permute.xlu0 %1227
        %1229 = vrot.lane.b32.xlu0 %v1208, 64
        %v1230 = vpop.permute.xlu0 %1229
        %1231 = vrot.lane.b32.xlu0 %v1209, 64
        %v1232 = vpop.permute.xlu0 %1231
        %1233 = vrot.lane.b32.xlu0 %v1210, 64
        %v1234 = vpop.permute.xlu0 %1233
        %v1243 = vadd.f32 %v1155, %v1220
        %v1244 = vadd.f32 %v1156, %v1222
        %v1245 = vadd.f32 %v1157, %v1224
        %v1246 = vadd.f32 %v1158, %v1226
        %v1247 = vadd.f32 %v1159, %v1228
        %v1248 = vadd.f32 %v1160, %v1230
        %v1249 = vadd.f32 %v1161, %v1232
        %v1250 = vadd.f32 %v1162, %v1234
        %1251 = vset.pattern.permute.xlu0 1
        %1252 = vperm.xlu0 %1251, %v1147
        %v1253 = vpop.permute.xlu0 %1252
        %1255 = vset.pattern.permute.xlu0 1
        %1256 = vperm.xlu0 %1255, %v1148
        %v1257 = vpop.permute.xlu0 %1256
        %1259 = vset.pattern.permute.xlu0 1
        %1260 = vperm.xlu0 %1259, %v1149
        %v1261 = vpop.permute.xlu0 %1260
        %1263 = vset.pattern.permute.xlu0 1
        %1264 = vperm.xlu0 %1263, %v1150
        %v1265 = vpop.permute.xlu0 %1264
        %1267 = vset.pattern.permute.xlu0 1
        %1268 = vperm.xlu0 %1267, %v1151
        %v1269 = vpop.permute.xlu0 %1268
        %1271 = vset.pattern.permute.xlu0 1
        %1272 = vperm.xlu0 %1271, %v1152
        %v1273 = vpop.permute.xlu0 %1272
        %1275 = vset.pattern.permute.xlu0 1
        %1276 = vperm.xlu0 %1275, %v1153
        %v1277 = vpop.permute.xlu0 %1276
        %1279 = vset.pattern.permute.xlu0 1
        %1280 = vperm.xlu0 %1279, %v1154
        %v1281 = vpop.permute.xlu0 %1280
        %v1283 = vmul.f32 %v1253, %v611
        %v1284 = vmul.f32 %v1257, %v613
        %v1285 = vmul.f32 %v1261, %v616
        %v1286 = vmul.f32 %v1265, %v618
        %v1287 = vmul.f32 %v1269, %v621
        %v1288 = vmul.f32 %v1273, %v623
        %v1289 = vmul.f32 %v1277, %v626
        %v1290 = vmul.f32 %v1281, %v628
        %1299 = vrot.lane.b32.xlu0 %v1283, 64
        %v1300 = vpop.permute.xlu0 %1299
        %1301 = vrot.lane.b32.xlu0 %v1284, 64
        %v1302 = vpop.permute.xlu0 %1301
        %1303 = vrot.lane.b32.xlu0 %v1285, 64
        %v1304 = vpop.permute.xlu0 %1303
        %1305 = vrot.lane.b32.xlu0 %v1286, 64
        %v1306 = vpop.permute.xlu0 %1305
        %1307 = vrot.lane.b32.xlu0 %v1287, 64
        %v1308 = vpop.permute.xlu0 %1307
        %1309 = vrot.lane.b32.xlu0 %v1288, 64
        %v1310 = vpop.permute.xlu0 %1309
        %1311 = vrot.lane.b32.xlu0 %v1289, 64
        %v1312 = vpop.permute.xlu0 %1311
        %1313 = vrot.lane.b32.xlu0 %v1290, 64
        %v1314 = vpop.permute.xlu0 %1313
        %v1323 = vadd.f32 %v1243, %v1300
        %v1324 = vadd.f32 %v1244, %v1302
        %v1325 = vadd.f32 %v1245, %v1304
        %v1326 = vadd.f32 %v1246, %v1306
        %v1327 = vadd.f32 %v1247, %v1308
        %v1328 = vadd.f32 %v1248, %v1310
        %v1329 = vadd.f32 %v1249, %v1312
        %v1330 = vadd.f32 %v1250, %v1314
        %1331 = vset.pattern.permute.xlu0 2
        %1332 = vperm.xlu0 %1331, %v1147
        %v1333 = vpop.permute.xlu0 %1332
        %1335 = vset.pattern.permute.xlu0 2
        %1336 = vperm.xlu0 %1335, %v1148
        %v1337 = vpop.permute.xlu0 %1336
        %1339 = vset.pattern.permute.xlu0 2
        %1340 = vperm.xlu0 %1339, %v1149
        %v1341 = vpop.permute.xlu0 %1340
        %1343 = vset.pattern.permute.xlu0 2
        %1344 = vperm.xlu0 %1343, %v1150
        %v1345 = vpop.permute.xlu0 %1344
        %1347 = vset.pattern.permute.xlu0 2
        %1348 = vperm.xlu0 %1347, %v1151
        %v1349 = vpop.permute.xlu0 %1348
        %1351 = vset.pattern.permute.xlu0 2
        %1352 = vperm.xlu0 %1351, %v1152
        %v1353 = vpop.permute.xlu0 %1352
        %1355 = vset.pattern.permute.xlu0 2
        %1356 = vperm.xlu0 %1355, %v1153
        %v1357 = vpop.permute.xlu0 %1356
        %1359 = vset.pattern.permute.xlu0 2
        %1360 = vperm.xlu0 %1359, %v1154
        %v1361 = vpop.permute.xlu0 %1360
        %v1363 = vmul.f32 %v1333, %v631
        %v1364 = vmul.f32 %v1337, %v633
        %v1365 = vmul.f32 %v1341, %v636
        %v1366 = vmul.f32 %v1345, %v638
        %v1367 = vmul.f32 %v1349, %v641
        %v1368 = vmul.f32 %v1353, %v643
        %v1369 = vmul.f32 %v1357, %v646
        %v1370 = vmul.f32 %v1361, %v648
        %1379 = vrot.lane.b32.xlu0 %v1363, 64
        %v1380 = vpop.permute.xlu0 %1379
        %1381 = vrot.lane.b32.xlu0 %v1364, 64
        %v1382 = vpop.permute.xlu0 %1381
        %1383 = vrot.lane.b32.xlu0 %v1365, 64
        %v1384 = vpop.permute.xlu0 %1383
        %1385 = vrot.lane.b32.xlu0 %v1366, 64
        %v1386 = vpop.permute.xlu0 %1385
        %1387 = vrot.lane.b32.xlu0 %v1367, 64
        %v1388 = vpop.permute.xlu0 %1387
        %1389 = vrot.lane.b32.xlu0 %v1368, 64
        %v1390 = vpop.permute.xlu0 %1389
        %1391 = vrot.lane.b32.xlu0 %v1369, 64
        %v1392 = vpop.permute.xlu0 %1391
        %1393 = vrot.lane.b32.xlu0 %v1370, 64
        %v1394 = vpop.permute.xlu0 %1393
        %v1403 = vadd.f32 %v1323, %v1380
        %v1404 = vadd.f32 %v1324, %v1382
        %v1405 = vadd.f32 %v1325, %v1384
        %v1406 = vadd.f32 %v1326, %v1386
        %v1407 = vadd.f32 %v1327, %v1388
        %v1408 = vadd.f32 %v1328, %v1390
        %v1409 = vadd.f32 %v1329, %v1392
        %v1410 = vadd.f32 %v1330, %v1394
        %1411 = vset.pattern.permute.xlu0 3
        %1412 = vperm.xlu0 %1411, %v1147
        %v1413 = vpop.permute.xlu0 %1412
        %1415 = vset.pattern.permute.xlu0 3
        %1416 = vperm.xlu0 %1415, %v1148
        %v1417 = vpop.permute.xlu0 %1416
        %1419 = vset.pattern.permute.xlu0 3
        %1420 = vperm.xlu0 %1419, %v1149
        %v1421 = vpop.permute.xlu0 %1420
        %1423 = vset.pattern.permute.xlu0 3
        %1424 = vperm.xlu0 %1423, %v1150
        %v1425 = vpop.permute.xlu0 %1424
        %1427 = vset.pattern.permute.xlu0 3
        %1428 = vperm.xlu0 %1427, %v1151
        %v1429 = vpop.permute.xlu0 %1428
        %1431 = vset.pattern.permute.xlu0 3
        %1432 = vperm.xlu0 %1431, %v1152
        %v1433 = vpop.permute.xlu0 %1432
        %1435 = vset.pattern.permute.xlu0 3
        %1436 = vperm.xlu0 %1435, %v1153
        %v1437 = vpop.permute.xlu0 %1436
        %1439 = vset.pattern.permute.xlu0 3
        %1440 = vperm.xlu0 %1439, %v1154
        %v1441 = vpop.permute.xlu0 %1440
        %v1443 = vmul.f32 %v1413, %v651
        %v1444 = vmul.f32 %v1417, %v653
        %v1445 = vmul.f32 %v1421, %v656
        %v1446 = vmul.f32 %v1425, %v658
        %v1447 = vmul.f32 %v1429, %v661
        %v1448 = vmul.f32 %v1433, %v663
        %v1449 = vmul.f32 %v1437, %v666
        %v1450 = vmul.f32 %v1441, %v668
        %1459 = vrot.lane.b32.xlu0 %v1443, 64
        %v1460 = vpop.permute.xlu0 %1459
        %1461 = vrot.lane.b32.xlu0 %v1444, 64
        %v1462 = vpop.permute.xlu0 %1461
        %1463 = vrot.lane.b32.xlu0 %v1445, 64
        %v1464 = vpop.permute.xlu0 %1463
        %1465 = vrot.lane.b32.xlu0 %v1446, 64
        %v1466 = vpop.permute.xlu0 %1465
        %1467 = vrot.lane.b32.xlu0 %v1447, 64
        %v1468 = vpop.permute.xlu0 %1467
        %1469 = vrot.lane.b32.xlu0 %v1448, 64
        %v1470 = vpop.permute.xlu0 %1469
        %1471 = vrot.lane.b32.xlu0 %v1449, 64
        %v1472 = vpop.permute.xlu0 %1471
        %1473 = vrot.lane.b32.xlu0 %v1450, 64
        %v1474 = vpop.permute.xlu0 %1473
        %v1483 = vadd.f32 %v1403, %v1460
        %v1484 = vadd.f32 %v1404, %v1462
        %v1485 = vadd.f32 %v1405, %v1464
        %v1486 = vadd.f32 %v1406, %v1466
        %v1487 = vadd.f32 %v1407, %v1468
        %v1488 = vadd.f32 %v1408, %v1470
        %v1489 = vadd.f32 %v1409, %v1472
        %v1490 = vadd.f32 %v1410, %v1474
        %v1491 = vmul.f32 %v611, %v679
        %v1492 = vmul.f32 %v613, %v681
        %v1493 = vmul.f32 %v616, %v683
        %v1494 = vmul.f32 %v618, %v685
        %v1495 = vmul.f32 %v621, %v687
        %v1496 = vmul.f32 %v623, %v689
        %v1497 = vmul.f32 %v626, %v691
        %v1498 = vmul.f32 %v628, %v693
        %v1499 = vsel %vm710, %v1491, 0.0
        %1500 = vadd.xlane.f32.xlu0 %v1499
        %v1501 = vpop.xlane.xlu0 %1500
        %v1502 = vsel %vm710, %v1492, 0.0
        %1503 = vadd.xlane.f32.xlu0 %v1502
        %v1504 = vpop.xlane.xlu0 %1503
        %v1505 = vsel %vm710, %v1493, 0.0
        %1506 = vadd.xlane.f32.xlu0 %v1505
        %v1507 = vpop.xlane.xlu0 %1506
        %v1508 = vsel %vm710, %v1494, 0.0
        %1509 = vadd.xlane.f32.xlu0 %v1508
        %v1510 = vpop.xlane.xlu0 %1509
        %v1511 = vsel %vm710, %v1495, 0.0
        %1512 = vadd.xlane.f32.xlu0 %v1511
        %v1513 = vpop.xlane.xlu0 %1512
        %v1514 = vsel %vm710, %v1496, 0.0
        %1515 = vadd.xlane.f32.xlu0 %v1514
        %v1516 = vpop.xlane.xlu0 %1515
        %v1517 = vsel %vm710, %v1497, 0.0
        %1518 = vadd.xlane.f32.xlu0 %v1517
        %v1519 = vpop.xlane.xlu0 %1518
        %v1520 = vsel %vm710, %v1498, 0.0
        %1521 = vadd.xlane.f32.xlu0 %v1520
        %v1522 = vpop.xlane.xlu0 %1521
        %v1523 = vmul.f32 %v611, %v744
        %v1524 = vmul.f32 %v613, %v746
        %v1525 = vmul.f32 %v616, %v748
        %v1526 = vmul.f32 %v618, %v750
        %v1527 = vmul.f32 %v621, %v752
        %v1528 = vmul.f32 %v623, %v754
        %v1529 = vmul.f32 %v626, %v756
        %v1530 = vmul.f32 %v628, %v758
        %v1531 = vsel %vm710, %v1523, 0.0
        %1532 = vadd.xlane.f32.xlu0 %v1531
        %v1533 = vpop.xlane.xlu0 %1532
        %v1534 = vsel %vm710, %v1524, 0.0
        %1535 = vadd.xlane.f32.xlu0 %v1534
        %v1536 = vpop.xlane.xlu0 %1535
        %v1537 = vsel %vm710, %v1525, 0.0
        %1538 = vadd.xlane.f32.xlu0 %v1537
        %v1539 = vpop.xlane.xlu0 %1538
        %v1540 = vsel %vm710, %v1526, 0.0
        %1541 = vadd.xlane.f32.xlu0 %v1540
        %v1542 = vpop.xlane.xlu0 %1541
        %v1543 = vsel %vm710, %v1527, 0.0
        %1544 = vadd.xlane.f32.xlu0 %v1543
        %v1545 = vpop.xlane.xlu0 %1544
        %v1546 = vsel %vm710, %v1528, 0.0
        %1547 = vadd.xlane.f32.xlu0 %v1546
        %v1548 = vpop.xlane.xlu0 %1547
        %v1549 = vsel %vm710, %v1529, 0.0
        %1550 = vadd.xlane.f32.xlu0 %v1549
        %v1551 = vpop.xlane.xlu0 %1550
        %v1552 = vsel %vm710, %v1530, 0.0
        %1553 = vadd.xlane.f32.xlu0 %v1552
        %v1554 = vpop.xlane.xlu0 %1553
        %v1555 = vmul.f32 %v611, %v808
        %v1556 = vmul.f32 %v613, %v810
        %v1557 = vmul.f32 %v616, %v812
        %v1558 = vmul.f32 %v618, %v814
        %v1559 = vmul.f32 %v621, %v816
        %v1560 = vmul.f32 %v623, %v818
        %v1561 = vmul.f32 %v626, %v820
        %v1562 = vmul.f32 %v628, %v822
        %v1563 = vsel %vm710, %v1555, 0.0
        %1564 = vadd.xlane.f32.xlu0 %v1563
        %v1565 = vpop.xlane.xlu0 %1564
        %v1566 = vsel %vm710, %v1556, 0.0
        %1567 = vadd.xlane.f32.xlu0 %v1566
        %v1568 = vpop.xlane.xlu0 %1567
        %v1569 = vsel %vm710, %v1557, 0.0
        %1570 = vadd.xlane.f32.xlu0 %v1569
        %v1571 = vpop.xlane.xlu0 %1570
        %v1572 = vsel %vm710, %v1558, 0.0
        %1573 = vadd.xlane.f32.xlu0 %v1572
        %v1574 = vpop.xlane.xlu0 %1573
        %v1575 = vsel %vm710, %v1559, 0.0
        %1576 = vadd.xlane.f32.xlu0 %v1575
        %v1577 = vpop.xlane.xlu0 %1576
        %v1578 = vsel %vm710, %v1560, 0.0
        %1579 = vadd.xlane.f32.xlu0 %v1578
        %v1580 = vpop.xlane.xlu0 %1579
        %v1581 = vsel %vm710, %v1561, 0.0
        %1582 = vadd.xlane.f32.xlu0 %v1581
        %v1583 = vpop.xlane.xlu0 %1582
        %v1584 = vsel %vm710, %v1562, 0.0
        %1585 = vadd.xlane.f32.xlu0 %v1584
        %v1586 = vpop.xlane.xlu0 %1585
        %v1587 = vmul.f32 %v611, %v872
        %v1588 = vmul.f32 %v613, %v874
        %v1589 = vmul.f32 %v616, %v876
        %v1590 = vmul.f32 %v618, %v878
        %v1591 = vmul.f32 %v621, %v880
        %v1592 = vmul.f32 %v623, %v882
        %v1593 = vmul.f32 %v626, %v884
        %v1594 = vmul.f32 %v628, %v886
        %v1595 = vsel %vm710, %v1587, 0.0
        %1596 = vadd.xlane.f32.xlu0 %v1595
        %v1597 = vpop.xlane.xlu0 %1596
        %v1598 = vsel %vm710, %v1588, 0.0
        %1599 = vadd.xlane.f32.xlu0 %v1598
        %v1600 = vpop.xlane.xlu0 %1599
        %v1601 = vsel %vm710, %v1589, 0.0
        %1602 = vadd.xlane.f32.xlu0 %v1601
        %v1603 = vpop.xlane.xlu0 %1602
        %v1604 = vsel %vm710, %v1590, 0.0
        %1605 = vadd.xlane.f32.xlu0 %v1604
        %v1606 = vpop.xlane.xlu0 %1605
        %v1607 = vsel %vm710, %v1591, 0.0
        %1608 = vadd.xlane.f32.xlu0 %v1607
        %v1609 = vpop.xlane.xlu0 %1608
        %v1610 = vsel %vm710, %v1592, 0.0
        %1611 = vadd.xlane.f32.xlu0 %v1610
        %v1612 = vpop.xlane.xlu0 %1611
        %v1613 = vsel %vm710, %v1593, 0.0
        %1614 = vadd.xlane.f32.xlu0 %v1613
        %v1615 = vpop.xlane.xlu0 %1614
        %v1616 = vsel %vm710, %v1594, 0.0
        %1617 = vadd.xlane.f32.xlu0 %v1616
        %v1618 = vpop.xlane.xlu0 %1617
        %v1619 = vsel %vm927, %v1501, %v1533
        %v1620 = vsel %vm927, %v1504, %v1536
        %v1621 = vsel %vm927, %v1507, %v1539
        %v1622 = vsel %vm927, %v1510, %v1542
        %v1623 = vsel %vm927, %v1513, %v1545
        %v1624 = vsel %vm927, %v1516, %v1548
        %v1625 = vsel %vm927, %v1519, %v1551
        %v1626 = vsel %vm927, %v1522, %v1554
        %v1627 = vsel %vm936, %v1619, %v1565
        %v1628 = vsel %vm936, %v1620, %v1568
        %v1629 = vsel %vm936, %v1621, %v1571
        %v1630 = vsel %vm936, %v1622, %v1574
        %v1631 = vsel %vm936, %v1623, %v1577
        %v1632 = vsel %vm936, %v1624, %v1580
        %v1633 = vsel %vm936, %v1625, %v1583
        %v1634 = vsel %vm936, %v1626, %v1586
        %v1635 = vsel %vm945, %v1627, %v1597
        %v1636 = vsel %vm945, %v1628, %v1600
        %v1637 = vsel %vm945, %v1629, %v1603
        %v1638 = vsel %vm945, %v1630, %v1606
        %v1639 = vsel %vm945, %v1631, %v1609
        %v1640 = vsel %vm945, %v1632, %v1612
        %v1641 = vsel %vm945, %v1633, %v1615
        %v1642 = vsel %vm945, %v1634, %v1618
        %v1643 = vsel %vm954, %v1635, -inf
        %1644 = vmax.xlane.f32.xlu0 %v1643
        %v1645 = vpop.xlane.xlu0 %1644
        %v1646 = vsel %vm954, %v1636, -inf
        %1647 = vmax.xlane.f32.xlu0 %v1646
        %v1648 = vpop.xlane.xlu0 %1647
        %v1649 = vsel %vm954, %v1637, -inf
        %1650 = vmax.xlane.f32.xlu0 %v1649
        %v1651 = vpop.xlane.xlu0 %1650
        %v1652 = vsel %vm954, %v1638, -inf
        %1653 = vmax.xlane.f32.xlu0 %v1652
        %v1654 = vpop.xlane.xlu0 %1653
        %v1655 = vsel %vm954, %v1639, -inf
        %1656 = vmax.xlane.f32.xlu0 %v1655
        %v1657 = vpop.xlane.xlu0 %1656
        %v1658 = vsel %vm954, %v1640, -inf
        %1659 = vmax.xlane.f32.xlu0 %v1658
        %v1660 = vpop.xlane.xlu0 %1659
        %v1661 = vsel %vm954, %v1641, -inf
        %1662 = vmax.xlane.f32.xlu0 %v1661
        %v1663 = vpop.xlane.xlu0 %1662
        %v1664 = vsel %vm954, %v1642, -inf
        %1665 = vmax.xlane.f32.xlu0 %v1664
        %v1666 = vpop.xlane.xlu0 %1665
        %v1667 = vsub.f32 %v1635, %v1645
        %v1668 = vsub.f32 %v1636, %v1648
        %v1669 = vsub.f32 %v1637, %v1651
        %v1670 = vsub.f32 %v1638, %v1654
        %v1671 = vsub.f32 %v1639, %v1657
        %v1672 = vsub.f32 %v1640, %v1660
        %v1673 = vsub.f32 %v1641, %v1663
        %v1674 = vsub.f32 %v1642, %v1666
        %v1675 = vmul.f32 %v1667, 1.442695
        %v1676 = vpow.pop %v1675
        %v1677 = vmul.f32 %v1668, 1.442695
        %v1678 = vpow.pop %v1677
        %v1679 = vmul.f32 %v1669, 1.442695
        %v1680 = vpow.pop %v1679
        %v1681 = vmul.f32 %v1670, 1.442695
        %v1682 = vpow.pop %v1681
        %v1683 = vmul.f32 %v1671, 1.442695
        %v1684 = vpow.pop %v1683
        %v1685 = vmul.f32 %v1672, 1.442695
        %v1686 = vpow.pop %v1685
        %v1687 = vmul.f32 %v1673, 1.442695
        %v1688 = vpow.pop %v1687
        %v1689 = vmul.f32 %v1674, 1.442695
        %v1690 = vpow.pop %v1689
        %v1691 = vsel %vm954, %v1676, 0.0
        %1692 = vadd.xlane.f32.xlu0 %v1691
        %v1693 = vpop.xlane.xlu0 %1692
        %v1694 = vsel %vm954, %v1678, 0.0
        %1695 = vadd.xlane.f32.xlu0 %v1694
        %v1696 = vpop.xlane.xlu0 %1695
        %v1697 = vsel %vm954, %v1680, 0.0
        %1698 = vadd.xlane.f32.xlu0 %v1697
        %v1699 = vpop.xlane.xlu0 %1698
        %v1700 = vsel %vm954, %v1682, 0.0
        %1701 = vadd.xlane.f32.xlu0 %v1700
        %v1702 = vpop.xlane.xlu0 %1701
        %v1703 = vsel %vm954, %v1684, 0.0
        %1704 = vadd.xlane.f32.xlu0 %v1703
        %v1705 = vpop.xlane.xlu0 %1704
        %v1706 = vsel %vm954, %v1686, 0.0
        %1707 = vadd.xlane.f32.xlu0 %v1706
        %v1708 = vpop.xlane.xlu0 %1707
        %v1709 = vsel %vm954, %v1688, 0.0
        %1710 = vadd.xlane.f32.xlu0 %v1709
        %v1711 = vpop.xlane.xlu0 %1710
        %v1712 = vsel %vm954, %v1690, 0.0
        %1713 = vadd.xlane.f32.xlu0 %v1712
        %v1714 = vpop.xlane.xlu0 %1713
        %v1715 = vrcp.pop %v1693
        %v1716 = vmul.f32 %v1693, %v1715
        %v1717 = vsub.f32 1.0, %v1716
        %v1718 = vmul.f32 %v1715, %v1717
        %v1719 = vadd.f32 %v1715, %v1718
        %vm1720 = vweird.f32 %v1693
        %vm1721 = vweird.f32 %v1715
        %vm1722 = vmor %vm1720, %vm1721
        %v1723 = vsel %vm1722, %v1715, %v1719
        %v1724 = vand.u32 2147483647, %v1693
        %vm1725 = vcmp.eq.f32.partialorder %v1724, 8.507059e+37
        %v1726 = vand.u32 %v1693, 2147483648
        %v1727 = vor.u32 1.1754944e-38, %v1726
        %v1728 = vsel %vm1725, %v1727, %v1723
        %v1729 = vmul.f32 1.0, %v1728
        %v1730 = vrcp.pop %v1696
        %v1731 = vmul.f32 %v1696, %v1730
        %v1732 = vsub.f32 1.0, %v1731
        %v1733 = vmul.f32 %v1730, %v1732
        %v1734 = vadd.f32 %v1730, %v1733
        %vm1735 = vweird.f32 %v1696
        %vm1736 = vweird.f32 %v1730
        %vm1737 = vmor %vm1735, %vm1736
        %v1738 = vsel %vm1737, %v1730, %v1734
        %v1739 = vand.u32 2147483647, %v1696
        %vm1740 = vcmp.eq.f32.partialorder %v1739, 8.507059e+37
        %v1741 = vand.u32 %v1696, 2147483648
        %v1742 = vor.u32 1.1754944e-38, %v1741
        %v1743 = vsel %vm1740, %v1742, %v1738
        %v1744 = vmul.f32 1.0, %v1743
        %v1745 = vrcp.pop %v1699
        %v1746 = vmul.f32 %v1699, %v1745
        %v1747 = vsub.f32 1.0, %v1746
        %v1748 = vmul.f32 %v1745, %v1747
        %v1749 = vadd.f32 %v1745, %v1748
        %vm1750 = vweird.f32 %v1699
        %vm1751 = vweird.f32 %v1745
        %vm1752 = vmor %vm1750, %vm1751
        %v1753 = vsel %vm1752, %v1745, %v1749
        %v1754 = vand.u32 2147483647, %v1699
        %vm1755 = vcmp.eq.f32.partialorder %v1754, 8.507059e+37
        %v1756 = vand.u32 %v1699, 2147483648
        %v1757 = vor.u32 1.1754944e-38, %v1756
        %v1758 = vsel %vm1755, %v1757, %v1753
        %v1759 = vmul.f32 1.0, %v1758
        %v1760 = vrcp.pop %v1702
        %v1761 = vmul.f32 %v1702, %v1760
        %v1762 = vsub.f32 1.0, %v1761
        %v1763 = vmul.f32 %v1760, %v1762
        %v1764 = vadd.f32 %v1760, %v1763
        %vm1765 = vweird.f32 %v1702
        %vm1766 = vweird.f32 %v1760
        %vm1767 = vmor %vm1765, %vm1766
        %v1768 = vsel %vm1767, %v1760, %v1764
        %v1769 = vand.u32 2147483647, %v1702
        %vm1770 = vcmp.eq.f32.partialorder %v1769, 8.507059e+37
        %v1771 = vand.u32 %v1702, 2147483648
        %v1772 = vor.u32 1.1754944e-38, %v1771
        %v1773 = vsel %vm1770, %v1772, %v1768
        %v1774 = vmul.f32 1.0, %v1773
        %v1775 = vrcp.pop %v1705
        %v1776 = vmul.f32 %v1705, %v1775
        %v1777 = vsub.f32 1.0, %v1776
        %v1778 = vmul.f32 %v1775, %v1777
        %v1779 = vadd.f32 %v1775, %v1778
        %vm1780 = vweird.f32 %v1705
        %vm1781 = vweird.f32 %v1775
        %vm1782 = vmor %vm1780, %vm1781
        %v1783 = vsel %vm1782, %v1775, %v1779
        %v1784 = vand.u32 2147483647, %v1705
        %vm1785 = vcmp.eq.f32.partialorder %v1784, 8.507059e+37
        %v1786 = vand.u32 %v1705, 2147483648
        %v1787 = vor.u32 1.1754944e-38, %v1786
        %v1788 = vsel %vm1785, %v1787, %v1783
        %v1789 = vmul.f32 1.0, %v1788
        %v1790 = vrcp.pop %v1708
        %v1791 = vmul.f32 %v1708, %v1790
        %v1792 = vsub.f32 1.0, %v1791
        %v1793 = vmul.f32 %v1790, %v1792
        %v1794 = vadd.f32 %v1790, %v1793
        %vm1795 = vweird.f32 %v1708
        %vm1796 = vweird.f32 %v1790
        %vm1797 = vmor %vm1795, %vm1796
        %v1798 = vsel %vm1797, %v1790, %v1794
        %v1799 = vand.u32 2147483647, %v1708
        %vm1800 = vcmp.eq.f32.partialorder %v1799, 8.507059e+37
        %v1801 = vand.u32 %v1708, 2147483648
        %v1802 = vor.u32 1.1754944e-38, %v1801
        %v1803 = vsel %vm1800, %v1802, %v1798
        %v1804 = vmul.f32 1.0, %v1803
        %v1805 = vrcp.pop %v1711
        %v1806 = vmul.f32 %v1711, %v1805
        %v1807 = vsub.f32 1.0, %v1806
        %v1808 = vmul.f32 %v1805, %v1807
        %v1809 = vadd.f32 %v1805, %v1808
        %vm1810 = vweird.f32 %v1711
        %vm1811 = vweird.f32 %v1805
        %vm1812 = vmor %vm1810, %vm1811
        %v1813 = vsel %vm1812, %v1805, %v1809
        %v1814 = vand.u32 2147483647, %v1711
        %vm1815 = vcmp.eq.f32.partialorder %v1814, 8.507059e+37
        %v1816 = vand.u32 %v1711, 2147483648
        %v1817 = vor.u32 1.1754944e-38, %v1816
        %v1818 = vsel %vm1815, %v1817, %v1813
        %v1819 = vmul.f32 1.0, %v1818
        %v1820 = vrcp.pop %v1714
        %v1821 = vmul.f32 %v1714, %v1820
        %v1822 = vsub.f32 1.0, %v1821
        %v1823 = vmul.f32 %v1820, %v1822
        %v1824 = vadd.f32 %v1820, %v1823
        %vm1825 = vweird.f32 %v1714
        %vm1826 = vweird.f32 %v1820
        %vm1827 = vmor %vm1825, %vm1826
        %v1828 = vsel %vm1827, %v1820, %v1824
        %v1829 = vand.u32 2147483647, %v1714
        %vm1830 = vcmp.eq.f32.partialorder %v1829, 8.507059e+37
        %v1831 = vand.u32 %v1714, 2147483648
        %v1832 = vor.u32 1.1754944e-38, %v1831
        %v1833 = vsel %vm1830, %v1832, %v1828
        %v1834 = vmul.f32 1.0, %v1833
        %v1835 = vmul.f32 %v1676, %v1729
        %v1836 = vmul.f32 %v1678, %v1744
        %v1837 = vmul.f32 %v1680, %v1759
        %v1838 = vmul.f32 %v1682, %v1774
        %v1839 = vmul.f32 %v1684, %v1789
        %v1840 = vmul.f32 %v1686, %v1804
        %v1841 = vmul.f32 %v1688, %v1819
        %v1842 = vmul.f32 %v1690, %v1834
        %v1843 = vunpack.c.l.bf16 %v393
        %v1844 = vunpack.c.l.bf16 %v394
        %v1845 = vunpack.c.l.bf16 %v395
        %v1846 = vunpack.c.l.bf16 %v396
        %v1847 = vunpack.c.l.bf16 %v397
        %v1848 = vunpack.c.l.bf16 %v398
        %v1849 = vunpack.c.l.bf16 %v399
        %v1850 = vunpack.c.l.bf16 %v400
        %1852 = vset.pattern.permute.xlu0 0
        %1853 = vperm.xlu0 %1852, %v1835
        %v1854 = vpop.permute.xlu0 %1853
        %1857 = vset.pattern.permute.xlu0 0
        %1858 = vperm.xlu0 %1857, %v1836
        %v1859 = vpop.permute.xlu0 %1858
        %1862 = vset.pattern.permute.xlu0 0
        %1863 = vperm.xlu0 %1862, %v1837
        %v1864 = vpop.permute.xlu0 %1863
        %1867 = vset.pattern.permute.xlu0 0
        %1868 = vperm.xlu0 %1867, %v1838
        %v1869 = vpop.permute.xlu0 %1868
        %1872 = vset.pattern.permute.xlu0 0
        %1873 = vperm.xlu0 %1872, %v1839
        %v1874 = vpop.permute.xlu0 %1873
        %1877 = vset.pattern.permute.xlu0 0
        %1878 = vperm.xlu0 %1877, %v1840
        %v1879 = vpop.permute.xlu0 %1878
        %1882 = vset.pattern.permute.xlu0 0
        %1883 = vperm.xlu0 %1882, %v1841
        %v1884 = vpop.permute.xlu0 %1883
        %1887 = vset.pattern.permute.xlu0 0
        %1888 = vperm.xlu0 %1887, %v1842
        %v1889 = vpop.permute.xlu0 %1888
        %v1891 = vmul.f32 %v1854, %v591
        %v1892 = vmul.f32 %v1859, %v593
        %v1893 = vmul.f32 %v1864, %v596
        %v1894 = vmul.f32 %v1869, %v598
        %v1895 = vmul.f32 %v1874, %v601
        %v1896 = vmul.f32 %v1879, %v603
        %v1897 = vmul.f32 %v1884, %v606
        %v1898 = vmul.f32 %v1889, %v608
        %1907 = vrot.lane.b32.xlu0 %v1891, 64
        %v1908 = vpop.permute.xlu0 %1907
        %1909 = vrot.lane.b32.xlu0 %v1892, 64
        %v1910 = vpop.permute.xlu0 %1909
        %1911 = vrot.lane.b32.xlu0 %v1893, 64
        %v1912 = vpop.permute.xlu0 %1911
        %1913 = vrot.lane.b32.xlu0 %v1894, 64
        %v1914 = vpop.permute.xlu0 %1913
        %1915 = vrot.lane.b32.xlu0 %v1895, 64
        %v1916 = vpop.permute.xlu0 %1915
        %1917 = vrot.lane.b32.xlu0 %v1896, 64
        %v1918 = vpop.permute.xlu0 %1917
        %1919 = vrot.lane.b32.xlu0 %v1897, 64
        %v1920 = vpop.permute.xlu0 %1919
        %1921 = vrot.lane.b32.xlu0 %v1898, 64
        %v1922 = vpop.permute.xlu0 %1921
        %v1931 = vadd.f32 %v1843, %v1908
        %v1932 = vadd.f32 %v1844, %v1910
        %v1933 = vadd.f32 %v1845, %v1912
        %v1934 = vadd.f32 %v1846, %v1914
        %v1935 = vadd.f32 %v1847, %v1916
        %v1936 = vadd.f32 %v1848, %v1918
        %v1937 = vadd.f32 %v1849, %v1920
        %v1938 = vadd.f32 %v1850, %v1922
        %1939 = vset.pattern.permute.xlu0 1
        %1940 = vperm.xlu0 %1939, %v1835
        %v1941 = vpop.permute.xlu0 %1940
        %1943 = vset.pattern.permute.xlu0 1
        %1944 = vperm.xlu0 %1943, %v1836
        %v1945 = vpop.permute.xlu0 %1944
        %1947 = vset.pattern.permute.xlu0 1
        %1948 = vperm.xlu0 %1947, %v1837
        %v1949 = vpop.permute.xlu0 %1948
        %1951 = vset.pattern.permute.xlu0 1
        %1952 = vperm.xlu0 %1951, %v1838
        %v1953 = vpop.permute.xlu0 %1952
        %1955 = vset.pattern.permute.xlu0 1
        %1956 = vperm.xlu0 %1955, %v1839
        %v1957 = vpop.permute.xlu0 %1956
        %1959 = vset.pattern.permute.xlu0 1
        %1960 = vperm.xlu0 %1959, %v1840
        %v1961 = vpop.permute.xlu0 %1960
        %1963 = vset.pattern.permute.xlu0 1
        %1964 = vperm.xlu0 %1963, %v1841
        %v1965 = vpop.permute.xlu0 %1964
        %1967 = vset.pattern.permute.xlu0 1
        %1968 = vperm.xlu0 %1967, %v1842
        %v1969 = vpop.permute.xlu0 %1968
        %v1971 = vmul.f32 %v1941, %v611
        %v1972 = vmul.f32 %v1945, %v613
        %v1973 = vmul.f32 %v1949, %v616
        %v1974 = vmul.f32 %v1953, %v618
        %v1975 = vmul.f32 %v1957, %v621
        %v1976 = vmul.f32 %v1961, %v623
        %v1977 = vmul.f32 %v1965, %v626
        %v1978 = vmul.f32 %v1969, %v628
        %1987 = vrot.lane.b32.xlu0 %v1971, 64
        %v1988 = vpop.permute.xlu0 %1987
        %1989 = vrot.lane.b32.xlu0 %v1972, 64
        %v1990 = vpop.permute.xlu0 %1989
        %1991 = vrot.lane.b32.xlu0 %v1973, 64
        %v1992 = vpop.permute.xlu0 %1991
        %1993 = vrot.lane.b32.xlu0 %v1974, 64
        %v1994 = vpop.permute.xlu0 %1993
        %1995 = vrot.lane.b32.xlu0 %v1975, 64
        %v1996 = vpop.permute.xlu0 %1995
        %1997 = vrot.lane.b32.xlu0 %v1976, 64
        %v1998 = vpop.permute.xlu0 %1997
        %1999 = vrot.lane.b32.xlu0 %v1977, 64
        %v2000 = vpop.permute.xlu0 %1999
        %2001 = vrot.lane.b32.xlu0 %v1978, 64
        %v2002 = vpop.permute.xlu0 %2001
        %v2011 = vadd.f32 %v1931, %v1988
        %v2012 = vadd.f32 %v1932, %v1990
        %v2013 = vadd.f32 %v1933, %v1992
        %v2014 = vadd.f32 %v1934, %v1994
        %v2015 = vadd.f32 %v1935, %v1996
        %v2016 = vadd.f32 %v1936, %v1998
        %v2017 = vadd.f32 %v1937, %v2000
        %v2018 = vadd.f32 %v1938, %v2002
        %2019 = vset.pattern.permute.xlu0 2
        %2020 = vperm.xlu0 %2019, %v1835
        %v2021 = vpop.permute.xlu0 %2020
        %2023 = vset.pattern.permute.xlu0 2
        %2024 = vperm.xlu0 %2023, %v1836
        %v2025 = vpop.permute.xlu0 %2024
        %2027 = vset.pattern.permute.xlu0 2
        %2028 = vperm.xlu0 %2027, %v1837
        %v2029 = vpop.permute.xlu0 %2028
        %2031 = vset.pattern.permute.xlu0 2
        %2032 = vperm.xlu0 %2031, %v1838
        %v2033 = vpop.permute.xlu0 %2032
        %2035 = vset.pattern.permute.xlu0 2
        %2036 = vperm.xlu0 %2035, %v1839
        %v2037 = vpop.permute.xlu0 %2036
        %2039 = vset.pattern.permute.xlu0 2
        %2040 = vperm.xlu0 %2039, %v1840
        %v2041 = vpop.permute.xlu0 %2040
        %2043 = vset.pattern.permute.xlu0 2
        %2044 = vperm.xlu0 %2043, %v1841
        %v2045 = vpop.permute.xlu0 %2044
        %2047 = vset.pattern.permute.xlu0 2
        %2048 = vperm.xlu0 %2047, %v1842
        %v2049 = vpop.permute.xlu0 %2048
        %v2051 = vmul.f32 %v2021, %v631
        %v2052 = vmul.f32 %v2025, %v633
        %v2053 = vmul.f32 %v2029, %v636
        %v2054 = vmul.f32 %v2033, %v638
        %v2055 = vmul.f32 %v2037, %v641
        %v2056 = vmul.f32 %v2041, %v643
        %v2057 = vmul.f32 %v2045, %v646
        %v2058 = vmul.f32 %v2049, %v648
        %2067 = vrot.lane.b32.xlu0 %v2051, 64
        %v2068 = vpop.permute.xlu0 %2067
        %2069 = vrot.lane.b32.xlu0 %v2052, 64
        %v2070 = vpop.permute.xlu0 %2069
        %2071 = vrot.lane.b32.xlu0 %v2053, 64
        %v2072 = vpop.permute.xlu0 %2071
        %2073 = vrot.lane.b32.xlu0 %v2054, 64
        %v2074 = vpop.permute.xlu0 %2073
        %2075 = vrot.lane.b32.xlu0 %v2055, 64
        %v2076 = vpop.permute.xlu0 %2075
        %2077 = vrot.lane.b32.xlu0 %v2056, 64
        %v2078 = vpop.permute.xlu0 %2077
        %2079 = vrot.lane.b32.xlu0 %v2057, 64
        %v2080 = vpop.permute.xlu0 %2079
        %2081 = vrot.lane.b32.xlu0 %v2058, 64
        %v2082 = vpop.permute.xlu0 %2081
        %v2091 = vadd.f32 %v2011, %v2068
        %v2092 = vadd.f32 %v2012, %v2070
        %v2093 = vadd.f32 %v2013, %v2072
        %v2094 = vadd.f32 %v2014, %v2074
        %v2095 = vadd.f32 %v2015, %v2076
        %v2096 = vadd.f32 %v2016, %v2078
        %v2097 = vadd.f32 %v2017, %v2080
        %v2098 = vadd.f32 %v2018, %v2082
        %2099 = vset.pattern.permute.xlu0 3
        %2100 = vperm.xlu0 %2099, %v1835
        %v2101 = vpop.permute.xlu0 %2100
        %2103 = vset.pattern.permute.xlu0 3
        %2104 = vperm.xlu0 %2103, %v1836
        %v2105 = vpop.permute.xlu0 %2104
        %2107 = vset.pattern.permute.xlu0 3
        %2108 = vperm.xlu0 %2107, %v1837
        %v2109 = vpop.permute.xlu0 %2108
        %2111 = vset.pattern.permute.xlu0 3
        %2112 = vperm.xlu0 %2111, %v1838
        %v2113 = vpop.permute.xlu0 %2112
        %2115 = vset.pattern.permute.xlu0 3
        %2116 = vperm.xlu0 %2115, %v1839
        %v2117 = vpop.permute.xlu0 %2116
        %2119 = vset.pattern.permute.xlu0 3
        %2120 = vperm.xlu0 %2119, %v1840
        %v2121 = vpop.permute.xlu0 %2120
        %2123 = vset.pattern.permute.xlu0 3
        %2124 = vperm.xlu0 %2123, %v1841
        %v2125 = vpop.permute.xlu0 %2124
        %2127 = vset.pattern.permute.xlu0 3
        %2128 = vperm.xlu0 %2127, %v1842
        %v2129 = vpop.permute.xlu0 %2128
        %v2131 = vmul.f32 %v2101, %v651
        %v2132 = vmul.f32 %v2105, %v653
        %v2133 = vmul.f32 %v2109, %v656
        %v2134 = vmul.f32 %v2113, %v658
        %v2135 = vmul.f32 %v2117, %v661
        %v2136 = vmul.f32 %v2121, %v663
        %v2137 = vmul.f32 %v2125, %v666
        %v2138 = vmul.f32 %v2129, %v668
        %2147 = vrot.lane.b32.xlu0 %v2131, 64
        %v2148 = vpop.permute.xlu0 %2147
        %2149 = vrot.lane.b32.xlu0 %v2132, 64
        %v2150 = vpop.permute.xlu0 %2149
        %2151 = vrot.lane.b32.xlu0 %v2133, 64
        %v2152 = vpop.permute.xlu0 %2151
        %2153 = vrot.lane.b32.xlu0 %v2134, 64
        %v2154 = vpop.permute.xlu0 %2153
        %2155 = vrot.lane.b32.xlu0 %v2135, 64
        %v2156 = vpop.permute.xlu0 %2155
        %2157 = vrot.lane.b32.xlu0 %v2136, 64
        %v2158 = vpop.permute.xlu0 %2157
        %2159 = vrot.lane.b32.xlu0 %v2137, 64
        %v2160 = vpop.permute.xlu0 %2159
        %2161 = vrot.lane.b32.xlu0 %v2138, 64
        %v2162 = vpop.permute.xlu0 %2161
        %v2171 = vadd.f32 %v2091, %v2148
        %v2172 = vadd.f32 %v2092, %v2150
        %v2173 = vadd.f32 %v2093, %v2152
        %v2174 = vadd.f32 %v2094, %v2154
        %v2175 = vadd.f32 %v2095, %v2156
        %v2176 = vadd.f32 %v2096, %v2158
        %v2177 = vadd.f32 %v2097, %v2160
        %v2178 = vadd.f32 %v2098, %v2162
        %v2179 = vmul.f32 %v631, %v679
        %v2180 = vmul.f32 %v633, %v681
        %v2181 = vmul.f32 %v636, %v683
        %v2182 = vmul.f32 %v638, %v685
        %v2183 = vmul.f32 %v641, %v687
        %v2184 = vmul.f32 %v643, %v689
        %v2185 = vmul.f32 %v646, %v691
        %v2186 = vmul.f32 %v648, %v693
        %v2187 = vsel %vm710, %v2179, 0.0
        %2188 = vadd.xlane.f32.xlu0 %v2187
        %v2189 = vpop.xlane.xlu0 %2188
        %v2190 = vsel %vm710, %v2180, 0.0
        %2191 = vadd.xlane.f32.xlu0 %v2190
        %v2192 = vpop.xlane.xlu0 %2191
        %v2193 = vsel %vm710, %v2181, 0.0
        %2194 = vadd.xlane.f32.xlu0 %v2193
        %v2195 = vpop.xlane.xlu0 %2194
        %v2196 = vsel %vm710, %v2182, 0.0
        %2197 = vadd.xlane.f32.xlu0 %v2196
        %v2198 = vpop.xlane.xlu0 %2197
        %v2199 = vsel %vm710, %v2183, 0.0
        %2200 = vadd.xlane.f32.xlu0 %v2199
        %v2201 = vpop.xlane.xlu0 %2200
        %v2202 = vsel %vm710, %v2184, 0.0
        %2203 = vadd.xlane.f32.xlu0 %v2202
        %v2204 = vpop.xlane.xlu0 %2203
        %v2205 = vsel %vm710, %v2185, 0.0
        %2206 = vadd.xlane.f32.xlu0 %v2205
        %v2207 = vpop.xlane.xlu0 %2206
        %v2208 = vsel %vm710, %v2186, 0.0
        %2209 = vadd.xlane.f32.xlu0 %v2208
        %v2210 = vpop.xlane.xlu0 %2209
        %v2211 = vmul.f32 %v631, %v744
        %v2212 = vmul.f32 %v633, %v746
        %v2213 = vmul.f32 %v636, %v748
        %v2214 = vmul.f32 %v638, %v750
        %v2215 = vmul.f32 %v641, %v752
        %v2216 = vmul.f32 %v643, %v754
        %v2217 = vmul.f32 %v646, %v756
        %v2218 = vmul.f32 %v648, %v758
        %v2219 = vsel %vm710, %v2211, 0.0
        %2220 = vadd.xlane.f32.xlu0 %v2219
        %v2221 = vpop.xlane.xlu0 %2220
        %v2222 = vsel %vm710, %v2212, 0.0
        %2223 = vadd.xlane.f32.xlu0 %v2222
        %v2224 = vpop.xlane.xlu0 %2223
        %v2225 = vsel %vm710, %v2213, 0.0
        %2226 = vadd.xlane.f32.xlu0 %v2225
        %v2227 = vpop.xlane.xlu0 %2226
        %v2228 = vsel %vm710, %v2214, 0.0
        %2229 = vadd.xlane.f32.xlu0 %v2228
        %v2230 = vpop.xlane.xlu0 %2229
        %v2231 = vsel %vm710, %v2215, 0.0
        %2232 = vadd.xlane.f32.xlu0 %v2231
        %v2233 = vpop.xlane.xlu0 %2232
        %v2234 = vsel %vm710, %v2216, 0.0
        %2235 = vadd.xlane.f32.xlu0 %v2234
        %v2236 = vpop.xlane.xlu0 %2235
        %v2237 = vsel %vm710, %v2217, 0.0
        %2238 = vadd.xlane.f32.xlu0 %v2237
        %v2239 = vpop.xlane.xlu0 %2238
        %v2240 = vsel %vm710, %v2218, 0.0
        %2241 = vadd.xlane.f32.xlu0 %v2240
        %v2242 = vpop.xlane.xlu0 %2241
        %v2243 = vmul.f32 %v631, %v808
        %v2244 = vmul.f32 %v633, %v810
        %v2245 = vmul.f32 %v636, %v812
        %v2246 = vmul.f32 %v638, %v814
        %v2247 = vmul.f32 %v641, %v816
        %v2248 = vmul.f32 %v643, %v818
        %v2249 = vmul.f32 %v646, %v820
        %v2250 = vmul.f32 %v648, %v822
        %v2251 = vsel %vm710, %v2243, 0.0
        %2252 = vadd.xlane.f32.xlu0 %v2251
        %v2253 = vpop.xlane.xlu0 %2252
        %v2254 = vsel %vm710, %v2244, 0.0
        %2255 = vadd.xlane.f32.xlu0 %v2254
        %v2256 = vpop.xlane.xlu0 %2255
        %v2257 = vsel %vm710, %v2245, 0.0
        %2258 = vadd.xlane.f32.xlu0 %v2257
        %v2259 = vpop.xlane.xlu0 %2258
        %v2260 = vsel %vm710, %v2246, 0.0
        %2261 = vadd.xlane.f32.xlu0 %v2260
        %v2262 = vpop.xlane.xlu0 %2261
        %v2263 = vsel %vm710, %v2247, 0.0
        %2264 = vadd.xlane.f32.xlu0 %v2263
        %v2265 = vpop.xlane.xlu0 %2264
        %v2266 = vsel %vm710, %v2248, 0.0
        %2267 = vadd.xlane.f32.xlu0 %v2266
        %v2268 = vpop.xlane.xlu0 %2267
        %v2269 = vsel %vm710, %v2249, 0.0
        %2270 = vadd.xlane.f32.xlu0 %v2269
        %v2271 = vpop.xlane.xlu0 %2270
        %v2272 = vsel %vm710, %v2250, 0.0
        %2273 = vadd.xlane.f32.xlu0 %v2272
        %v2274 = vpop.xlane.xlu0 %2273
        %v2275 = vmul.f32 %v631, %v872
        %v2276 = vmul.f32 %v633, %v874
        %v2277 = vmul.f32 %v636, %v876
        %v2278 = vmul.f32 %v638, %v878
        %v2279 = vmul.f32 %v641, %v880
        %v2280 = vmul.f32 %v643, %v882
        %v2281 = vmul.f32 %v646, %v884
        %v2282 = vmul.f32 %v648, %v886
        %v2283 = vsel %vm710, %v2275, 0.0
        %2284 = vadd.xlane.f32.xlu0 %v2283
        %v2285 = vpop.xlane.xlu0 %2284
        %v2286 = vsel %vm710, %v2276, 0.0
        %2287 = vadd.xlane.f32.xlu0 %v2286
        %v2288 = vpop.xlane.xlu0 %2287
        %v2289 = vsel %vm710, %v2277, 0.0
        %2290 = vadd.xlane.f32.xlu0 %v2289
        %v2291 = vpop.xlane.xlu0 %2290
        %v2292 = vsel %vm710, %v2278, 0.0
        %2293 = vadd.xlane.f32.xlu0 %v2292
        %v2294 = vpop.xlane.xlu0 %2293
        %v2295 = vsel %vm710, %v2279, 0.0
        %2296 = vadd.xlane.f32.xlu0 %v2295
        %v2297 = vpop.xlane.xlu0 %2296
        %v2298 = vsel %vm710, %v2280, 0.0
        %2299 = vadd.xlane.f32.xlu0 %v2298
        %v2300 = vpop.xlane.xlu0 %2299
        %v2301 = vsel %vm710, %v2281, 0.0
        %2302 = vadd.xlane.f32.xlu0 %v2301
        %v2303 = vpop.xlane.xlu0 %2302
        %v2304 = vsel %vm710, %v2282, 0.0
        %2305 = vadd.xlane.f32.xlu0 %v2304
        %v2306 = vpop.xlane.xlu0 %2305
        %v2307 = vsel %vm927, %v2189, %v2221
        %v2308 = vsel %vm927, %v2192, %v2224
        %v2309 = vsel %vm927, %v2195, %v2227
        %v2310 = vsel %vm927, %v2198, %v2230
        %v2311 = vsel %vm927, %v2201, %v2233
        %v2312 = vsel %vm927, %v2204, %v2236
        %v2313 = vsel %vm927, %v2207, %v2239
        %v2314 = vsel %vm927, %v2210, %v2242
        %v2315 = vsel %vm936, %v2307, %v2253
        %v2316 = vsel %vm936, %v2308, %v2256
        %v2317 = vsel %vm936, %v2309, %v2259
        %v2318 = vsel %vm936, %v2310, %v2262
        %v2319 = vsel %vm936, %v2311, %v2265
        %v2320 = vsel %vm936, %v2312, %v2268
        %v2321 = vsel %vm936, %v2313, %v2271
        %v2322 = vsel %vm936, %v2314, %v2274
        %v2323 = vsel %vm945, %v2315, %v2285
        %v2324 = vsel %vm945, %v2316, %v2288
        %v2325 = vsel %vm945, %v2317, %v2291
        %v2326 = vsel %vm945, %v2318, %v2294
        %v2327 = vsel %vm945, %v2319, %v2297
        %v2328 = vsel %vm945, %v2320, %v2300
        %v2329 = vsel %vm945, %v2321, %v2303
        %v2330 = vsel %vm945, %v2322, %v2306
        %v2331 = vsel %vm954, %v2323, -inf
        %2332 = vmax.xlane.f32.xlu0 %v2331
        %v2333 = vpop.xlane.xlu0 %2332
        %v2334 = vsel %vm954, %v2324, -inf
        %2335 = vmax.xlane.f32.xlu0 %v2334
        %v2336 = vpop.xlane.xlu0 %2335
        %v2337 = vsel %vm954, %v2325, -inf
        %2338 = vmax.xlane.f32.xlu0 %v2337
        %v2339 = vpop.xlane.xlu0 %2338
        %v2340 = vsel %vm954, %v2326, -inf
        %2341 = vmax.xlane.f32.xlu0 %v2340
        %v2342 = vpop.xlane.xlu0 %2341
        %v2343 = vsel %vm954, %v2327, -inf
        %2344 = vmax.xlane.f32.xlu0 %v2343
        %v2345 = vpop.xlane.xlu0 %2344
        %v2346 = vsel %vm954, %v2328, -inf
        %2347 = vmax.xlane.f32.xlu0 %v2346
        %v2348 = vpop.xlane.xlu0 %2347
        %v2349 = vsel %vm954, %v2329, -inf
        %2350 = vmax.xlane.f32.xlu0 %v2349
        %v2351 = vpop.xlane.xlu0 %2350
        %v2352 = vsel %vm954, %v2330, -inf
        %2353 = vmax.xlane.f32.xlu0 %v2352
        %v2354 = vpop.xlane.xlu0 %2353
        %v2355 = vsub.f32 %v2323, %v2333
        %v2356 = vsub.f32 %v2324, %v2336
        %v2357 = vsub.f32 %v2325, %v2339
        %v2358 = vsub.f32 %v2326, %v2342
        %v2359 = vsub.f32 %v2327, %v2345
        %v2360 = vsub.f32 %v2328, %v2348
        %v2361 = vsub.f32 %v2329, %v2351
        %v2362 = vsub.f32 %v2330, %v2354
        %v2363 = vmul.f32 %v2355, 1.442695
        %v2364 = vpow.pop %v2363
        %v2365 = vmul.f32 %v2356, 1.442695
        %v2366 = vpow.pop %v2365
        %v2367 = vmul.f32 %v2357, 1.442695
        %v2368 = vpow.pop %v2367
        %v2369 = vmul.f32 %v2358, 1.442695
        %v2370 = vpow.pop %v2369
        %v2371 = vmul.f32 %v2359, 1.442695
        %v2372 = vpow.pop %v2371
        %v2373 = vmul.f32 %v2360, 1.442695
        %v2374 = vpow.pop %v2373
        %v2375 = vmul.f32 %v2361, 1.442695
        %v2376 = vpow.pop %v2375
        %v2377 = vmul.f32 %v2362, 1.442695
        %v2378 = vpow.pop %v2377
        %v2379 = vsel %vm954, %v2364, 0.0
        %2380 = vadd.xlane.f32.xlu0 %v2379
        %v2381 = vpop.xlane.xlu0 %2380
        %v2382 = vsel %vm954, %v2366, 0.0
        %2383 = vadd.xlane.f32.xlu0 %v2382
        %v2384 = vpop.xlane.xlu0 %2383
        %v2385 = vsel %vm954, %v2368, 0.0
        %2386 = vadd.xlane.f32.xlu0 %v2385
        %v2387 = vpop.xlane.xlu0 %2386
        %v2388 = vsel %vm954, %v2370, 0.0
        %2389 = vadd.xlane.f32.xlu0 %v2388
        %v2390 = vpop.xlane.xlu0 %2389
        %v2391 = vsel %vm954, %v2372, 0.0
        %2392 = vadd.xlane.f32.xlu0 %v2391
        %v2393 = vpop.xlane.xlu0 %2392
        %v2394 = vsel %vm954, %v2374, 0.0
        %2395 = vadd.xlane.f32.xlu0 %v2394
        %v2396 = vpop.xlane.xlu0 %2395
        %v2397 = vsel %vm954, %v2376, 0.0
        %2398 = vadd.xlane.f32.xlu0 %v2397
        %v2399 = vpop.xlane.xlu0 %2398
        %v2400 = vsel %vm954, %v2378, 0.0
        %2401 = vadd.xlane.f32.xlu0 %v2400
        %v2402 = vpop.xlane.xlu0 %2401
        %v2403 = vrcp.pop %v2381
        %v2404 = vmul.f32 %v2381, %v2403
        %v2405 = vsub.f32 1.0, %v2404
        %v2406 = vmul.f32 %v2403, %v2405
        %v2407 = vadd.f32 %v2403, %v2406
        %vm2408 = vweird.f32 %v2381
        %vm2409 = vweird.f32 %v2403
        %vm2410 = vmor %vm2408, %vm2409
        %v2411 = vsel %vm2410, %v2403, %v2407
        %v2412 = vand.u32 2147483647, %v2381
        %vm2413 = vcmp.eq.f32.partialorder %v2412, 8.507059e+37
        %v2414 = vand.u32 %v2381, 2147483648
        %v2415 = vor.u32 1.1754944e-38, %v2414
        %v2416 = vsel %vm2413, %v2415, %v2411
        %v2417 = vmul.f32 1.0, %v2416
        %v2418 = vrcp.pop %v2384
        %v2419 = vmul.f32 %v2384, %v2418
        %v2420 = vsub.f32 1.0, %v2419
        %v2421 = vmul.f32 %v2418, %v2420
        %v2422 = vadd.f32 %v2418, %v2421
        %vm2423 = vweird.f32 %v2384
        %vm2424 = vweird.f32 %v2418
        %vm2425 = vmor %vm2423, %vm2424
        %v2426 = vsel %vm2425, %v2418, %v2422
        %v2427 = vand.u32 2147483647, %v2384
        %vm2428 = vcmp.eq.f32.partialorder %v2427, 8.507059e+37
        %v2429 = vand.u32 %v2384, 2147483648
        %v2430 = vor.u32 1.1754944e-38, %v2429
        %v2431 = vsel %vm2428, %v2430, %v2426
        %v2432 = vmul.f32 1.0, %v2431
        %v2433 = vrcp.pop %v2387
        %v2434 = vmul.f32 %v2387, %v2433
        %v2435 = vsub.f32 1.0, %v2434
        %v2436 = vmul.f32 %v2433, %v2435
        %v2437 = vadd.f32 %v2433, %v2436
        %vm2438 = vweird.f32 %v2387
        %vm2439 = vweird.f32 %v2433
        %vm2440 = vmor %vm2438, %vm2439
        %v2441 = vsel %vm2440, %v2433, %v2437
        %v2442 = vand.u32 2147483647, %v2387
        %vm2443 = vcmp.eq.f32.partialorder %v2442, 8.507059e+37
        %v2444 = vand.u32 %v2387, 2147483648
        %v2445 = vor.u32 1.1754944e-38, %v2444
        %v2446 = vsel %vm2443, %v2445, %v2441
        %v2447 = vmul.f32 1.0, %v2446
        %v2448 = vrcp.pop %v2390
        %v2449 = vmul.f32 %v2390, %v2448
        %v2450 = vsub.f32 1.0, %v2449
        %v2451 = vmul.f32 %v2448, %v2450
        %v2452 = vadd.f32 %v2448, %v2451
        %vm2453 = vweird.f32 %v2390
        %vm2454 = vweird.f32 %v2448
        %vm2455 = vmor %vm2453, %vm2454
        %v2456 = vsel %vm2455, %v2448, %v2452
        %v2457 = vand.u32 2147483647, %v2390
        %vm2458 = vcmp.eq.f32.partialorder %v2457, 8.507059e+37
        %v2459 = vand.u32 %v2390, 2147483648
        %v2460 = vor.u32 1.1754944e-38, %v2459
        %v2461 = vsel %vm2458, %v2460, %v2456
        %v2462 = vmul.f32 1.0, %v2461
        %v2463 = vrcp.pop %v2393
        %v2464 = vmul.f32 %v2393, %v2463
        %v2465 = vsub.f32 1.0, %v2464
        %v2466 = vmul.f32 %v2463, %v2465
        %v2467 = vadd.f32 %v2463, %v2466
        %vm2468 = vweird.f32 %v2393
        %vm2469 = vweird.f32 %v2463
        %vm2470 = vmor %vm2468, %vm2469
        %v2471 = vsel %vm2470, %v2463, %v2467
        %v2472 = vand.u32 2147483647, %v2393
        %vm2473 = vcmp.eq.f32.partialorder %v2472, 8.507059e+37
        %v2474 = vand.u32 %v2393, 2147483648
        %v2475 = vor.u32 1.1754944e-38, %v2474
        %v2476 = vsel %vm2473, %v2475, %v2471
        %v2477 = vmul.f32 1.0, %v2476
        %v2478 = vrcp.pop %v2396
        %v2479 = vmul.f32 %v2396, %v2478
        %v2480 = vsub.f32 1.0, %v2479
        %v2481 = vmul.f32 %v2478, %v2480
        %v2482 = vadd.f32 %v2478, %v2481
        %vm2483 = vweird.f32 %v2396
        %vm2484 = vweird.f32 %v2478
        %vm2485 = vmor %vm2483, %vm2484
        %v2486 = vsel %vm2485, %v2478, %v2482
        %v2487 = vand.u32 2147483647, %v2396
        %vm2488 = vcmp.eq.f32.partialorder %v2487, 8.507059e+37
        %v2489 = vand.u32 %v2396, 2147483648
        %v2490 = vor.u32 1.1754944e-38, %v2489
        %v2491 = vsel %vm2488, %v2490, %v2486
        %v2492 = vmul.f32 1.0, %v2491
        %v2493 = vrcp.pop %v2399
        %v2494 = vmul.f32 %v2399, %v2493
        %v2495 = vsub.f32 1.0, %v2494
        %v2496 = vmul.f32 %v2493, %v2495
        %v2497 = vadd.f32 %v2493, %v2496
        %vm2498 = vweird.f32 %v2399
        %vm2499 = vweird.f32 %v2493
        %vm2500 = vmor %vm2498, %vm2499
        %v2501 = vsel %vm2500, %v2493, %v2497
        %v2502 = vand.u32 2147483647, %v2399
        %vm2503 = vcmp.eq.f32.partialorder %v2502, 8.507059e+37
        %v2504 = vand.u32 %v2399, 2147483648
        %v2505 = vor.u32 1.1754944e-38, %v2504
        %v2506 = vsel %vm2503, %v2505, %v2501
        %v2507 = vmul.f32 1.0, %v2506
        %v2508 = vrcp.pop %v2402
        %v2509 = vmul.f32 %v2402, %v2508
        %v2510 = vsub.f32 1.0, %v2509
        %v2511 = vmul.f32 %v2508, %v2510
        %v2512 = vadd.f32 %v2508, %v2511
        %vm2513 = vweird.f32 %v2402
        %vm2514 = vweird.f32 %v2508
        %vm2515 = vmor %vm2513, %vm2514
        %v2516 = vsel %vm2515, %v2508, %v2512
        %v2517 = vand.u32 2147483647, %v2402
        %vm2518 = vcmp.eq.f32.partialorder %v2517, 8.507059e+37
        %v2519 = vand.u32 %v2402, 2147483648
        %v2520 = vor.u32 1.1754944e-38, %v2519
        %v2521 = vsel %vm2518, %v2520, %v2516
        %v2522 = vmul.f32 1.0, %v2521
        %v2523 = vmul.f32 %v2364, %v2417
        %v2524 = vmul.f32 %v2366, %v2432
        %v2525 = vmul.f32 %v2368, %v2447
        %v2526 = vmul.f32 %v2370, %v2462
        %v2527 = vmul.f32 %v2372, %v2477
        %v2528 = vmul.f32 %v2374, %v2492
        %v2529 = vmul.f32 %v2376, %v2507
        %v2530 = vmul.f32 %v2378, %v2522
        %v2531 = vunpack.c.l.bf16 %v401
        %v2532 = vunpack.c.l.bf16 %v402
        %v2533 = vunpack.c.l.bf16 %v403
        %v2534 = vunpack.c.l.bf16 %v404
        %v2535 = vunpack.c.l.bf16 %v405
        %v2536 = vunpack.c.l.bf16 %v406
        %v2537 = vunpack.c.l.bf16 %v407
        %v2538 = vunpack.c.l.bf16 %v408
        %2540 = vset.pattern.permute.xlu0 0
        %2541 = vperm.xlu0 %2540, %v2523
        %v2542 = vpop.permute.xlu0 %2541
        %2545 = vset.pattern.permute.xlu0 0
        %2546 = vperm.xlu0 %2545, %v2524
        %v2547 = vpop.permute.xlu0 %2546
        %2550 = vset.pattern.permute.xlu0 0
        %2551 = vperm.xlu0 %2550, %v2525
        %v2552 = vpop.permute.xlu0 %2551
        %2555 = vset.pattern.permute.xlu0 0
        %2556 = vperm.xlu0 %2555, %v2526
        %v2557 = vpop.permute.xlu0 %2556
        %2560 = vset.pattern.permute.xlu0 0
        %2561 = vperm.xlu0 %2560, %v2527
        %v2562 = vpop.permute.xlu0 %2561
        %2565 = vset.pattern.permute.xlu0 0
        %2566 = vperm.xlu0 %2565, %v2528
        %v2567 = vpop.permute.xlu0 %2566
        %2570 = vset.pattern.permute.xlu0 0
        %2571 = vperm.xlu0 %2570, %v2529
        %v2572 = vpop.permute.xlu0 %2571
        %2575 = vset.pattern.permute.xlu0 0
        %2576 = vperm.xlu0 %2575, %v2530
        %v2577 = vpop.permute.xlu0 %2576
        %v2579 = vmul.f32 %v2542, %v591
        %v2580 = vmul.f32 %v2547, %v593
        %v2581 = vmul.f32 %v2552, %v596
        %v2582 = vmul.f32 %v2557, %v598
        %v2583 = vmul.f32 %v2562, %v601
        %v2584 = vmul.f32 %v2567, %v603
        %v2585 = vmul.f32 %v2572, %v606
        %v2586 = vmul.f32 %v2577, %v608
        %2595 = vrot.lane.b32.xlu0 %v2579, 64
        %v2596 = vpop.permute.xlu0 %2595
        %2597 = vrot.lane.b32.xlu0 %v2580, 64
        %v2598 = vpop.permute.xlu0 %2597
        %2599 = vrot.lane.b32.xlu0 %v2581, 64
        %v2600 = vpop.permute.xlu0 %2599
        %2601 = vrot.lane.b32.xlu0 %v2582, 64
        %v2602 = vpop.permute.xlu0 %2601
        %2603 = vrot.lane.b32.xlu0 %v2583, 64
        %v2604 = vpop.permute.xlu0 %2603
        %2605 = vrot.lane.b32.xlu0 %v2584, 64
        %v2606 = vpop.permute.xlu0 %2605
        %2607 = vrot.lane.b32.xlu0 %v2585, 64
        %v2608 = vpop.permute.xlu0 %2607
        %2609 = vrot.lane.b32.xlu0 %v2586, 64
        %v2610 = vpop.permute.xlu0 %2609
        %v2619 = vadd.f32 %v2531, %v2596
        %v2620 = vadd.f32 %v2532, %v2598
        %v2621 = vadd.f32 %v2533, %v2600
        %v2622 = vadd.f32 %v2534, %v2602
        %v2623 = vadd.f32 %v2535, %v2604
        %v2624 = vadd.f32 %v2536, %v2606
        %v2625 = vadd.f32 %v2537, %v2608
        %v2626 = vadd.f32 %v2538, %v2610
        %2627 = vset.pattern.permute.xlu0 1
        %2628 = vperm.xlu0 %2627, %v2523
        %v2629 = vpop.permute.xlu0 %2628
        %2631 = vset.pattern.permute.xlu0 1
        %2632 = vperm.xlu0 %2631, %v2524
        %v2633 = vpop.permute.xlu0 %2632
        %2635 = vset.pattern.permute.xlu0 1
        %2636 = vperm.xlu0 %2635, %v2525
        %v2637 = vpop.permute.xlu0 %2636
        %2639 = vset.pattern.permute.xlu0 1
        %2640 = vperm.xlu0 %2639, %v2526
        %v2641 = vpop.permute.xlu0 %2640
        %2643 = vset.pattern.permute.xlu0 1
        %2644 = vperm.xlu0 %2643, %v2527
        %v2645 = vpop.permute.xlu0 %2644
        %2647 = vset.pattern.permute.xlu0 1
        %2648 = vperm.xlu0 %2647, %v2528
        %v2649 = vpop.permute.xlu0 %2648
        %2651 = vset.pattern.permute.xlu0 1
        %2652 = vperm.xlu0 %2651, %v2529
        %v2653 = vpop.permute.xlu0 %2652
        %2655 = vset.pattern.permute.xlu0 1
        %2656 = vperm.xlu0 %2655, %v2530
        %v2657 = vpop.permute.xlu0 %2656
        %v2659 = vmul.f32 %v2629, %v611
        %v2660 = vmul.f32 %v2633, %v613
        %v2661 = vmul.f32 %v2637, %v616
        %v2662 = vmul.f32 %v2641, %v618
        %v2663 = vmul.f32 %v2645, %v621
        %v2664 = vmul.f32 %v2649, %v623
        %v2665 = vmul.f32 %v2653, %v626
        %v2666 = vmul.f32 %v2657, %v628
        %2675 = vrot.lane.b32.xlu0 %v2659, 64
        %v2676 = vpop.permute.xlu0 %2675
        %2677 = vrot.lane.b32.xlu0 %v2660, 64
        %v2678 = vpop.permute.xlu0 %2677
        %2679 = vrot.lane.b32.xlu0 %v2661, 64
        %v2680 = vpop.permute.xlu0 %2679
        %2681 = vrot.lane.b32.xlu0 %v2662, 64
        %v2682 = vpop.permute.xlu0 %2681
        %2683 = vrot.lane.b32.xlu0 %v2663, 64
        %v2684 = vpop.permute.xlu0 %2683
        %2685 = vrot.lane.b32.xlu0 %v2664, 64
        %v2686 = vpop.permute.xlu0 %2685
        %2687 = vrot.lane.b32.xlu0 %v2665, 64
        %v2688 = vpop.permute.xlu0 %2687
        %2689 = vrot.lane.b32.xlu0 %v2666, 64
        %v2690 = vpop.permute.xlu0 %2689
        %v2699 = vadd.f32 %v2619, %v2676
        %v2700 = vadd.f32 %v2620, %v2678
        %v2701 = vadd.f32 %v2621, %v2680
        %v2702 = vadd.f32 %v2622, %v2682
        %v2703 = vadd.f32 %v2623, %v2684
        %v2704 = vadd.f32 %v2624, %v2686
        %v2705 = vadd.f32 %v2625, %v2688
        %v2706 = vadd.f32 %v2626, %v2690
        %2707 = vset.pattern.permute.xlu0 2
        %2708 = vperm.xlu0 %2707, %v2523
        %v2709 = vpop.permute.xlu0 %2708
        %2711 = vset.pattern.permute.xlu0 2
        %2712 = vperm.xlu0 %2711, %v2524
        %v2713 = vpop.permute.xlu0 %2712
        %2715 = vset.pattern.permute.xlu0 2
        %2716 = vperm.xlu0 %2715, %v2525
        %v2717 = vpop.permute.xlu0 %2716
        %2719 = vset.pattern.permute.xlu0 2
        %2720 = vperm.xlu0 %2719, %v2526
        %v2721 = vpop.permute.xlu0 %2720
        %2723 = vset.pattern.permute.xlu0 2
        %2724 = vperm.xlu0 %2723, %v2527
        %v2725 = vpop.permute.xlu0 %2724
        %2727 = vset.pattern.permute.xlu0 2
        %2728 = vperm.xlu0 %2727, %v2528
        %v2729 = vpop.permute.xlu0 %2728
        %2731 = vset.pattern.permute.xlu0 2
        %2732 = vperm.xlu0 %2731, %v2529
        %v2733 = vpop.permute.xlu0 %2732
        %2735 = vset.pattern.permute.xlu0 2
        %2736 = vperm.xlu0 %2735, %v2530
        %v2737 = vpop.permute.xlu0 %2736
        %v2739 = vmul.f32 %v2709, %v631
        %v2740 = vmul.f32 %v2713, %v633
        %v2741 = vmul.f32 %v2717, %v636
        %v2742 = vmul.f32 %v2721, %v638
        %v2743 = vmul.f32 %v2725, %v641
        %v2744 = vmul.f32 %v2729, %v643
        %v2745 = vmul.f32 %v2733, %v646
        %v2746 = vmul.f32 %v2737, %v648
        %2755 = vrot.lane.b32.xlu0 %v2739, 64
        %v2756 = vpop.permute.xlu0 %2755
        %2757 = vrot.lane.b32.xlu0 %v2740, 64
        %v2758 = vpop.permute.xlu0 %2757
        %2759 = vrot.lane.b32.xlu0 %v2741, 64
        %v2760 = vpop.permute.xlu0 %2759
        %2761 = vrot.lane.b32.xlu0 %v2742, 64
        %v2762 = vpop.permute.xlu0 %2761
        %2763 = vrot.lane.b32.xlu0 %v2743, 64
        %v2764 = vpop.permute.xlu0 %2763
        %2765 = vrot.lane.b32.xlu0 %v2744, 64
        %v2766 = vpop.permute.xlu0 %2765
        %2767 = vrot.lane.b32.xlu0 %v2745, 64
        %v2768 = vpop.permute.xlu0 %2767
        %2769 = vrot.lane.b32.xlu0 %v2746, 64
        %v2770 = vpop.permute.xlu0 %2769
        %v2779 = vadd.f32 %v2699, %v2756
        %v2780 = vadd.f32 %v2700, %v2758
        %v2781 = vadd.f32 %v2701, %v2760
        %v2782 = vadd.f32 %v2702, %v2762
        %v2783 = vadd.f32 %v2703, %v2764
        %v2784 = vadd.f32 %v2704, %v2766
        %v2785 = vadd.f32 %v2705, %v2768
        %v2786 = vadd.f32 %v2706, %v2770
        %2787 = vset.pattern.permute.xlu0 3
        %2788 = vperm.xlu0 %2787, %v2523
        %v2789 = vpop.permute.xlu0 %2788
        %2791 = vset.pattern.permute.xlu0 3
        %2792 = vperm.xlu0 %2791, %v2524
        %v2793 = vpop.permute.xlu0 %2792
        %2795 = vset.pattern.permute.xlu0 3
        %2796 = vperm.xlu0 %2795, %v2525
        %v2797 = vpop.permute.xlu0 %2796
        %2799 = vset.pattern.permute.xlu0 3
        %2800 = vperm.xlu0 %2799, %v2526
        %v2801 = vpop.permute.xlu0 %2800
        %2803 = vset.pattern.permute.xlu0 3
        %2804 = vperm.xlu0 %2803, %v2527
        %v2805 = vpop.permute.xlu0 %2804
        %2807 = vset.pattern.permute.xlu0 3
        %2808 = vperm.xlu0 %2807, %v2528
        %v2809 = vpop.permute.xlu0 %2808
        %2811 = vset.pattern.permute.xlu0 3
        %2812 = vperm.xlu0 %2811, %v2529
        %v2813 = vpop.permute.xlu0 %2812
        %2815 = vset.pattern.permute.xlu0 3
        %2816 = vperm.xlu0 %2815, %v2530
        %v2817 = vpop.permute.xlu0 %2816
        %v2819 = vmul.f32 %v2789, %v651
        %v2820 = vmul.f32 %v2793, %v653
        %v2821 = vmul.f32 %v2797, %v656
        %v2822 = vmul.f32 %v2801, %v658
        %v2823 = vmul.f32 %v2805, %v661
        %v2824 = vmul.f32 %v2809, %v663
        %v2825 = vmul.f32 %v2813, %v666
        %v2826 = vmul.f32 %v2817, %v668
        %2835 = vrot.lane.b32.xlu0 %v2819, 64
        %v2836 = vpop.permute.xlu0 %2835
        %2837 = vrot.lane.b32.xlu0 %v2820, 64
        %v2838 = vpop.permute.xlu0 %2837
        %2839 = vrot.lane.b32.xlu0 %v2821, 64
        %v2840 = vpop.permute.xlu0 %2839
        %2841 = vrot.lane.b32.xlu0 %v2822, 64
        %v2842 = vpop.permute.xlu0 %2841
        %2843 = vrot.lane.b32.xlu0 %v2823, 64
        %v2844 = vpop.permute.xlu0 %2843
        %2845 = vrot.lane.b32.xlu0 %v2824, 64
        %v2846 = vpop.permute.xlu0 %2845
        %2847 = vrot.lane.b32.xlu0 %v2825, 64
        %v2848 = vpop.permute.xlu0 %2847
        %2849 = vrot.lane.b32.xlu0 %v2826, 64
        %v2850 = vpop.permute.xlu0 %2849
        %v2859 = vadd.f32 %v2779, %v2836
        %v2860 = vadd.f32 %v2780, %v2838
        %v2861 = vadd.f32 %v2781, %v2840
        %v2862 = vadd.f32 %v2782, %v2842
        %v2863 = vadd.f32 %v2783, %v2844
        %v2864 = vadd.f32 %v2784, %v2846
        %v2865 = vadd.f32 %v2785, %v2848
        %v2866 = vadd.f32 %v2786, %v2850
        %v2867 = vmul.f32 %v651, %v679
        %v2868 = vmul.f32 %v653, %v681
        %v2869 = vmul.f32 %v656, %v683
        %v2870 = vmul.f32 %v658, %v685
        %v2871 = vmul.f32 %v661, %v687
        %v2872 = vmul.f32 %v663, %v689
        %v2873 = vmul.f32 %v666, %v691
        %v2874 = vmul.f32 %v668, %v693
        %v2875 = vsel %vm710, %v2867, 0.0
        %2876 = vadd.xlane.f32.xlu0 %v2875
        %v2877 = vpop.xlane.xlu0 %2876
        %v2878 = vsel %vm710, %v2868, 0.0
        %2879 = vadd.xlane.f32.xlu0 %v2878
        %v2880 = vpop.xlane.xlu0 %2879
        %v2881 = vsel %vm710, %v2869, 0.0
        %2882 = vadd.xlane.f32.xlu0 %v2881
        %v2883 = vpop.xlane.xlu0 %2882
        %v2884 = vsel %vm710, %v2870, 0.0
        %2885 = vadd.xlane.f32.xlu0 %v2884
        %v2886 = vpop.xlane.xlu0 %2885
        %v2887 = vsel %vm710, %v2871, 0.0
        %2888 = vadd.xlane.f32.xlu0 %v2887
        %v2889 = vpop.xlane.xlu0 %2888
        %v2890 = vsel %vm710, %v2872, 0.0
        %2891 = vadd.xlane.f32.xlu0 %v2890
        %v2892 = vpop.xlane.xlu0 %2891
        %v2893 = vsel %vm710, %v2873, 0.0
        %2894 = vadd.xlane.f32.xlu0 %v2893
        %v2895 = vpop.xlane.xlu0 %2894
        %v2896 = vsel %vm710, %v2874, 0.0
        %2897 = vadd.xlane.f32.xlu0 %v2896
        %v2898 = vpop.xlane.xlu0 %2897
        %v2899 = vmul.f32 %v651, %v744
        %v2900 = vmul.f32 %v653, %v746
        %v2901 = vmul.f32 %v656, %v748
        %v2902 = vmul.f32 %v658, %v750
        %v2903 = vmul.f32 %v661, %v752
        %v2904 = vmul.f32 %v663, %v754
        %v2905 = vmul.f32 %v666, %v756
        %v2906 = vmul.f32 %v668, %v758
        %v2907 = vsel %vm710, %v2899, 0.0
        %2908 = vadd.xlane.f32.xlu0 %v2907
        %v2909 = vpop.xlane.xlu0 %2908
        %v2910 = vsel %vm710, %v2900, 0.0
        %2911 = vadd.xlane.f32.xlu0 %v2910
        %v2912 = vpop.xlane.xlu0 %2911
        %v2913 = vsel %vm710, %v2901, 0.0
        %2914 = vadd.xlane.f32.xlu0 %v2913
        %v2915 = vpop.xlane.xlu0 %2914
        %v2916 = vsel %vm710, %v2902, 0.0
        %2917 = vadd.xlane.f32.xlu0 %v2916
        %v2918 = vpop.xlane.xlu0 %2917
        %v2919 = vsel %vm710, %v2903, 0.0
        %2920 = vadd.xlane.f32.xlu0 %v2919
        %v2921 = vpop.xlane.xlu0 %2920
        %v2922 = vsel %vm710, %v2904, 0.0
        %2923 = vadd.xlane.f32.xlu0 %v2922
        %v2924 = vpop.xlane.xlu0 %2923
        %v2925 = vsel %vm710, %v2905, 0.0
        %2926 = vadd.xlane.f32.xlu0 %v2925
        %v2927 = vpop.xlane.xlu0 %2926
        %v2928 = vsel %vm710, %v2906, 0.0
        %2929 = vadd.xlane.f32.xlu0 %v2928
        %v2930 = vpop.xlane.xlu0 %2929
        %v2931 = vmul.f32 %v651, %v808
        %v2932 = vmul.f32 %v653, %v810
        %v2933 = vmul.f32 %v656, %v812
        %v2934 = vmul.f32 %v658, %v814
        %v2935 = vmul.f32 %v661, %v816
        %v2936 = vmul.f32 %v663, %v818
        %v2937 = vmul.f32 %v666, %v820
        %v2938 = vmul.f32 %v668, %v822
        %v2939 = vsel %vm710, %v2931, 0.0
        %2940 = vadd.xlane.f32.xlu0 %v2939
        %v2941 = vpop.xlane.xlu0 %2940
        %v2942 = vsel %vm710, %v2932, 0.0
        %2943 = vadd.xlane.f32.xlu0 %v2942
        %v2944 = vpop.xlane.xlu0 %2943
        %v2945 = vsel %vm710, %v2933, 0.0
        %2946 = vadd.xlane.f32.xlu0 %v2945
        %v2947 = vpop.xlane.xlu0 %2946
        %v2948 = vsel %vm710, %v2934, 0.0
        %2949 = vadd.xlane.f32.xlu0 %v2948
        %v2950 = vpop.xlane.xlu0 %2949
        %v2951 = vsel %vm710, %v2935, 0.0
        %2952 = vadd.xlane.f32.xlu0 %v2951
        %v2953 = vpop.xlane.xlu0 %2952
        %v2954 = vsel %vm710, %v2936, 0.0
        %2955 = vadd.xlane.f32.xlu0 %v2954
        %v2956 = vpop.xlane.xlu0 %2955
        %v2957 = vsel %vm710, %v2937, 0.0
        %2958 = vadd.xlane.f32.xlu0 %v2957
        %v2959 = vpop.xlane.xlu0 %2958
        %v2960 = vsel %vm710, %v2938, 0.0
        %2961 = vadd.xlane.f32.xlu0 %v2960
        %v2962 = vpop.xlane.xlu0 %2961
        %v2963 = vmul.f32 %v651, %v872
        %v2964 = vmul.f32 %v653, %v874
        %v2965 = vmul.f32 %v656, %v876
        %v2966 = vmul.f32 %v658, %v878
        %v2967 = vmul.f32 %v661, %v880
        %v2968 = vmul.f32 %v663, %v882
        %v2969 = vmul.f32 %v666, %v884
        %v2970 = vmul.f32 %v668, %v886
        %v2971 = vsel %vm710, %v2963, 0.0
        %2972 = vadd.xlane.f32.xlu0 %v2971
        %v2973 = vpop.xlane.xlu0 %2972
        %v2974 = vsel %vm710, %v2964, 0.0
        %2975 = vadd.xlane.f32.xlu0 %v2974
        %v2976 = vpop.xlane.xlu0 %2975
        %v2977 = vsel %vm710, %v2965, 0.0
        %2978 = vadd.xlane.f32.xlu0 %v2977
        %v2979 = vpop.xlane.xlu0 %2978
        %v2980 = vsel %vm710, %v2966, 0.0
        %2981 = vadd.xlane.f32.xlu0 %v2980
        %v2982 = vpop.xlane.xlu0 %2981
        %v2983 = vsel %vm710, %v2967, 0.0
        %2984 = vadd.xlane.f32.xlu0 %v2983
        %v2985 = vpop.xlane.xlu0 %2984
        %v2986 = vsel %vm710, %v2968, 0.0
        %2987 = vadd.xlane.f32.xlu0 %v2986
        %v2988 = vpop.xlane.xlu0 %2987
        %v2989 = vsel %vm710, %v2969, 0.0
        %2990 = vadd.xlane.f32.xlu0 %v2989
        %v2991 = vpop.xlane.xlu0 %2990
        %v2992 = vsel %vm710, %v2970, 0.0
        %2993 = vadd.xlane.f32.xlu0 %v2992
        %v2994 = vpop.xlane.xlu0 %2993
        %v2995 = vsel %vm927, %v2877, %v2909
        %v2996 = vsel %vm927, %v2880, %v2912
        %v2997 = vsel %vm927, %v2883, %v2915
        %v2998 = vsel %vm927, %v2886, %v2918
        %v2999 = vsel %vm927, %v2889, %v2921
        %v3000 = vsel %vm927, %v2892, %v2924
        %v3001 = vsel %vm927, %v2895, %v2927
        %v3002 = vsel %vm927, %v2898, %v2930
        %v3003 = vsel %vm936, %v2995, %v2941
        %v3004 = vsel %vm936, %v2996, %v2944
        %v3005 = vsel %vm936, %v2997, %v2947
        %v3006 = vsel %vm936, %v2998, %v2950
        %v3007 = vsel %vm936, %v2999, %v2953
        %v3008 = vsel %vm936, %v3000, %v2956
        %v3009 = vsel %vm936, %v3001, %v2959
        %v3010 = vsel %vm936, %v3002, %v2962
        %v3011 = vsel %vm945, %v3003, %v2973
        %v3012 = vsel %vm945, %v3004, %v2976
        %v3013 = vsel %vm945, %v3005, %v2979
        %v3014 = vsel %vm945, %v3006, %v2982
        %v3015 = vsel %vm945, %v3007, %v2985
        %v3016 = vsel %vm945, %v3008, %v2988
        %v3017 = vsel %vm945, %v3009, %v2991
        %v3018 = vsel %vm945, %v3010, %v2994
        %v3019 = vsel %vm954, %v3011, -inf
        %3020 = vmax.xlane.f32.xlu0 %v3019
        %v3021 = vpop.xlane.xlu0 %3020
        %v3022 = vsel %vm954, %v3012, -inf
        %3023 = vmax.xlane.f32.xlu0 %v3022
        %v3024 = vpop.xlane.xlu0 %3023
        %v3025 = vsel %vm954, %v3013, -inf
        %3026 = vmax.xlane.f32.xlu0 %v3025
        %v3027 = vpop.xlane.xlu0 %3026
        %v3028 = vsel %vm954, %v3014, -inf
        %3029 = vmax.xlane.f32.xlu0 %v3028
        %v3030 = vpop.xlane.xlu0 %3029
        %v3031 = vsel %vm954, %v3015, -inf
        %3032 = vmax.xlane.f32.xlu0 %v3031
        %v3033 = vpop.xlane.xlu0 %3032
        %v3034 = vsel %vm954, %v3016, -inf
        %3035 = vmax.xlane.f32.xlu0 %v3034
        %v3036 = vpop.xlane.xlu0 %3035
        %v3037 = vsel %vm954, %v3017, -inf
        %3038 = vmax.xlane.f32.xlu0 %v3037
        %v3039 = vpop.xlane.xlu0 %3038
        %v3040 = vsel %vm954, %v3018, -inf
        %3041 = vmax.xlane.f32.xlu0 %v3040
        %v3042 = vpop.xlane.xlu0 %3041
        %v3043 = vsub.f32 %v3011, %v3021
        %v3044 = vsub.f32 %v3012, %v3024
        %v3045 = vsub.f32 %v3013, %v3027
        %v3046 = vsub.f32 %v3014, %v3030
        %v3047 = vsub.f32 %v3015, %v3033
        %v3048 = vsub.f32 %v3016, %v3036
        %v3049 = vsub.f32 %v3017, %v3039
        %v3050 = vsub.f32 %v3018, %v3042
        %v3051 = vmul.f32 %v3043, 1.442695
        %v3052 = vpow.pop %v3051
        %v3053 = vmul.f32 %v3044, 1.442695
        %v3054 = vpow.pop %v3053
        %v3055 = vmul.f32 %v3045, 1.442695
        %v3056 = vpow.pop %v3055
        %v3057 = vmul.f32 %v3046, 1.442695
        %v3058 = vpow.pop %v3057
        %v3059 = vmul.f32 %v3047, 1.442695
        %v3060 = vpow.pop %v3059
        %v3061 = vmul.f32 %v3048, 1.442695
        %v3062 = vpow.pop %v3061
        %v3063 = vmul.f32 %v3049, 1.442695
        %v3064 = vpow.pop %v3063
        %v3065 = vmul.f32 %v3050, 1.442695
        %v3066 = vpow.pop %v3065
        %v3067 = vsel %vm954, %v3052, 0.0
        %3068 = vadd.xlane.f32.xlu0 %v3067
        %v3069 = vpop.xlane.xlu0 %3068
        %v3070 = vsel %vm954, %v3054, 0.0
        %3071 = vadd.xlane.f32.xlu0 %v3070
        %v3072 = vpop.xlane.xlu0 %3071
        %v3073 = vsel %vm954, %v3056, 0.0
        %3074 = vadd.xlane.f32.xlu0 %v3073
        %v3075 = vpop.xlane.xlu0 %3074
        %v3076 = vsel %vm954, %v3058, 0.0
        %3077 = vadd.xlane.f32.xlu0 %v3076
        %v3078 = vpop.xlane.xlu0 %3077
        %v3079 = vsel %vm954, %v3060, 0.0
        %3080 = vadd.xlane.f32.xlu0 %v3079
        %v3081 = vpop.xlane.xlu0 %3080
        %v3082 = vsel %vm954, %v3062, 0.0
        %3083 = vadd.xlane.f32.xlu0 %v3082
        %v3084 = vpop.xlane.xlu0 %3083
        %v3085 = vsel %vm954, %v3064, 0.0
        %3086 = vadd.xlane.f32.xlu0 %v3085
        %v3087 = vpop.xlane.xlu0 %3086
        %v3088 = vsel %vm954, %v3066, 0.0
        %3089 = vadd.xlane.f32.xlu0 %v3088
        %v3090 = vpop.xlane.xlu0 %3089
        %v3091 = vrcp.pop %v3069
        %v3092 = vmul.f32 %v3069, %v3091
        %v3093 = vsub.f32 1.0, %v3092
        %v3094 = vmul.f32 %v3091, %v3093
        %v3095 = vadd.f32 %v3091, %v3094
        %vm3096 = vweird.f32 %v3069
        %vm3097 = vweird.f32 %v3091
        %vm3098 = vmor %vm3096, %vm3097
        %v3099 = vsel %vm3098, %v3091, %v3095
        %v3100 = vand.u32 2147483647, %v3069
        %vm3101 = vcmp.eq.f32.partialorder %v3100, 8.507059e+37
        %v3102 = vand.u32 %v3069, 2147483648
        %v3103 = vor.u32 1.1754944e-38, %v3102
        %v3104 = vsel %vm3101, %v3103, %v3099
        %v3105 = vmul.f32 1.0, %v3104
        %v3106 = vrcp.pop %v3072
        %v3107 = vmul.f32 %v3072, %v3106
        %v3108 = vsub.f32 1.0, %v3107
        %v3109 = vmul.f32 %v3106, %v3108
        %v3110 = vadd.f32 %v3106, %v3109
        %vm3111 = vweird.f32 %v3072
        %vm3112 = vweird.f32 %v3106
        %vm3113 = vmor %vm3111, %vm3112
        %v3114 = vsel %vm3113, %v3106, %v3110
        %v3115 = vand.u32 2147483647, %v3072
        %vm3116 = vcmp.eq.f32.partialorder %v3115, 8.507059e+37
        %v3117 = vand.u32 %v3072, 2147483648
        %v3118 = vor.u32 1.1754944e-38, %v3117
        %v3119 = vsel %vm3116, %v3118, %v3114
        %v3120 = vmul.f32 1.0, %v3119
        %v3121 = vrcp.pop %v3075
        %v3122 = vmul.f32 %v3075, %v3121
        %v3123 = vsub.f32 1.0, %v3122
        %v3124 = vmul.f32 %v3121, %v3123
        %v3125 = vadd.f32 %v3121, %v3124
        %vm3126 = vweird.f32 %v3075
        %vm3127 = vweird.f32 %v3121
        %vm3128 = vmor %vm3126, %vm3127
        %v3129 = vsel %vm3128, %v3121, %v3125
        %v3130 = vand.u32 2147483647, %v3075
        %vm3131 = vcmp.eq.f32.partialorder %v3130, 8.507059e+37
        %v3132 = vand.u32 %v3075, 2147483648
        %v3133 = vor.u32 1.1754944e-38, %v3132
        %v3134 = vsel %vm3131, %v3133, %v3129
        %v3135 = vmul.f32 1.0, %v3134
        %v3136 = vrcp.pop %v3078
        %v3137 = vmul.f32 %v3078, %v3136
        %v3138 = vsub.f32 1.0, %v3137
        %v3139 = vmul.f32 %v3136, %v3138
        %v3140 = vadd.f32 %v3136, %v3139
        %vm3141 = vweird.f32 %v3078
        %vm3142 = vweird.f32 %v3136
        %vm3143 = vmor %vm3141, %vm3142
        %v3144 = vsel %vm3143, %v3136, %v3140
        %v3145 = vand.u32 2147483647, %v3078
        %vm3146 = vcmp.eq.f32.partialorder %v3145, 8.507059e+37
        %v3147 = vand.u32 %v3078, 2147483648
        %v3148 = vor.u32 1.1754944e-38, %v3147
        %v3149 = vsel %vm3146, %v3148, %v3144
        %v3150 = vmul.f32 1.0, %v3149
        %v3151 = vrcp.pop %v3081
        %v3152 = vmul.f32 %v3081, %v3151
        %v3153 = vsub.f32 1.0, %v3152
        %v3154 = vmul.f32 %v3151, %v3153
        %v3155 = vadd.f32 %v3151, %v3154
        %vm3156 = vweird.f32 %v3081
        %vm3157 = vweird.f32 %v3151
        %vm3158 = vmor %vm3156, %vm3157
        %v3159 = vsel %vm3158, %v3151, %v3155
        %v3160 = vand.u32 2147483647, %v3081
        %vm3161 = vcmp.eq.f32.partialorder %v3160, 8.507059e+37
        %v3162 = vand.u32 %v3081, 2147483648
        %v3163 = vor.u32 1.1754944e-38, %v3162
        %v3164 = vsel %vm3161, %v3163, %v3159
        %v3165 = vmul.f32 1.0, %v3164
        %v3166 = vrcp.pop %v3084
        %v3167 = vmul.f32 %v3084, %v3166
        %v3168 = vsub.f32 1.0, %v3167
        %v3169 = vmul.f32 %v3166, %v3168
        %v3170 = vadd.f32 %v3166, %v3169
        %vm3171 = vweird.f32 %v3084
        %vm3172 = vweird.f32 %v3166
        %vm3173 = vmor %vm3171, %vm3172
        %v3174 = vsel %vm3173, %v3166, %v3170
        %v3175 = vand.u32 2147483647, %v3084
        %vm3176 = vcmp.eq.f32.partialorder %v3175, 8.507059e+37
        %v3177 = vand.u32 %v3084, 2147483648
        %v3178 = vor.u32 1.1754944e-38, %v3177
        %v3179 = vsel %vm3176, %v3178, %v3174
        %v3180 = vmul.f32 1.0, %v3179
        %v3181 = vrcp.pop %v3087
        %v3182 = vmul.f32 %v3087, %v3181
        %v3183 = vsub.f32 1.0, %v3182
        %v3184 = vmul.f32 %v3181, %v3183
        %v3185 = vadd.f32 %v3181, %v3184
        %vm3186 = vweird.f32 %v3087
        %vm3187 = vweird.f32 %v3181
        %vm3188 = vmor %vm3186, %vm3187
        %v3189 = vsel %vm3188, %v3181, %v3185
        %v3190 = vand.u32 2147483647, %v3087
        %vm3191 = vcmp.eq.f32.partialorder %v3190, 8.507059e+37
        %v3192 = vand.u32 %v3087, 2147483648
        %v3193 = vor.u32 1.1754944e-38, %v3192
        %v3194 = vsel %vm3191, %v3193, %v3189
        %v3195 = vmul.f32 1.0, %v3194
        %v3196 = vrcp.pop %v3090
        %v3197 = vmul.f32 %v3090, %v3196
        %v3198 = vsub.f32 1.0, %v3197
        %v3199 = vmul.f32 %v3196, %v3198
        %v3200 = vadd.f32 %v3196, %v3199
        %vm3201 = vweird.f32 %v3090
        %vm3202 = vweird.f32 %v3196
        %vm3203 = vmor %vm3201, %vm3202
        %v3204 = vsel %vm3203, %v3196, %v3200
        %v3205 = vand.u32 2147483647, %v3090
        %vm3206 = vcmp.eq.f32.partialorder %v3205, 8.507059e+37
        %v3207 = vand.u32 %v3090, 2147483648
        %v3208 = vor.u32 1.1754944e-38, %v3207
        %v3209 = vsel %vm3206, %v3208, %v3204
        %v3210 = vmul.f32 1.0, %v3209
        %v3211 = vmul.f32 %v3052, %v3105
        %v3212 = vmul.f32 %v3054, %v3120
        %v3213 = vmul.f32 %v3056, %v3135
        %v3214 = vmul.f32 %v3058, %v3150
        %v3215 = vmul.f32 %v3060, %v3165
        %v3216 = vmul.f32 %v3062, %v3180
        %v3217 = vmul.f32 %v3064, %v3195
        %v3218 = vmul.f32 %v3066, %v3210
        %v3219 = vunpack.c.l.bf16 %v409
        %v3220 = vunpack.c.l.bf16 %v410
        %v3221 = vunpack.c.l.bf16 %v411
        %v3222 = vunpack.c.l.bf16 %v412
        %v3223 = vunpack.c.l.bf16 %v413
        %v3224 = vunpack.c.l.bf16 %v414
        %v3225 = vunpack.c.l.bf16 %v415
        %v3226 = vunpack.c.l.bf16 %v416
        %3228 = vset.pattern.permute.xlu0 0
        %3229 = vperm.xlu0 %3228, %v3211
        %v3230 = vpop.permute.xlu0 %3229
        %3233 = vset.pattern.permute.xlu0 0
        %3234 = vperm.xlu0 %3233, %v3212
        %v3235 = vpop.permute.xlu0 %3234
        %3238 = vset.pattern.permute.xlu0 0
        %3239 = vperm.xlu0 %3238, %v3213
        %v3240 = vpop.permute.xlu0 %3239
        %3243 = vset.pattern.permute.xlu0 0
        %3244 = vperm.xlu0 %3243, %v3214
        %v3245 = vpop.permute.xlu0 %3244
        %3248 = vset.pattern.permute.xlu0 0
        %3249 = vperm.xlu0 %3248, %v3215
        %v3250 = vpop.permute.xlu0 %3249
        %3253 = vset.pattern.permute.xlu0 0
        %3254 = vperm.xlu0 %3253, %v3216
        %v3255 = vpop.permute.xlu0 %3254
        %3258 = vset.pattern.permute.xlu0 0
        %3259 = vperm.xlu0 %3258, %v3217
        %v3260 = vpop.permute.xlu0 %3259
        %3263 = vset.pattern.permute.xlu0 0
        %3264 = vperm.xlu0 %3263, %v3218
        %v3265 = vpop.permute.xlu0 %3264
        %v3267 = vmul.f32 %v3230, %v591
        %v3268 = vmul.f32 %v3235, %v593
        %v3269 = vmul.f32 %v3240, %v596
        %v3270 = vmul.f32 %v3245, %v598
        %v3271 = vmul.f32 %v3250, %v601
        %v3272 = vmul.f32 %v3255, %v603
        %v3273 = vmul.f32 %v3260, %v606
        %v3274 = vmul.f32 %v3265, %v608
        %3283 = vrot.lane.b32.xlu0 %v3267, 64
        %v3284 = vpop.permute.xlu0 %3283
        %3285 = vrot.lane.b32.xlu0 %v3268, 64
        %v3286 = vpop.permute.xlu0 %3285
        %3287 = vrot.lane.b32.xlu0 %v3269, 64
        %v3288 = vpop.permute.xlu0 %3287
        %3289 = vrot.lane.b32.xlu0 %v3270, 64
        %v3290 = vpop.permute.xlu0 %3289
        %3291 = vrot.lane.b32.xlu0 %v3271, 64
        %v3292 = vpop.permute.xlu0 %3291
        %3293 = vrot.lane.b32.xlu0 %v3272, 64
        %v3294 = vpop.permute.xlu0 %3293
        %3295 = vrot.lane.b32.xlu0 %v3273, 64
        %v3296 = vpop.permute.xlu0 %3295
        %3297 = vrot.lane.b32.xlu0 %v3274, 64
        %v3298 = vpop.permute.xlu0 %3297
        %v3307 = vadd.f32 %v3219, %v3284
        %v3308 = vadd.f32 %v3220, %v3286
        %v3309 = vadd.f32 %v3221, %v3288
        %v3310 = vadd.f32 %v3222, %v3290
        %v3311 = vadd.f32 %v3223, %v3292
        %v3312 = vadd.f32 %v3224, %v3294
        %v3313 = vadd.f32 %v3225, %v3296
        %v3314 = vadd.f32 %v3226, %v3298
        %3315 = vset.pattern.permute.xlu0 1
        %3316 = vperm.xlu0 %3315, %v3211
        %v3317 = vpop.permute.xlu0 %3316
        %3319 = vset.pattern.permute.xlu0 1
        %3320 = vperm.xlu0 %3319, %v3212
        %v3321 = vpop.permute.xlu0 %3320
        %3323 = vset.pattern.permute.xlu0 1
        %3324 = vperm.xlu0 %3323, %v3213
        %v3325 = vpop.permute.xlu0 %3324
        %3327 = vset.pattern.permute.xlu0 1
        %3328 = vperm.xlu0 %3327, %v3214
        %v3329 = vpop.permute.xlu0 %3328
        %3331 = vset.pattern.permute.xlu0 1
        %3332 = vperm.xlu0 %3331, %v3215
        %v3333 = vpop.permute.xlu0 %3332
        %3335 = vset.pattern.permute.xlu0 1
        %3336 = vperm.xlu0 %3335, %v3216
        %v3337 = vpop.permute.xlu0 %3336
        %3339 = vset.pattern.permute.xlu0 1
        %3340 = vperm.xlu0 %3339, %v3217
        %v3341 = vpop.permute.xlu0 %3340
        %3343 = vset.pattern.permute.xlu0 1
        %3344 = vperm.xlu0 %3343, %v3218
        %v3345 = vpop.permute.xlu0 %3344
        %v3347 = vmul.f32 %v3317, %v611
        %v3348 = vmul.f32 %v3321, %v613
        %v3349 = vmul.f32 %v3325, %v616
        %v3350 = vmul.f32 %v3329, %v618
        %v3351 = vmul.f32 %v3333, %v621
        %v3352 = vmul.f32 %v3337, %v623
        %v3353 = vmul.f32 %v3341, %v626
        %v3354 = vmul.f32 %v3345, %v628
        %3363 = vrot.lane.b32.xlu0 %v3347, 64
        %v3364 = vpop.permute.xlu0 %3363
        %3365 = vrot.lane.b32.xlu0 %v3348, 64
        %v3366 = vpop.permute.xlu0 %3365
        %3367 = vrot.lane.b32.xlu0 %v3349, 64
        %v3368 = vpop.permute.xlu0 %3367
        %3369 = vrot.lane.b32.xlu0 %v3350, 64
        %v3370 = vpop.permute.xlu0 %3369
        %3371 = vrot.lane.b32.xlu0 %v3351, 64
        %v3372 = vpop.permute.xlu0 %3371
        %3373 = vrot.lane.b32.xlu0 %v3352, 64
        %v3374 = vpop.permute.xlu0 %3373
        %3375 = vrot.lane.b32.xlu0 %v3353, 64
        %v3376 = vpop.permute.xlu0 %3375
        %3377 = vrot.lane.b32.xlu0 %v3354, 64
        %v3378 = vpop.permute.xlu0 %3377
        %v3387 = vadd.f32 %v3307, %v3364
        %v3388 = vadd.f32 %v3308, %v3366
        %v3389 = vadd.f32 %v3309, %v3368
        %v3390 = vadd.f32 %v3310, %v3370
        %v3391 = vadd.f32 %v3311, %v3372
        %v3392 = vadd.f32 %v3312, %v3374
        %v3393 = vadd.f32 %v3313, %v3376
        %v3394 = vadd.f32 %v3314, %v3378
        %3395 = vset.pattern.permute.xlu0 2
        %3396 = vperm.xlu0 %3395, %v3211
        %v3397 = vpop.permute.xlu0 %3396
        %3399 = vset.pattern.permute.xlu0 2
        %3400 = vperm.xlu0 %3399, %v3212
        %v3401 = vpop.permute.xlu0 %3400
        %3403 = vset.pattern.permute.xlu0 2
        %3404 = vperm.xlu0 %3403, %v3213
        %v3405 = vpop.permute.xlu0 %3404
        %3407 = vset.pattern.permute.xlu0 2
        %3408 = vperm.xlu0 %3407, %v3214
        %v3409 = vpop.permute.xlu0 %3408
        %3411 = vset.pattern.permute.xlu0 2
        %3412 = vperm.xlu0 %3411, %v3215
        %v3413 = vpop.permute.xlu0 %3412
        %3415 = vset.pattern.permute.xlu0 2
        %3416 = vperm.xlu0 %3415, %v3216
        %v3417 = vpop.permute.xlu0 %3416
        %3419 = vset.pattern.permute.xlu0 2
        %3420 = vperm.xlu0 %3419, %v3217
        %v3421 = vpop.permute.xlu0 %3420
        %3423 = vset.pattern.permute.xlu0 2
        %3424 = vperm.xlu0 %3423, %v3218
        %v3425 = vpop.permute.xlu0 %3424
        %v3427 = vmul.f32 %v3397, %v631
        %v3428 = vmul.f32 %v3401, %v633
        %v3429 = vmul.f32 %v3405, %v636
        %v3430 = vmul.f32 %v3409, %v638
        %v3431 = vmul.f32 %v3413, %v641
        %v3432 = vmul.f32 %v3417, %v643
        %v3433 = vmul.f32 %v3421, %v646
        %v3434 = vmul.f32 %v3425, %v648
        %3443 = vrot.lane.b32.xlu0 %v3427, 64
        %v3444 = vpop.permute.xlu0 %3443
        %3445 = vrot.lane.b32.xlu0 %v3428, 64
        %v3446 = vpop.permute.xlu0 %3445
        %3447 = vrot.lane.b32.xlu0 %v3429, 64
        %v3448 = vpop.permute.xlu0 %3447
        %3449 = vrot.lane.b32.xlu0 %v3430, 64
        %v3450 = vpop.permute.xlu0 %3449
        %3451 = vrot.lane.b32.xlu0 %v3431, 64
        %v3452 = vpop.permute.xlu0 %3451
        %3453 = vrot.lane.b32.xlu0 %v3432, 64
        %v3454 = vpop.permute.xlu0 %3453
        %3455 = vrot.lane.b32.xlu0 %v3433, 64
        %v3456 = vpop.permute.xlu0 %3455
        %3457 = vrot.lane.b32.xlu0 %v3434, 64
        %v3458 = vpop.permute.xlu0 %3457
        %v3467 = vadd.f32 %v3387, %v3444
        %v3468 = vadd.f32 %v3388, %v3446
        %v3469 = vadd.f32 %v3389, %v3448
        %v3470 = vadd.f32 %v3390, %v3450
        %v3471 = vadd.f32 %v3391, %v3452
        %v3472 = vadd.f32 %v3392, %v3454
        %v3473 = vadd.f32 %v3393, %v3456
        %v3474 = vadd.f32 %v3394, %v3458
        %3475 = vset.pattern.permute.xlu0 3
        %3476 = vperm.xlu0 %3475, %v3211
        %v3477 = vpop.permute.xlu0 %3476
        %3479 = vset.pattern.permute.xlu0 3
        %3480 = vperm.xlu0 %3479, %v3212
        %v3481 = vpop.permute.xlu0 %3480
        %3483 = vset.pattern.permute.xlu0 3
        %3484 = vperm.xlu0 %3483, %v3213
        %v3485 = vpop.permute.xlu0 %3484
        %3487 = vset.pattern.permute.xlu0 3
        %3488 = vperm.xlu0 %3487, %v3214
        %v3489 = vpop.permute.xlu0 %3488
        %3491 = vset.pattern.permute.xlu0 3
        %3492 = vperm.xlu0 %3491, %v3215
        %v3493 = vpop.permute.xlu0 %3492
        %3495 = vset.pattern.permute.xlu0 3
        %3496 = vperm.xlu0 %3495, %v3216
        %v3497 = vpop.permute.xlu0 %3496
        %3499 = vset.pattern.permute.xlu0 3
        %3500 = vperm.xlu0 %3499, %v3217
        %v3501 = vpop.permute.xlu0 %3500
        %3503 = vset.pattern.permute.xlu0 3
        %3504 = vperm.xlu0 %3503, %v3218
        %v3505 = vpop.permute.xlu0 %3504
        %v3507 = vmul.f32 %v3477, %v651
        %v3508 = vmul.f32 %v3481, %v653
        %v3509 = vmul.f32 %v3485, %v656
        %v3510 = vmul.f32 %v3489, %v658
        %v3511 = vmul.f32 %v3493, %v661
        %v3512 = vmul.f32 %v3497, %v663
        %v3513 = vmul.f32 %v3501, %v666
        %v3514 = vmul.f32 %v3505, %v668
        %3523 = vrot.lane.b32.xlu0 %v3507, 64
        %v3524 = vpop.permute.xlu0 %3523
        %3525 = vrot.lane.b32.xlu0 %v3508, 64
        %v3526 = vpop.permute.xlu0 %3525
        %3527 = vrot.lane.b32.xlu0 %v3509, 64
        %v3528 = vpop.permute.xlu0 %3527
        %3529 = vrot.lane.b32.xlu0 %v3510, 64
        %v3530 = vpop.permute.xlu0 %3529
        %3531 = vrot.lane.b32.xlu0 %v3511, 64
        %v3532 = vpop.permute.xlu0 %3531
        %3533 = vrot.lane.b32.xlu0 %v3512, 64
        %v3534 = vpop.permute.xlu0 %3533
        %3535 = vrot.lane.b32.xlu0 %v3513, 64
        %v3536 = vpop.permute.xlu0 %3535
        %3537 = vrot.lane.b32.xlu0 %v3514, 64
        %v3538 = vpop.permute.xlu0 %3537
        %v3547 = vadd.f32 %v3467, %v3524
        %v3548 = vadd.f32 %v3468, %v3526
        %v3549 = vadd.f32 %v3469, %v3528
        %v3550 = vadd.f32 %v3470, %v3530
        %v3551 = vadd.f32 %v3471, %v3532
        %v3552 = vadd.f32 %v3472, %v3534
        %v3553 = vadd.f32 %v3473, %v3536
        %v3554 = vadd.f32 %v3474, %v3538
        %3563 = vrot.lane.b32.xlu0 %v2171, 64
        %v3564 = vpop.permute.xlu0 %3563
        %3565 = vrot.lane.b32.xlu0 %v2172, 64
        %v3566 = vpop.permute.xlu0 %3565
        %3567 = vrot.lane.b32.xlu0 %v2173, 64
        %v3568 = vpop.permute.xlu0 %3567
        %3569 = vrot.lane.b32.xlu0 %v2174, 64
        %v3570 = vpop.permute.xlu0 %3569
        %3571 = vrot.lane.b32.xlu0 %v2175, 64
        %v3572 = vpop.permute.xlu0 %3571
        %3573 = vrot.lane.b32.xlu0 %v2176, 64
        %v3574 = vpop.permute.xlu0 %3573
        %3575 = vrot.lane.b32.xlu0 %v2177, 64
        %v3576 = vpop.permute.xlu0 %3575
        %3577 = vrot.lane.b32.xlu0 %v2178, 64
        %v3578 = vpop.permute.xlu0 %3577
        %3595 = vrot.lane.b32.xlu0 %v3547, 64
        %v3596 = vpop.permute.xlu0 %3595
        %3597 = vrot.lane.b32.xlu0 %v3548, 64
        %v3598 = vpop.permute.xlu0 %3597
        %3599 = vrot.lane.b32.xlu0 %v3549, 64
        %v3600 = vpop.permute.xlu0 %3599
        %3601 = vrot.lane.b32.xlu0 %v3550, 64
        %v3602 = vpop.permute.xlu0 %3601
        %3603 = vrot.lane.b32.xlu0 %v3551, 64
        %v3604 = vpop.permute.xlu0 %3603
        %3605 = vrot.lane.b32.xlu0 %v3552, 64
        %v3606 = vpop.permute.xlu0 %3605
        %3607 = vrot.lane.b32.xlu0 %v3553, 64
        %v3608 = vpop.permute.xlu0 %3607
        %3609 = vrot.lane.b32.xlu0 %v3554, 64
        %v3610 = vpop.permute.xlu0 %3609
        %v3619 = vsel %vm532, %v1483, %v3564
        %v3620 = vsel %vm532, %v1484, %v3566
        %v3621 = vsel %vm532, %v1485, %v3568
        %v3622 = vsel %vm532, %v1486, %v3570
        %v3623 = vsel %vm532, %v1487, %v3572
        %v3624 = vsel %vm532, %v1488, %v3574
        %v3625 = vsel %vm532, %v1489, %v3576
        %v3626 = vsel %vm532, %v1490, %v3578
        %v3627 = vsel %vm532, %v2859, %v3596
        %v3628 = vsel %vm532, %v2860, %v3598
        %v3629 = vsel %vm532, %v2861, %v3600
        %v3630 = vsel %vm532, %v2862, %v3602
        %v3631 = vsel %vm532, %v2863, %v3604
        %v3632 = vsel %vm532, %v2864, %v3606
        %v3633 = vsel %vm532, %v2865, %v3608
        %v3634 = vsel %vm532, %v2866, %v3610
        %3635 = vst [vmem:[%s376] sm:$0xff] %v3619
        %3636 = vst [vmem:[%s376 + $0x8] sm:$0xff] %v3627
        %3637 = vst [vmem:[%s376 + $0x10] sm:$0xff] %v3620
        %3638 = vst [vmem:[%s376 + $0x18] sm:$0xff] %v3628
        %3639 = vst [vmem:[%s376 + $0x20] sm:$0xff] %v3621
        %3640 = vst [vmem:[%s376 + $0x28] sm:$0xff] %v3629
        %3641 = vst [vmem:[%s376 + $0x30] sm:$0xff] %v3622
        %3642 = vst [vmem:[%s376 + $0x38] sm:$0xff] %v3630
        %3643 = vst [vmem:[%s376 + $0x40] sm:$0xff] %v3623
        %3644 = vst [vmem:[%s376 + $0x48] sm:$0xff] %v3631
        %3645 = vst [vmem:[%s376 + $0x50] sm:$0xff] %v3624
        %3646 = vst [vmem:[%s376 + $0x58] sm:$0xff] %v3632
        %3647 = vst [vmem:[%s376 + $0x60] sm:$0xff] %v3625
        %3648 = vst [vmem:[%s376 + $0x68] sm:$0xff] %v3633
        %3649 = vst [vmem:[%s376 + $0x70] sm:$0xff] %v3626
        %3650 = vst [vmem:[%s376 + $0x78] sm:$0xff] %v3634
        %3651 = vrot.lane.b32.xlu0 %v1835, 4
        %v3652 = vpop.permute.xlu0 %3651
        %3653 = vrot.lane.b32.xlu0 %v1836, 4
        %v3654 = vpop.permute.xlu0 %3653
        %3655 = vrot.lane.b32.xlu0 %v1837, 4
        %v3656 = vpop.permute.xlu0 %3655
        %3657 = vrot.lane.b32.xlu0 %v1838, 4
        %v3658 = vpop.permute.xlu0 %3657
        %3659 = vrot.lane.b32.xlu0 %v1839, 4
        %v3660 = vpop.permute.xlu0 %3659
        %3661 = vrot.lane.b32.xlu0 %v1840, 4
        %v3662 = vpop.permute.xlu0 %3661
        %3663 = vrot.lane.b32.xlu0 %v1841, 4
        %v3664 = vpop.permute.xlu0 %3663
        %3665 = vrot.lane.b32.xlu0 %v1842, 4
        %v3666 = vpop.permute.xlu0 %3665
        %3675 = vrot.lane.b32.xlu0 %v2523, 8
        %v3676 = vpop.permute.xlu0 %3675
        %3677 = vrot.lane.b32.xlu0 %v2524, 8
        %v3678 = vpop.permute.xlu0 %3677
        %3679 = vrot.lane.b32.xlu0 %v2525, 8
        %v3680 = vpop.permute.xlu0 %3679
        %3681 = vrot.lane.b32.xlu0 %v2526, 8
        %v3682 = vpop.permute.xlu0 %3681
        %3683 = vrot.lane.b32.xlu0 %v2527, 8
        %v3684 = vpop.permute.xlu0 %3683
        %3685 = vrot.lane.b32.xlu0 %v2528, 8
        %v3686 = vpop.permute.xlu0 %3685
        %3687 = vrot.lane.b32.xlu0 %v2529, 8
        %v3688 = vpop.permute.xlu0 %3687
        %3689 = vrot.lane.b32.xlu0 %v2530, 8
        %v3690 = vpop.permute.xlu0 %3689
        %3699 = vrot.lane.b32.xlu0 %v3211, 12
        %v3700 = vpop.permute.xlu0 %3699
        %3701 = vrot.lane.b32.xlu0 %v3212, 12
        %v3702 = vpop.permute.xlu0 %3701
        %3703 = vrot.lane.b32.xlu0 %v3213, 12
        %v3704 = vpop.permute.xlu0 %3703
        %3705 = vrot.lane.b32.xlu0 %v3214, 12
        %v3706 = vpop.permute.xlu0 %3705
        %3707 = vrot.lane.b32.xlu0 %v3215, 12
        %v3708 = vpop.permute.xlu0 %3707
        %3709 = vrot.lane.b32.xlu0 %v3216, 12
        %v3710 = vpop.permute.xlu0 %3709
        %3711 = vrot.lane.b32.xlu0 %v3217, 12
        %v3712 = vpop.permute.xlu0 %3711
        %3713 = vrot.lane.b32.xlu0 %v3218, 12
        %v3714 = vpop.permute.xlu0 %3713
        %v3723 = vsel %vm954, %v1147, %v3652
        %v3724 = vsel %vm954, %v1148, %v3654
        %v3725 = vsel %vm954, %v1149, %v3656
        %v3726 = vsel %vm954, %v1150, %v3658
        %v3727 = vsel %vm954, %v1151, %v3660
        %v3728 = vsel %vm954, %v1152, %v3662
        %v3729 = vsel %vm954, %v1153, %v3664
        %v3730 = vsel %vm954, %v1154, %v3666
        %vm3731 = vcmask 64512
        %v3732 = vsel %vm3731, %v3723, %v3676
        %v3733 = vsel %vm3731, %v3724, %v3678
        %v3734 = vsel %vm3731, %v3725, %v3680
        %v3735 = vsel %vm3731, %v3726, %v3682
        %v3736 = vsel %vm3731, %v3727, %v3684
        %v3737 = vsel %vm3731, %v3728, %v3686
        %v3738 = vsel %vm3731, %v3729, %v3688
        %v3739 = vsel %vm3731, %v3730, %v3690
        %vm3740 = vcmask 97280
        %v3741 = vsel %vm3740, %v3732, %v3700
        %v3742 = vsel %vm3740, %v3733, %v3702
        %v3743 = vsel %vm3740, %v3734, %v3704
        %v3744 = vsel %vm3740, %v3735, %v3706
        %v3745 = vsel %vm3740, %v3736, %v3708
        %v3746 = vsel %vm3740, %v3737, %v3710
        %v3747 = vsel %vm3740, %v3738, %v3712
        %v3748 = vsel %vm3740, %v3739, %v3714
        %vm3749 = vcmask 130048
        %3750 = vst.msk [vmem:[%s382] sm:$0xff] %vm3749, %v3741
        %3751 = vst.msk [vmem:[%s382 + $0x8] sm:$0xff] %vm3749, %v3742
        %3752 = vst.msk [vmem:[%s382 + $0x10] sm:$0xff] %vm3749, %v3743
        %3753 = vst.msk [vmem:[%s382 + $0x18] sm:$0xff] %vm3749, %v3744
        %3754 = vst.msk [vmem:[%s382 + $0x20] sm:$0xff] %vm3749, %v3745
        %3755 = vst.msk [vmem:[%s382 + $0x28] sm:$0xff] %vm3749, %v3746
        %3756 = vst.msk [vmem:[%s382 + $0x30] sm:$0xff] %vm3749, %v3747
        %3757 = vst.msk [vmem:[%s382 + $0x38] sm:$0xff] %vm3749, %v3748
        %s3758 = smul.u32 8, %s16
        %p3759 = scmp.lt.s32.totalorder %s3758, 15
        %s3760 = scalar_select %p3759, %s3758, 15
        %s3761 = smul.addr %s3760, 2
        %s3762 = smul.addr %s3761, 8
        %s3763 = scalar_lea.vmem %s3, %s3762
        %s3764 = smul.u32 8, %s16
        %p3765 = scmp.lt.s32.totalorder %s3764, 15
        %s3766 = scalar_select %p3765, %s3764, 15
        %s3767 = smul.addr %s3766, 8
        %s3768 = scalar_lea.vmem %s4, %s3767
        // Predicated region
        $region74: #{local_conv_self_attention.1} parent=68 // pred_check
          %p3769 = pneg %p102
        $region75: #{local_conv_self_attention.1} parent=68 // pred_check_branch
          %3771 = sbr.rel (%p3769) target = $region77
        $region76: #{local_conv_self_attention.1} parent=68 // pred_region
          %s3772 = smul.u32 8, %s16
        $region77: #{local_conv_self_attention.1} parent=68 // pred_fallthru
          _
        // Predicated region
        $region78: #{local_conv_self_attention.1} parent=68 // pred_check
          %p3773 = pneg %p128
        $region79: #{local_conv_self_attention.1} parent=68 // pred_check_branch
          %3775 = sbr.rel (%p3773) target = $region81
        $region80: #{local_conv_self_attention.1} parent=68 // pred_region
          %s3776 = smul.u32 8, %s16
        $region81: #{local_conv_self_attention.1} parent=68 // pred_fallthru
          _
      $region69: #{local_conv_self_attention.1} parent=5 // pred_fallthru
        _
      %p3777 = scmp.le.s32.totalorder 2, %s11
      // Predicated region
      $region82: #{local_conv_self_attention.1} parent=5 // pred_check
        %p3778 = pneg %p3777
      $region83: #{local_conv_self_attention.1} parent=5 // pred_check_branch
        %3780 = sbr.rel (%p3778) target = $region85
      $region84: #{local_conv_self_attention.1} parent=5 // pred_region
        %s3781 = ssub.s32 %s11, 2
        // Predicated region
        $region86: #{local_conv_self_attention.1} parent=84 // pred_check
          %p3782 = pneg %p108
        $region87: #{local_conv_self_attention.1} parent=84 // pred_check_branch
          %3784 = sbr.rel (%p3782) target = $region89
        $region88: #{local_conv_self_attention.1} parent=84 // pred_region
          %s3785 = smul.u32 8, %s17
          %p3786 = scmp.lt.s32.totalorder %s3785, 15
          %s3787 = scalar_select %p3786, %s3785, 15
          %s3788 = smul.addr %s3787, 2
          %s3789 = smul.addr %s3788, 8
          %s3790 = scalar_lea.vmem %s3, %s3789
        $region89: #{local_conv_self_attention.1} parent=84 // pred_fallthru
          _
        // Predicated region
        $region90: #{local_conv_self_attention.1} parent=84 // pred_check
          %p3791 = pneg %p134
        $region91: #{local_conv_self_attention.1} parent=84 // pred_check_branch
          %3793 = sbr.rel (%p3791) target = $region93
        $region92: #{local_conv_self_attention.1} parent=84 // pred_region
          %s3794 = smul.u32 8, %s17
          %p3795 = scmp.lt.s32.totalorder %s3794, 15
          %s3796 = scalar_select %p3795, %s3794, 15
          %s3797 = smul.addr %s3796, 8
          %s3798 = scalar_lea.vmem %s4, %s3797
        $region93: #{local_conv_self_attention.1} parent=84 // pred_fallthru
          _
      $region85: #{local_conv_self_attention.1} parent=5 // pred_fallthru
        _
    $region6: #{local_conv_self_attention.1} parent=1 // loop_footer
      %s15 = sadd.s32 1, %s11
    $region7: #{local_conv_self_attention.1} parent=1 // loop_footer_branch
      %10 = sbr.rel target = $region3
    $region8: #{local_conv_self_attention.1} parent=1 // loop_exit
      _

</llo_original>
